<compile_context>
chip_gen: v6e
topology: v6e:2x2x1
jax: 0.10.0
libtpu: 0.0.40
codegen_flags: <defaults>
</compile_context>

<pallas_src>
import jax
import jax.numpy as jnp
from jax import lax
from jax.experimental import pallas as pl
from jax.experimental.pallas import tpu as pltpu


def _bf16(x):
    return x.astype(jnp.bfloat16)


# ------------------------------ fused kernel --------------------------------

def lenet_fused_kernel(x_ref, t1_ref, b1_ref, s1e_ref, s1o_ref,
                       t2_ref, b2_ref, s2e_ref, s2o_ref,
                       w3_ref, b3_ref, w4_ref, b4_ref, w5_ref, b5_ref,
                       o_ref):
    f32 = jnp.float32
    xb = x_ref[0]                                                # (32, 32) f32

    # conv1 (1->6, 5x5, valid) + bias + ReLU  ->  (28, 28*6)
    h1 = jnp.dot(_bf16(xb[0:28, :]), t1_ref[0], preferred_element_type=f32)
    for i in range(1, 5):
        h1 = h1 + jnp.dot(_bf16(xb[i:i + 28, :]), t1_ref[i],
                          preferred_element_type=f32)
    h1 = jnp.maximum(h1 + b1_ref[...], 0.0)

    # 2x2 max pool: W via lane-shifted max, H via one-hot selection matmuls
    q1 = _bf16(jnp.maximum(h1[:, 0:162], h1[:, 6:168]))          # (28, 27*6)
    p1 = jnp.maximum(jnp.dot(s1e_ref[...], q1, preferred_element_type=f32),
                     jnp.dot(s1o_ref[...], q1, preferred_element_type=f32))
    # p1: (14, 162), valid entries at even W positions (handled by t2 zeros)

    # conv2 (6->16, 5x5, valid) + bias + ReLU  ->  (10, 10*16)
    h2 = jnp.dot(_bf16(p1[0:10, :]), t2_ref[0], preferred_element_type=f32)
    for i in range(1, 5):
        h2 = h2 + jnp.dot(_bf16(p1[i:i + 10, :]), t2_ref[i],
                          preferred_element_type=f32)
    h2 = jnp.maximum(h2 + b2_ref[...], 0.0)

    # 2x2 max pool  ->  (5, 9*16), valid at even W positions
    q2 = _bf16(jnp.maximum(h2[:, 0:144], h2[:, 16:160]))         # (10, 144)
    p2 = jnp.maximum(jnp.dot(s2e_ref[...], q2, preferred_element_type=f32),
                     jnp.dot(s2o_ref[...], q2, preferred_element_type=f32))

    # conv3 (16->120, 5x5 over a 5x5 map == dense) + bias + ReLU -> (1, 120)
    h3 = jnp.dot(_bf16(p2[0:1, :]), w3_ref[0], preferred_element_type=f32)
    for i in range(1, 5):
        h3 = h3 + jnp.dot(_bf16(p2[i:i + 1, :]), w3_ref[i],
                          preferred_element_type=f32)
    h3 = jnp.maximum(h3 + b3_ref[...], 0.0)

    # regressor: Linear(120->64) + ReLU, Linear(64->1) + Sigmoid
    h4 = jnp.maximum(jnp.dot(_bf16(h3), w4_ref[...],
                             preferred_element_type=f32) + b4_ref[...], 0.0)
    z = jnp.dot(_bf16(h4), w5_ref[...],
                preferred_element_type=f32) + b5_ref[...]        # (1, 1)
    sig = 1.0 / (1.0 + jnp.exp(-z))
    o_ref[...] = sig.reshape(1, 1, 1)


# ------------------------ one-time weight repacking --------------------------

def precompute_kernel_weights(params):
    """Repack PyTorch-layout weights into kernel-ready form (call once).

    Conv layers become per-tap Toeplitz matrices over the W axis so the
    in-kernel convolution is a sum of five plain 2-D matmuls per layer; the
    max-pool H compaction becomes two exact one-hot selection matmuls.  All
    matmul operands are pre-cast to bf16 (accumulation in-kernel is f32).
    """
    f32, bf16 = jnp.float32, jnp.bfloat16
    w1, b1 = params["conv1_w"], params["conv1_b"]     # (6,1,5,5), (6,)
    w2, b2 = params["conv2_w"], params["conv2_b"]     # (16,6,5,5), (16,)
    w3, b3 = params["conv3_w"], params["conv3_b"]     # (120,16,5,5), (120,)
    w4, b4 = params["fc1_w"], params["fc1_b"]         # (64,120), (64,)
    w5, b5 = params["fc2_w"], params["fc2_b"]         # (1,64), (1,)

    # conv1: t1[i, wj, wo*6+co] = w1[co, 0, i, wj-wo]  for 0 <= wj-wo < 5
    w1r = jnp.transpose(w1[:, 0], (1, 2, 0))                               # (5,5,6)
    oh1 = (jnp.arange(32)[:, None, None]
           == jnp.arange(28)[None, :, None] + jnp.arange(5)[None, None, :]
           ).astype(f32)                                                   # (32,28,5)
    t1 = jnp.einsum('abj,ijc->iabc', oh1, w1r).reshape(5, 32, 28 * 6)

    # conv2: input lanes = 27*6 (pool1, valid at even W), output lanes = 10*16
    # t2[i, (2*w2)*6+c, wo*16+co] = w2[co, c, i, w2-wo]  for 0 <= w2-wo < 5
    w2r = jnp.transpose(w2, (2, 3, 1, 0))                                  # (5,5,6,16)
    oh2 = (jnp.arange(27)[:, None, None]
           == 2 * (jnp.arange(10)[None, :, None] + jnp.arange(5)[None, None, :])
           ).astype(f32)                                                   # (27,10,5)
    t2 = jnp.einsum('wpj,ijcq->iwcpq', oh2, w2r).reshape(5, 27 * 6, 10 * 16)

    # conv3: per-H-row dense weight; input lanes = 9*16 (pool2, valid even W)
    # w3m[i, (2*j)*16+c, co] = w3[co, c, i, j]
    w3r = jnp.transpose(w3, (2, 3, 1, 0))                                  # (5,5,16,120)
    oh3 = (jnp.arange(9)[:, None] == 2 * jnp.arange(5)[None, :]).astype(f32)
    w3m = jnp.einsum('wj,ijcq->iwcq', oh3, w3r).reshape(5, 9 * 16, 120)

    def selectors(n_out, n_in):  # one-hot even / odd row selectors
        r = jnp.arange(n_in)[None, :]
        k = jnp.arange(n_out)[:, None]
        return (r == 2 * k).astype(bf16), (r == 2 * k + 1).astype(bf16)

    s1e, s1o = selectors(14, 28)
    s2e, s2o = selectors(5, 10)

    return dict(
        t1=t1.astype(bf16), b1=jnp.tile(b1, 28).reshape(1, 168).astype(f32),
        s1e=s1e, s1o=s1o,
        t2=t2.astype(bf16), b2=jnp.tile(b2, 10).reshape(1, 160).astype(f32),
        s2e=s2e, s2o=s2o,
        w3=w3m.astype(bf16), b3=b3.reshape(1, 120).astype(f32),
        w4=jnp.transpose(w4).astype(bf16), b4=b4.reshape(1, 64).astype(f32),
        w5=jnp.transpose(w5).astype(bf16), b5=b5.reshape(1, 1).astype(f32),
    )


# ------------------------------- forward ------------------------------------

def _lenet_pallas_call(x_b32, kw):
    B = x_b32.shape[0]

    def full(shape):
        return pl.BlockSpec(shape, lambda b, _s=shape: (0,) * len(_s))

    in_specs = [
        pl.BlockSpec((1, 32, 32), lambda b: (b, 0, 0)),
        full(kw["t1"].shape), full(kw["b1"].shape),
        full(kw["s1e"].shape), full(kw["s1o"].shape),
        full(kw["t2"].shape), full(kw["b2"].shape),
        full(kw["s2e"].shape), full(kw["s2o"].shape),
        full(kw["w3"].shape), full(kw["b3"].shape),
        full(kw["w4"].shape), full(kw["b4"].shape),
        full(kw["w5"].shape), full(kw["b5"].shape),
    ]
    out_specs = pl.BlockSpec((1, 1, 1), lambda b: (b, 0, 0))
    return pl.pallas_call(
        lenet_fused_kernel,
        grid=(B,),
        in_specs=in_specs,
        out_specs=out_specs,
        out_shape=jax.ShapeDtypeStruct((B, 1, 1), jnp.float32),
        compiler_params=pltpu.CompilerParams(dimension_semantics=("parallel",)),
    )(x_b32, kw["t1"], kw["b1"], kw["s1e"], kw["s1o"],
      kw["t2"], kw["b2"], kw["s2e"], kw["s2o"],
      kw["w3"], kw["b3"], kw["w4"], kw["b4"], kw["w5"], kw["b5"])


@jax.jit
def lenet_regression_forward(x_nchw, kw):
    # PyTorch NCHW input, Cin == 1; LeNet feature extractor requires 32x32.
    assert x_nchw.shape[1] == 1 and x_nchw.shape[2] == 32 and x_nchw.shape[3] == 32
    x = x_nchw[:, 0, :, :].astype(jnp.float32)        # (B, 32, 32)
    out = _lenet_pallas_call(x, kw)                   # (B, 1, 1)
    return out.reshape(-1)                            # torch.flatten(ans)


# ----------------------- params & pure-JAX reference -------------------------

def init_params(key):
    ks = jax.random.split(key, 10)
    s = 0.1
    return dict(
        conv1_w=jax.random.normal(ks[0], (6, 1, 5, 5), jnp.float32) * s,
        conv1_b=jax.random.normal(ks[1], (6,), jnp.float32) * s,
        conv2_w=jax.random.normal(ks[2], (16, 6, 5, 5), jnp.float32) * s,
        conv2_b=jax.random.normal(ks[3], (16,), jnp.float32) * s,
        conv3_w=jax.random.normal(ks[4], (120, 16, 5, 5), jnp.float32) * s,
        conv3_b=jax.random.normal(ks[5], (120,), jnp.float32) * s,
        fc1_w=jax.random.normal(ks[6], (64, 120), jnp.float32) * s,
        fc1_b=jax.random.normal(ks[7], (64,), jnp.float32) * s,
        fc2_w=jax.random.normal(ks[8], (1, 64), jnp.float32) * s,
        fc2_b=jax.random.normal(ks[9], (1,), jnp.float32) * s,
    )


def reference_forward(x_nchw, params):
    dn = ("NCHW", "OIHW", "NCHW")
    y = lax.conv_general_dilated(x_nchw, params["conv1_w"], (1, 1), "VALID",
                                 dimension_numbers=dn)
    y = jnp.maximum(y + params["conv1_b"][None, :, None, None], 0.0)
    y = lax.reduce_window(y, -jnp.inf, lax.max, (1, 1, 2, 2), (1, 1, 2, 2), "VALID")
    y = lax.conv_general_dilated(y, params["conv2_w"], (1, 1), "VALID",
                                 dimension_numbers=dn)
    y = jnp.maximum(y + params["conv2_b"][None, :, None, None], 0.0)
    y = lax.reduce_window(y, -jnp.inf, lax.max, (1, 1, 2, 2), (1, 1, 2, 2), "VALID")
    y = lax.conv_general_dilated(y, params["conv3_w"], (1, 1), "VALID",
                                 dimension_numbers=dn)
    y = jnp.maximum(y + params["conv3_b"][None, :, None, None], 0.0)
    y = y.reshape(y.shape[0], 120)
    y = jnp.maximum(y @ params["fc1_w"].T + params["fc1_b"], 0.0)
    y = y @ params["fc2_w"].T + params["fc2_b"]
    return (1.0 / (1.0 + jnp.exp(-y))).reshape(-1)


if __name__ == "__main__":
    key = jax.random.PRNGKey(0)
    k_in, k_par = jax.random.split(key)
    x = jax.random.normal(k_in, (2, 1, 32, 32), jnp.float32)
    params = init_params(k_par)

    kernel_weights = precompute_kernel_weights(params)   # one-time repack
    out = lenet_regression_forward(x, kernel_weights)
    out = jax.block_until_ready(out)

    ref = reference_forward(x, params)
    assert out.shape == (2,), out.shape
    assert bool(jnp.all(jnp.isfinite(out)))
    assert bool(jnp.all((out >= 0.0) & (out <= 1.0)))         # sigmoid range
    assert bool(jnp.allclose(out, ref, atol=5e-2)), (out, ref)  # bf16 MXU tolerance
    print("KERNEL_OK")
</pallas_src>

<mosaic_0001>
module attributes {stable_mosaic.version = 11 : i64} {
  func.func @lenet_fused_kernel(%arg0: i32, %arg1: memref<1x32x32xf32, #tpu.memory_space<vmem>>, %arg2: memref<5x32x168xbf16, #tpu.memory_space<vmem>>, %arg3: memref<1x168xf32, #tpu.memory_space<vmem>>, %arg4: memref<14x28xbf16, #tpu.memory_space<vmem>>, %arg5: memref<14x28xbf16, #tpu.memory_space<vmem>>, %arg6: memref<5x162x160xbf16, #tpu.memory_space<vmem>>, %arg7: memref<1x160xf32, #tpu.memory_space<vmem>>, %arg8: memref<5x10xbf16, #tpu.memory_space<vmem>>, %arg9: memref<5x10xbf16, #tpu.memory_space<vmem>>, %arg10: memref<5x144x120xbf16, #tpu.memory_space<vmem>>, %arg11: memref<1x120xf32, #tpu.memory_space<vmem>>, %arg12: memref<120x64xbf16, #tpu.memory_space<vmem>>, %arg13: memref<1x64xf32, #tpu.memory_space<vmem>>, %arg14: memref<64x1xbf16, #tpu.memory_space<vmem>>, %arg15: memref<1x1xf32, #tpu.memory_space<vmem>>, %arg16: memref<1x1x1xf32, #tpu.memory_space<vmem>>) attributes {dimension_semantics = [#tpu.dimension_semantics<parallel>], iteration_bounds = array<i64: 2>, scalar_prefetch = 0 : i64, scratch_operands = 0 : i64, tpu.core_type = #tpu.core_type<tc>, window_params = [{transform_indices = @transform_0, window_bounds = array<i64: 1, 32, 32>}, {pipeline_mode = #tpu.pipeline_mode<synchronous>, transform_indices = @transform_1, window_bounds = array<i64: 5, 32, 168>}, {pipeline_mode = #tpu.pipeline_mode<synchronous>, transform_indices = @transform_2, window_bounds = array<i64: 1, 168>}, {pipeline_mode = #tpu.pipeline_mode<synchronous>, transform_indices = @transform_3, window_bounds = array<i64: 14, 28>}, {pipeline_mode = #tpu.pipeline_mode<synchronous>, transform_indices = @transform_4, window_bounds = array<i64: 14, 28>}, {pipeline_mode = #tpu.pipeline_mode<synchronous>, transform_indices = @transform_5, window_bounds = array<i64: 5, 162, 160>}, {pipeline_mode = #tpu.pipeline_mode<synchronous>, transform_indices = @transform_6, window_bounds = array<i64: 1, 160>}, {pipeline_mode = #tpu.pipeline_mode<synchronous>, transform_indices = @transform_7, window_bounds = array<i64: 5, 10>}, {pipeline_mode = #tpu.pipeline_mode<synchronous>, transform_indices = @transform_8, window_bounds = array<i64: 5, 10>}, {pipeline_mode = #tpu.pipeline_mode<synchronous>, transform_indices = @transform_9, window_bounds = array<i64: 5, 144, 120>}, {pipeline_mode = #tpu.pipeline_mode<synchronous>, transform_indices = @transform_10, window_bounds = array<i64: 1, 120>}, {pipeline_mode = #tpu.pipeline_mode<synchronous>, transform_indices = @transform_11, window_bounds = array<i64: 120, 64>}, {pipeline_mode = #tpu.pipeline_mode<synchronous>, transform_indices = @transform_12, window_bounds = array<i64: 1, 64>}, {pipeline_mode = #tpu.pipeline_mode<synchronous>, transform_indices = @transform_13, window_bounds = array<i64: 64, 1>}, {pipeline_mode = #tpu.pipeline_mode<synchronous>, transform_indices = @transform_14, window_bounds = array<i64: 1, 1>}, {transform_indices = @transform_15, window_bounds = array<i64: 1, 1, 1>}]} {
    %c0 = arith.constant 0 : index
    %c0_0 = arith.constant 0 : index
    %c0_1 = arith.constant 0 : index
    %0 = vector.load %arg1[%c0, %c0_0, %c0_1] : memref<1x32x32xf32, #tpu.memory_space<vmem>>, vector<1x32x32xf32>
    %1 = vector.shape_cast %0 : vector<1x32x32xf32> to vector<32x32xf32>
    %2 = vector.extract_strided_slice %1 {offsets = [0, 0], sizes = [28, 32], strides = [1, 1]} : vector<32x32xf32> to vector<28x32xf32>
    %3 = arith.truncf %2 : vector<28x32xf32> to vector<28x32xbf16>
    %c0_2 = arith.constant 0 : index
    %c0_3 = arith.constant 0 : index
    %c0_4 = arith.constant 0 : index
    %4 = vector.load %arg2[%c0_2, %c0_3, %c0_4] : memref<5x32x168xbf16, #tpu.memory_space<vmem>>, vector<1x32x168xbf16>
    %5 = vector.shape_cast %4 : vector<1x32x168xbf16> to vector<32x168xbf16>
    %cst = arith.constant dense<0.000000e+00> : vector<28x168xf32>
    %6 = tpu.matmul %3, %5, %cst {dimension_numbers = #tpu.dot_dimension_numbers<[1], [0], [0], [1], [0, 0, 1, 1], [], []>} : vector<28x32xbf16>, vector<32x168xbf16>, vector<28x168xf32> -> vector<28x168xf32>
    %7 = vector.extract_strided_slice %1 {offsets = [1, 0], sizes = [28, 32], strides = [1, 1]} : vector<32x32xf32> to vector<28x32xf32>
    %8 = arith.truncf %7 : vector<28x32xf32> to vector<28x32xbf16>
    %c1 = arith.constant 1 : index
    %c0_5 = arith.constant 0 : index
    %c0_6 = arith.constant 0 : index
    %9 = vector.load %arg2[%c1, %c0_5, %c0_6] : memref<5x32x168xbf16, #tpu.memory_space<vmem>>, vector<1x32x168xbf16>
    %10 = vector.shape_cast %9 : vector<1x32x168xbf16> to vector<32x168xbf16>
    %cst_7 = arith.constant dense<0.000000e+00> : vector<28x168xf32>
    %11 = tpu.matmul %8, %10, %cst_7 {dimension_numbers = #tpu.dot_dimension_numbers<[1], [0], [0], [1], [0, 0, 1, 1], [], []>} : vector<28x32xbf16>, vector<32x168xbf16>, vector<28x168xf32> -> vector<28x168xf32>
    %12 = arith.addf %6, %11 : vector<28x168xf32>
    %13 = vector.extract_strided_slice %1 {offsets = [2, 0], sizes = [28, 32], strides = [1, 1]} : vector<32x32xf32> to vector<28x32xf32>
    %14 = arith.truncf %13 : vector<28x32xf32> to vector<28x32xbf16>
    %c2 = arith.constant 2 : index
    %c0_8 = arith.constant 0 : index
    %c0_9 = arith.constant 0 : index
    %15 = vector.load %arg2[%c2, %c0_8, %c0_9] : memref<5x32x168xbf16, #tpu.memory_space<vmem>>, vector<1x32x168xbf16>
    %16 = vector.shape_cast %15 : vector<1x32x168xbf16> to vector<32x168xbf16>
    %cst_10 = arith.constant dense<0.000000e+00> : vector<28x168xf32>
    %17 = tpu.matmul %14, %16, %cst_10 {dimension_numbers = #tpu.dot_dimension_numbers<[1], [0], [0], [1], [0, 0, 1, 1], [], []>} : vector<28x32xbf16>, vector<32x168xbf16>, vector<28x168xf32> -> vector<28x168xf32>
    %18 = arith.addf %12, %17 : vector<28x168xf32>
    %19 = vector.extract_strided_slice %1 {offsets = [3, 0], sizes = [28, 32], strides = [1, 1]} : vector<32x32xf32> to vector<28x32xf32>
    %20 = arith.truncf %19 : vector<28x32xf32> to vector<28x32xbf16>
    %c3 = arith.constant 3 : index
    %c0_11 = arith.constant 0 : index
    %c0_12 = arith.constant 0 : index
    %21 = vector.load %arg2[%c3, %c0_11, %c0_12] : memref<5x32x168xbf16, #tpu.memory_space<vmem>>, vector<1x32x168xbf16>
    %22 = vector.shape_cast %21 : vector<1x32x168xbf16> to vector<32x168xbf16>
    %cst_13 = arith.constant dense<0.000000e+00> : vector<28x168xf32>
    %23 = tpu.matmul %20, %22, %cst_13 {dimension_numbers = #tpu.dot_dimension_numbers<[1], [0], [0], [1], [0, 0, 1, 1], [], []>} : vector<28x32xbf16>, vector<32x168xbf16>, vector<28x168xf32> -> vector<28x168xf32>
    %24 = arith.addf %18, %23 : vector<28x168xf32>
    %25 = vector.extract_strided_slice %1 {offsets = [4, 0], sizes = [28, 32], strides = [1, 1]} : vector<32x32xf32> to vector<28x32xf32>
    %26 = arith.truncf %25 : vector<28x32xf32> to vector<28x32xbf16>
    %c4 = arith.constant 4 : index
    %c0_14 = arith.constant 0 : index
    %c0_15 = arith.constant 0 : index
    %27 = vector.load %arg2[%c4, %c0_14, %c0_15] : memref<5x32x168xbf16, #tpu.memory_space<vmem>>, vector<1x32x168xbf16>
    %28 = vector.shape_cast %27 : vector<1x32x168xbf16> to vector<32x168xbf16>
    %cst_16 = arith.constant dense<0.000000e+00> : vector<28x168xf32>
    %29 = tpu.matmul %26, %28, %cst_16 {dimension_numbers = #tpu.dot_dimension_numbers<[1], [0], [0], [1], [0, 0, 1, 1], [], []>} : vector<28x32xbf16>, vector<32x168xbf16>, vector<28x168xf32> -> vector<28x168xf32>
    %30 = arith.addf %24, %29 : vector<28x168xf32>
    %c0_17 = arith.constant 0 : index
    %c0_18 = arith.constant 0 : index
    %31 = vector.load %arg3[%c0_17, %c0_18] : memref<1x168xf32, #tpu.memory_space<vmem>>, vector<1x168xf32>
    %32 = vector.broadcast %31 : vector<1x168xf32> to vector<28x168xf32>
    %33 = arith.addf %30, %32 : vector<28x168xf32>
    %cst_19 = arith.constant 0.000000e+00 : f32
    %34 = vector.broadcast %cst_19 : f32 to vector<28x168xf32>
    %35 = arith.maximumf %33, %34 : vector<28x168xf32>
    %36 = vector.extract_strided_slice %35 {offsets = [0, 0], sizes = [28, 162], strides = [1, 1]} : vector<28x168xf32> to vector<28x162xf32>
    %37 = vector.extract_strided_slice %35 {offsets = [0, 6], sizes = [28, 162], strides = [1, 1]} : vector<28x168xf32> to vector<28x162xf32>
    %38 = arith.maximumf %36, %37 : vector<28x162xf32>
    %39 = arith.truncf %38 : vector<28x162xf32> to vector<28x162xbf16>
    %c0_20 = arith.constant 0 : index
    %c0_21 = arith.constant 0 : index
    %40 = vector.load %arg4[%c0_20, %c0_21] : memref<14x28xbf16, #tpu.memory_space<vmem>>, vector<14x28xbf16>
    %cst_22 = arith.constant dense<0.000000e+00> : vector<14x162xf32>
    %41 = tpu.matmul %40, %39, %cst_22 {dimension_numbers = #tpu.dot_dimension_numbers<[1], [0], [0], [1], [0, 0, 1, 1], [], []>} : vector<14x28xbf16>, vector<28x162xbf16>, vector<14x162xf32> -> vector<14x162xf32>
    %c0_23 = arith.constant 0 : index
    %c0_24 = arith.constant 0 : index
    %42 = vector.load %arg5[%c0_23, %c0_24] : memref<14x28xbf16, #tpu.memory_space<vmem>>, vector<14x28xbf16>
    %cst_25 = arith.constant dense<0.000000e+00> : vector<14x162xf32>
    %43 = tpu.matmul %42, %39, %cst_25 {dimension_numbers = #tpu.dot_dimension_numbers<[1], [0], [0], [1], [0, 0, 1, 1], [], []>} : vector<14x28xbf16>, vector<28x162xbf16>, vector<14x162xf32> -> vector<14x162xf32>
    %44 = arith.maximumf %41, %43 : vector<14x162xf32>
    %45 = vector.extract_strided_slice %44 {offsets = [0, 0], sizes = [10, 162], strides = [1, 1]} : vector<14x162xf32> to vector<10x162xf32>
    %46 = arith.truncf %45 : vector<10x162xf32> to vector<10x162xbf16>
    %c0_26 = arith.constant 0 : index
    %c0_27 = arith.constant 0 : index
    %c0_28 = arith.constant 0 : index
    %47 = vector.load %arg6[%c0_26, %c0_27, %c0_28] : memref<5x162x160xbf16, #tpu.memory_space<vmem>>, vector<1x162x160xbf16>
    %48 = vector.shape_cast %47 : vector<1x162x160xbf16> to vector<162x160xbf16>
    %cst_29 = arith.constant dense<0.000000e+00> : vector<10x160xf32>
    %49 = tpu.matmul %46, %48, %cst_29 {dimension_numbers = #tpu.dot_dimension_numbers<[1], [0], [0], [1], [0, 0, 1, 1], [], []>} : vector<10x162xbf16>, vector<162x160xbf16>, vector<10x160xf32> -> vector<10x160xf32>
    %50 = vector.extract_strided_slice %44 {offsets = [1, 0], sizes = [10, 162], strides = [1, 1]} : vector<14x162xf32> to vector<10x162xf32>
    %51 = arith.truncf %50 : vector<10x162xf32> to vector<10x162xbf16>
    %c1_30 = arith.constant 1 : index
    %c0_31 = arith.constant 0 : index
    %c0_32 = arith.constant 0 : index
    %52 = vector.load %arg6[%c1_30, %c0_31, %c0_32] : memref<5x162x160xbf16, #tpu.memory_space<vmem>>, vector<1x162x160xbf16>
    %53 = vector.shape_cast %52 : vector<1x162x160xbf16> to vector<162x160xbf16>
    %cst_33 = arith.constant dense<0.000000e+00> : vector<10x160xf32>
    %54 = tpu.matmul %51, %53, %cst_33 {dimension_numbers = #tpu.dot_dimension_numbers<[1], [0], [0], [1], [0, 0, 1, 1], [], []>} : vector<10x162xbf16>, vector<162x160xbf16>, vector<10x160xf32> -> vector<10x160xf32>
    %55 = arith.addf %49, %54 : vector<10x160xf32>
    %56 = vector.extract_strided_slice %44 {offsets = [2, 0], sizes = [10, 162], strides = [1, 1]} : vector<14x162xf32> to vector<10x162xf32>
    %57 = arith.truncf %56 : vector<10x162xf32> to vector<10x162xbf16>
    %c2_34 = arith.constant 2 : index
    %c0_35 = arith.constant 0 : index
    %c0_36 = arith.constant 0 : index
    %58 = vector.load %arg6[%c2_34, %c0_35, %c0_36] : memref<5x162x160xbf16, #tpu.memory_space<vmem>>, vector<1x162x160xbf16>
    %59 = vector.shape_cast %58 : vector<1x162x160xbf16> to vector<162x160xbf16>
    %cst_37 = arith.constant dense<0.000000e+00> : vector<10x160xf32>
    %60 = tpu.matmul %57, %59, %cst_37 {dimension_numbers = #tpu.dot_dimension_numbers<[1], [0], [0], [1], [0, 0, 1, 1], [], []>} : vector<10x162xbf16>, vector<162x160xbf16>, vector<10x160xf32> -> vector<10x160xf32>
    %61 = arith.addf %55, %60 : vector<10x160xf32>
    %62 = vector.extract_strided_slice %44 {offsets = [3, 0], sizes = [10, 162], strides = [1, 1]} : vector<14x162xf32> to vector<10x162xf32>
    %63 = arith.truncf %62 : vector<10x162xf32> to vector<10x162xbf16>
    %c3_38 = arith.constant 3 : index
    %c0_39 = arith.constant 0 : index
    %c0_40 = arith.constant 0 : index
    %64 = vector.load %arg6[%c3_38, %c0_39, %c0_40] : memref<5x162x160xbf16, #tpu.memory_space<vmem>>, vector<1x162x160xbf16>
    %65 = vector.shape_cast %64 : vector<1x162x160xbf16> to vector<162x160xbf16>
    %cst_41 = arith.constant dense<0.000000e+00> : vector<10x160xf32>
    %66 = tpu.matmul %63, %65, %cst_41 {dimension_numbers = #tpu.dot_dimension_numbers<[1], [0], [0], [1], [0, 0, 1, 1], [], []>} : vector<10x162xbf16>, vector<162x160xbf16>, vector<10x160xf32> -> vector<10x160xf32>
    %67 = arith.addf %61, %66 : vector<10x160xf32>
    %68 = vector.extract_strided_slice %44 {offsets = [4, 0], sizes = [10, 162], strides = [1, 1]} : vector<14x162xf32> to vector<10x162xf32>
    %69 = arith.truncf %68 : vector<10x162xf32> to vector<10x162xbf16>
    %c4_42 = arith.constant 4 : index
    %c0_43 = arith.constant 0 : index
    %c0_44 = arith.constant 0 : index
    %70 = vector.load %arg6[%c4_42, %c0_43, %c0_44] : memref<5x162x160xbf16, #tpu.memory_space<vmem>>, vector<1x162x160xbf16>
    %71 = vector.shape_cast %70 : vector<1x162x160xbf16> to vector<162x160xbf16>
    %cst_45 = arith.constant dense<0.000000e+00> : vector<10x160xf32>
    %72 = tpu.matmul %69, %71, %cst_45 {dimension_numbers = #tpu.dot_dimension_numbers<[1], [0], [0], [1], [0, 0, 1, 1], [], []>} : vector<10x162xbf16>, vector<162x160xbf16>, vector<10x160xf32> -> vector<10x160xf32>
    %73 = arith.addf %67, %72 : vector<10x160xf32>
    %c0_46 = arith.constant 0 : index
    %c0_47 = arith.constant 0 : index
    %74 = vector.load %arg7[%c0_46, %c0_47] : memref<1x160xf32, #tpu.memory_space<vmem>>, vector<1x160xf32>
    %75 = vector.broadcast %74 : vector<1x160xf32> to vector<10x160xf32>
    %76 = arith.addf %73, %75 : vector<10x160xf32>
    %cst_48 = arith.constant 0.000000e+00 : f32
    %77 = vector.broadcast %cst_48 : f32 to vector<10x160xf32>
    %78 = arith.maximumf %76, %77 : vector<10x160xf32>
    %79 = vector.extract_strided_slice %78 {offsets = [0, 0], sizes = [10, 144], strides = [1, 1]} : vector<10x160xf32> to vector<10x144xf32>
    %80 = vector.extract_strided_slice %78 {offsets = [0, 16], sizes = [10, 144], strides = [1, 1]} : vector<10x160xf32> to vector<10x144xf32>
    %81 = arith.maximumf %79, %80 : vector<10x144xf32>
    %82 = arith.truncf %81 : vector<10x144xf32> to vector<10x144xbf16>
    %c0_49 = arith.constant 0 : index
    %c0_50 = arith.constant 0 : index
    %83 = vector.load %arg8[%c0_49, %c0_50] : memref<5x10xbf16, #tpu.memory_space<vmem>>, vector<5x10xbf16>
    %cst_51 = arith.constant dense<0.000000e+00> : vector<5x144xf32>
    %84 = tpu.matmul %83, %82, %cst_51 {dimension_numbers = #tpu.dot_dimension_numbers<[1], [0], [0], [1], [0, 0, 1, 1], [], []>} : vector<5x10xbf16>, vector<10x144xbf16>, vector<5x144xf32> -> vector<5x144xf32>
    %c0_52 = arith.constant 0 : index
    %c0_53 = arith.constant 0 : index
    %85 = vector.load %arg9[%c0_52, %c0_53] : memref<5x10xbf16, #tpu.memory_space<vmem>>, vector<5x10xbf16>
    %cst_54 = arith.constant dense<0.000000e+00> : vector<5x144xf32>
    %86 = tpu.matmul %85, %82, %cst_54 {dimension_numbers = #tpu.dot_dimension_numbers<[1], [0], [0], [1], [0, 0, 1, 1], [], []>} : vector<5x10xbf16>, vector<10x144xbf16>, vector<5x144xf32> -> vector<5x144xf32>
    %87 = arith.maximumf %84, %86 : vector<5x144xf32>
    %88 = vector.extract_strided_slice %87 {offsets = [0, 0], sizes = [1, 144], strides = [1, 1]} : vector<5x144xf32> to vector<1x144xf32>
    %89 = arith.truncf %88 : vector<1x144xf32> to vector<1x144xbf16>
    %c0_55 = arith.constant 0 : index
    %c0_56 = arith.constant 0 : index
    %c0_57 = arith.constant 0 : index
    %90 = vector.load %arg10[%c0_55, %c0_56, %c0_57] : memref<5x144x120xbf16, #tpu.memory_space<vmem>>, vector<1x144x120xbf16>
    %91 = vector.shape_cast %90 : vector<1x144x120xbf16> to vector<144x120xbf16>
    %cst_58 = arith.constant dense<0.000000e+00> : vector<1x120xf32>
    %92 = tpu.matmul %89, %91, %cst_58 {dimension_numbers = #tpu.dot_dimension_numbers<[1], [0], [0], [1], [0, 0, 1, 1], [], []>} : vector<1x144xbf16>, vector<144x120xbf16>, vector<1x120xf32> -> vector<1x120xf32>
    %93 = vector.extract_strided_slice %87 {offsets = [1, 0], sizes = [1, 144], strides = [1, 1]} : vector<5x144xf32> to vector<1x144xf32>
    %94 = arith.truncf %93 : vector<1x144xf32> to vector<1x144xbf16>
    %c1_59 = arith.constant 1 : index
    %c0_60 = arith.constant 0 : index
    %c0_61 = arith.constant 0 : index
    %95 = vector.load %arg10[%c1_59, %c0_60, %c0_61] : memref<5x144x120xbf16, #tpu.memory_space<vmem>>, vector<1x144x120xbf16>
    %96 = vector.shape_cast %95 : vector<1x144x120xbf16> to vector<144x120xbf16>
    %cst_62 = arith.constant dense<0.000000e+00> : vector<1x120xf32>
    %97 = tpu.matmul %94, %96, %cst_62 {dimension_numbers = #tpu.dot_dimension_numbers<[1], [0], [0], [1], [0, 0, 1, 1], [], []>} : vector<1x144xbf16>, vector<144x120xbf16>, vector<1x120xf32> -> vector<1x120xf32>
    %98 = arith.addf %92, %97 : vector<1x120xf32>
    %99 = vector.extract_strided_slice %87 {offsets = [2, 0], sizes = [1, 144], strides = [1, 1]} : vector<5x144xf32> to vector<1x144xf32>
    %100 = arith.truncf %99 : vector<1x144xf32> to vector<1x144xbf16>
    %c2_63 = arith.constant 2 : index
    %c0_64 = arith.constant 0 : index
    %c0_65 = arith.constant 0 : index
    %101 = vector.load %arg10[%c2_63, %c0_64, %c0_65] : memref<5x144x120xbf16, #tpu.memory_space<vmem>>, vector<1x144x120xbf16>
    %102 = vector.shape_cast %101 : vector<1x144x120xbf16> to vector<144x120xbf16>
    %cst_66 = arith.constant dense<0.000000e+00> : vector<1x120xf32>
    %103 = tpu.matmul %100, %102, %cst_66 {dimension_numbers = #tpu.dot_dimension_numbers<[1], [0], [0], [1], [0, 0, 1, 1], [], []>} : vector<1x144xbf16>, vector<144x120xbf16>, vector<1x120xf32> -> vector<1x120xf32>
    %104 = arith.addf %98, %103 : vector<1x120xf32>
    %105 = vector.extract_strided_slice %87 {offsets = [3, 0], sizes = [1, 144], strides = [1, 1]} : vector<5x144xf32> to vector<1x144xf32>
    %106 = arith.truncf %105 : vector<1x144xf32> to vector<1x144xbf16>
    %c3_67 = arith.constant 3 : index
    %c0_68 = arith.constant 0 : index
    %c0_69 = arith.constant 0 : index
    %107 = vector.load %arg10[%c3_67, %c0_68, %c0_69] : memref<5x144x120xbf16, #tpu.memory_space<vmem>>, vector<1x144x120xbf16>
    %108 = vector.shape_cast %107 : vector<1x144x120xbf16> to vector<144x120xbf16>
    %cst_70 = arith.constant dense<0.000000e+00> : vector<1x120xf32>
    %109 = tpu.matmul %106, %108, %cst_70 {dimension_numbers = #tpu.dot_dimension_numbers<[1], [0], [0], [1], [0, 0, 1, 1], [], []>} : vector<1x144xbf16>, vector<144x120xbf16>, vector<1x120xf32> -> vector<1x120xf32>
    %110 = arith.addf %104, %109 : vector<1x120xf32>
    %111 = vector.extract_strided_slice %87 {offsets = [4, 0], sizes = [1, 144], strides = [1, 1]} : vector<5x144xf32> to vector<1x144xf32>
    %112 = arith.truncf %111 : vector<1x144xf32> to vector<1x144xbf16>
    %c4_71 = arith.constant 4 : index
    %c0_72 = arith.constant 0 : index
    %c0_73 = arith.constant 0 : index
    %113 = vector.load %arg10[%c4_71, %c0_72, %c0_73] : memref<5x144x120xbf16, #tpu.memory_space<vmem>>, vector<1x144x120xbf16>
    %114 = vector.shape_cast %113 : vector<1x144x120xbf16> to vector<144x120xbf16>
    %cst_74 = arith.constant dense<0.000000e+00> : vector<1x120xf32>
    %115 = tpu.matmul %112, %114, %cst_74 {dimension_numbers = #tpu.dot_dimension_numbers<[1], [0], [0], [1], [0, 0, 1, 1], [], []>} : vector<1x144xbf16>, vector<144x120xbf16>, vector<1x120xf32> -> vector<1x120xf32>
    %116 = arith.addf %110, %115 : vector<1x120xf32>
    %c0_75 = arith.constant 0 : index
    %c0_76 = arith.constant 0 : index
    %117 = vector.load %arg11[%c0_75, %c0_76] : memref<1x120xf32, #tpu.memory_space<vmem>>, vector<1x120xf32>
    %118 = arith.addf %116, %117 : vector<1x120xf32>
    %cst_77 = arith.constant 0.000000e+00 : f32
    %119 = vector.broadcast %cst_77 : f32 to vector<1x120xf32>
    %120 = arith.maximumf %118, %119 : vector<1x120xf32>
    %121 = arith.truncf %120 : vector<1x120xf32> to vector<1x120xbf16>
    %c0_78 = arith.constant 0 : index
    %c0_79 = arith.constant 0 : index
    %122 = vector.load %arg12[%c0_78, %c0_79] : memref<120x64xbf16, #tpu.memory_space<vmem>>, vector<120x64xbf16>
    %cst_80 = arith.constant dense<0.000000e+00> : vector<1x64xf32>
    %123 = tpu.matmul %121, %122, %cst_80 {dimension_numbers = #tpu.dot_dimension_numbers<[1], [0], [0], [1], [0, 0, 1, 1], [], []>} : vector<1x120xbf16>, vector<120x64xbf16>, vector<1x64xf32> -> vector<1x64xf32>
    %c0_81 = arith.constant 0 : index
    %c0_82 = arith.constant 0 : index
    %124 = vector.load %arg13[%c0_81, %c0_82] : memref<1x64xf32, #tpu.memory_space<vmem>>, vector<1x64xf32>
    %125 = arith.addf %123, %124 : vector<1x64xf32>
    %cst_83 = arith.constant 0.000000e+00 : f32
    %126 = vector.broadcast %cst_83 : f32 to vector<1x64xf32>
    %127 = arith.maximumf %125, %126 : vector<1x64xf32>
    %128 = arith.truncf %127 : vector<1x64xf32> to vector<1x64xbf16>
    %c0_84 = arith.constant 0 : index
    %c0_85 = arith.constant 0 : index
    %129 = vector.load %arg14[%c0_84, %c0_85] : memref<64x1xbf16, #tpu.memory_space<vmem>>, vector<64x1xbf16>
    %cst_86 = arith.constant dense<0.000000e+00> : vector<1x1xf32>
    %130 = tpu.matmul %128, %129, %cst_86 {dimension_numbers = #tpu.dot_dimension_numbers<[1], [0], [0], [1], [0, 0, 1, 1], [], []>} : vector<1x64xbf16>, vector<64x1xbf16>, vector<1x1xf32> -> vector<1x1xf32>
    %c0_87 = arith.constant 0 : index
    %c0_88 = arith.constant 0 : index
    %131 = vector.load %arg15[%c0_87, %c0_88] : memref<1x1xf32, #tpu.memory_space<vmem>>, vector<1x1xf32>
    %132 = arith.addf %130, %131 : vector<1x1xf32>
    %cst_89 = arith.constant 0.000000e+00 : f32
    %133 = vector.broadcast %cst_89 : f32 to vector<1x1xf32>
    %134 = arith.subf %133, %132 : vector<1x1xf32>
    %135 = math.exp %134 : vector<1x1xf32>
    %cst_90 = arith.constant 1.000000e+00 : f32
    %136 = vector.broadcast %cst_90 : f32 to vector<1x1xf32>
    %137 = arith.addf %136, %135 : vector<1x1xf32>
    %cst_91 = arith.constant 1.000000e+00 : f32
    %138 = vector.broadcast %cst_91 : f32 to vector<1x1xf32>
    %139 = arith.divf %138, %137 : vector<1x1xf32>
    %140 = vector.shape_cast %139 : vector<1x1xf32> to vector<1x1x1xf32>
    %c0_92 = arith.constant 0 : index
    %c0_93 = arith.constant 0 : index
    %c0_94 = arith.constant 0 : index
    %141 = vector.load %arg16[%c0_92, %c0_93, %c0_94] : memref<1x1x1xf32, #tpu.memory_space<vmem>>, vector<1x1x1xf32>
    tpu.vector_store %arg16[%c0_92, %c0_93, %c0_94], %140 {strides = array<i32>} : memref<1x1x1xf32, #tpu.memory_space<vmem>>, vector<1x1x1xf32>,
    return
  }
  func.func @transform_0(%arg0: i32) -> (i32, i32, i32) {
    %c0_i32 = arith.constant 0 : i32
    %c0_i32_0 = arith.constant 0 : i32
    %c0_i32_1 = arith.constant 0 : i32
    return %arg0, %c0_i32, %c0_i32_0 : i32, i32, i32
  }
  func.func @transform_1(%arg0: i32) -> (i32, i32, i32) {
    %c0_i32 = arith.constant 0 : i32
    %c0_i32_0 = arith.constant 0 : i32
    %c0_i32_1 = arith.constant 0 : i32
    %c0_i32_2 = arith.constant 0 : i32
    return %c0_i32, %c0_i32_0, %c0_i32_1 : i32, i32, i32
  }
  func.func @transform_2(%arg0: i32) -> (i32, i32) {
    %c0_i32 = arith.constant 0 : i32
    %c0_i32_0 = arith.constant 0 : i32
    %c0_i32_1 = arith.constant 0 : i32
    return %c0_i32, %c0_i32_0 : i32, i32
  }
  func.func @transform_3(%arg0: i32) -> (i32, i32) {
    %c0_i32 = arith.constant 0 : i32
    %c0_i32_0 = arith.constant 0 : i32
    %c0_i32_1 = arith.constant 0 : i32
    return %c0_i32, %c0_i32_0 : i32, i32
  }
  func.func @transform_4(%arg0: i32) -> (i32, i32) {
    %c0_i32 = arith.constant 0 : i32
    %c0_i32_0 = arith.constant 0 : i32
    %c0_i32_1 = arith.constant 0 : i32
    return %c0_i32, %c0_i32_0 : i32, i32
  }
  func.func @transform_5(%arg0: i32) -> (i32, i32, i32) {
    %c0_i32 = arith.constant 0 : i32
    %c0_i32_0 = arith.constant 0 : i32
    %c0_i32_1 = arith.constant 0 : i32
    %c0_i32_2 = arith.constant 0 : i32
    return %c0_i32, %c0_i32_0, %c0_i32_1 : i32, i32, i32
  }
  func.func @transform_6(%arg0: i32) -> (i32, i32) {
    %c0_i32 = arith.constant 0 : i32
    %c0_i32_0 = arith.constant 0 : i32
    %c0_i32_1 = arith.constant 0 : i32
    return %c0_i32, %c0_i32_0 : i32, i32
  }
  func.func @transform_7(%arg0: i32) -> (i32, i32) {
    %c0_i32 = arith.constant 0 : i32
    %c0_i32_0 = arith.constant 0 : i32
    %c0_i32_1 = arith.constant 0 : i32
    return %c0_i32, %c0_i32_0 : i32, i32
  }
  func.func @transform_8(%arg0: i32) -> (i32, i32) {
    %c0_i32 = arith.constant 0 : i32
    %c0_i32_0 = arith.constant 0 : i32
    %c0_i32_1 = arith.constant 0 : i32
    return %c0_i32, %c0_i32_0 : i32, i32
  }
  func.func @transform_9(%arg0: i32) -> (i32, i32, i32) {
    %c0_i32 = arith.constant 0 : i32
    %c0_i32_0 = arith.constant 0 : i32
    %c0_i32_1 = arith.constant 0 : i32
    %c0_i32_2 = arith.constant 0 : i32
    return %c0_i32, %c0_i32_0, %c0_i32_1 : i32, i32, i32
  }
  func.func @transform_10(%arg0: i32) -> (i32, i32) {
    %c0_i32 = arith.constant 0 : i32
    %c0_i32_0 = arith.constant 0 : i32
    %c0_i32_1 = arith.constant 0 : i32
    return %c0_i32, %c0_i32_0 : i32, i32
  }
  func.func @transform_11(%arg0: i32) -> (i32, i32) {
    %c0_i32 = arith.constant 0 : i32
    %c0_i32_0 = arith.constant 0 : i32
    %c0_i32_1 = arith.constant 0 : i32
    return %c0_i32, %c0_i32_0 : i32, i32
  }
  func.func @transform_12(%arg0: i32) -> (i32, i32) {
    %c0_i32 = arith.constant 0 : i32
    %c0_i32_0 = arith.constant 0 : i32
    %c0_i32_1 = arith.constant 0 : i32
    return %c0_i32, %c0_i32_0 : i32, i32
  }
  func.func @transform_13(%arg0: i32) -> (i32, i32) {
    %c0_i32 = arith.constant 0 : i32
    %c0_i32_0 = arith.constant 0 : i32
    %c0_i32_1 = arith.constant 0 : i32
    return %c0_i32, %c0_i32_0 : i32, i32
  }
  func.func @transform_14(%arg0: i32) -> (i32, i32) {
    %c0_i32 = arith.constant 0 : i32
    %c0_i32_0 = arith.constant 0 : i32
    %c0_i32_1 = arith.constant 0 : i32
    return %c0_i32, %c0_i32_0 : i32, i32
  }
  func.func @transform_15(%arg0: i32) -> (i32, i32, i32) {
    %c0_i32 = arith.constant 0 : i32
    %c0_i32_0 = arith.constant 0 : i32
    %c0_i32_1 = arith.constant 0 : i32
    return %arg0, %c0_i32, %c0_i32_0 : i32, i32, i32
  }
}

</mosaic_0001>

<llo_original>
// kernel: lenet_regression_forward.1
$region0: #{lenet_regression_forward.1}
  #allocation0 [shape = 'u32[]', space=smem, size = 0x4, offset = 0x4, fixed_abs, tag = 'smem constant byte address 0x4 - core index']
  #allocation1 [shape = 'u32[144,128]{1,0:T(1,128)}', space=vmem, size = 0x12000, scoped, tag = 'internal scratch']
  #allocation2 [shape = 'f32[1,1]{1,0:T(1,128)S(1)}', space=vmem, size = 0x200, scoped, tag = 'scoped memory for lenet_regression_forward.1']
  %s0 = inlined_call_operand.vmem [shape: f32[2,32,32], index: 0, kind: input, shape index: {}]
  %s1 = inlined_call_operand.vmem [shape: bf16[5,32,168], index: 1, kind: input, shape index: {}]
  %s2 = inlined_call_operand.vmem [shape: f32[1,168], index: 2, kind: input, shape index: {}]
  %s3 = inlined_call_operand.vmem [shape: bf16[14,28], index: 3, kind: input, shape index: {}]
  %s4 = inlined_call_operand.vmem [shape: bf16[14,28], index: 4, kind: input, shape index: {}]
  %s5 = inlined_call_operand.vmem [shape: bf16[5,162,160], index: 5, kind: input, shape index: {}]
  %s6 = inlined_call_operand.vmem [shape: f32[1,160], index: 6, kind: input, shape index: {}]
  %s7 = inlined_call_operand.vmem [shape: bf16[5,10], index: 7, kind: input, shape index: {}]
  %s8 = inlined_call_operand.vmem [shape: bf16[5,10], index: 8, kind: input, shape index: {}]
  %s9 = inlined_call_operand.vmem [shape: bf16[5,144,120], index: 9, kind: input, shape index: {}]
  %s10 = inlined_call_operand.vmem [shape: f32[1,120], index: 10, kind: input, shape index: {}]
  %s11 = inlined_call_operand.vmem [shape: bf16[120,64], index: 11, kind: input, shape index: {}]
  %s12 = inlined_call_operand.vmem [shape: f32[1,64], index: 12, kind: input, shape index: {}]
  %s13 = inlined_call_operand.vmem [shape: bf16[64,1], index: 13, kind: input, shape index: {}]
  %s14 = inlined_call_operand.<no memory space> [shape: f32[1,1], index: 14, kind: input, shape index: {}]
  %s15 = inlined_call_operand.vmem [shape: f32[2,1,1], index: 15, kind: output, shape index: {}]
  %s16 = sld [smem:[#allocation0]]
  $region93: #{lenet_regression_forward.1} parent=0
    _
  %s18 = ssub.s32 1, %s16
  %s19 = scalar_select 0, %s18, %s16
  %v20 = vstv %s14
  %21 = vst [vmem:[#allocation2] sm:$0x1] %v20
  loop: start=0, step=1, limit=4
  $region2: #{lenet_regression_forward.1} parent=0 // loop_pre_header
    _
  $region3: #{lenet_regression_forward.1} parent=0 // loop_header
    %s23 = sphi 0, %s27
    %p24 = scmp.ge.s32.totalorder %s23, 4
    %s33 = sphi 0, %s35
    %s36 = sphi 0, %s33
    %s37 = sphi 0, %s36
    %s53 = sphi 0, %s37
    %s57 = sphi 0, %s57
    %s59 = sphi 0, %s57
    %s60 = sphi 0, %s59
    %s74 = sphi 0, %s60
    %s78 = sphi 0, %s78
    %s80 = sphi 0, %s78
    %s81 = sphi 0, %s80
    %s95 = sphi 0, %s81
    %s99 = sphi 0, %s99
    %s101 = sphi 0, %s99
    %s102 = sphi 0, %s101
    %s116 = sphi 0, %s102
    %s120 = sphi 0, %s120
    %s122 = sphi 0, %s120
    %s123 = sphi 0, %s122
    %s137 = sphi 0, %s123
    %s141 = sphi 0, %s141
    %s143 = sphi 0, %s141
    %s144 = sphi 0, %s143
    %s158 = sphi 0, %s144
    %s162 = sphi 0, %s162
    %s164 = sphi 0, %s162
    %s165 = sphi 0, %s164
    %s179 = sphi 0, %s165
    %s183 = sphi 0, %s183
    %s185 = sphi 0, %s183
    %s186 = sphi 0, %s185
    %s200 = sphi 0, %s186
    %s204 = sphi 0, %s204
    %s206 = sphi 0, %s204
    %s207 = sphi 0, %s206
    %s221 = sphi 0, %s207
    %s225 = sphi 0, %s225
    %s227 = sphi 0, %s225
    %s228 = sphi 0, %s227
    %s242 = sphi 0, %s228
    %s246 = sphi 0, %s246
    %s248 = sphi 0, %s246
    %s249 = sphi 0, %s248
    %s263 = sphi 0, %s249
    %s267 = sphi 0, %s267
    %s269 = sphi 0, %s267
    %s270 = sphi 0, %s269
    %s284 = sphi 0, %s270
    %s288 = sphi 0, %s288
    %s290 = sphi 0, %s288
    %s291 = sphi 0, %s290
    %s305 = sphi 0, %s291
    %s309 = sphi 0, %s309
    %s311 = sphi 0, %s309
    %s312 = sphi 0, %s311
    %s326 = sphi 0, %s312
    %s330 = sphi 0, %s330
    %s332 = sphi 0, %s330
    %s333 = sphi 0, %s332
    %s347 = sphi 0, %s333
    %s353 = sphi 0, %s355
    %s356 = sphi 0, %s353
    %s357 = sphi 0, %s356
    %s373 = sphi 0, %s357
  $region4: #{lenet_regression_forward.1} parent=0 // loop_header_branch
    %26 = sbr.rel (%p24) target = $region8
  $region5: #{lenet_regression_forward.1} parent=0 // loop_body
    %s28 = ssub.s32 %s23, 1
    %s29 = ssub.s32 %s23, 2
    %s30 = sadd.s32 %s23, 1
    %s31 = ssub.s32 %s23, %s30
    %p32 = scmp.eq.s32.totalorder %s31, 0
    %s34 = sadd.s32 %s33, 1
    %s35 = scalar_select %p32, %s33, %s34
    %p38 = pneg %p32
    %p39 = scmp.eq.s32.totalorder %s23, 1
    %p40 = por %p38, %p39
    %p41 = scmp.ne.s32.totalorder %s33, %s36
    %p42 = scmp.eq.s32.totalorder %s23, 0
    %p43 = por %p41, %p42
    %p44 = scmp.ne.s32.totalorder %s33, %s36
    %p45 = scmp.eq.s32.totalorder %s28, 1
    %p46 = por %p44, %p45
    %p47 = scmp.ne.s32.totalorder %s36, %s37
    %p48 = scmp.eq.s32.totalorder %s28, 0
    %p49 = por %p47, %p48
    %p50 = scmp.ne.s32.totalorder %s36, %s37
    %p51 = scmp.eq.s32.totalorder %s29, 1
    %p52 = por %p50, %p51
    %p54 = scmp.ne.s32.totalorder %s37, %s53
    %p55 = scmp.eq.s32.totalorder %s29, 0
    %p56 = por %p54, %p55
    %s58 = sadd.s32 %s57, 1
    %p61 = scmp.eq.s32.totalorder %s23, 1
    %p62 = scmp.ne.s32.totalorder %s57, %s59
    %p63 = scmp.eq.s32.totalorder %s23, 0
    %p64 = por %p62, %p63
    %p65 = scmp.ne.s32.totalorder %s57, %s59
    %p66 = scmp.eq.s32.totalorder %s28, 1
    %p67 = por %p65, %p66
    %p68 = scmp.ne.s32.totalorder %s59, %s60
    %p69 = scmp.eq.s32.totalorder %s28, 0
    %p70 = por %p68, %p69
    %p71 = scmp.ne.s32.totalorder %s59, %s60
    %p72 = scmp.eq.s32.totalorder %s29, 1
    %p73 = por %p71, %p72
    %p75 = scmp.ne.s32.totalorder %s60, %s74
    %p76 = scmp.eq.s32.totalorder %s29, 0
    %p77 = por %p75, %p76
    %s79 = sadd.s32 %s78, 1
    %p82 = scmp.eq.s32.totalorder %s23, 1
    %p83 = scmp.ne.s32.totalorder %s78, %s80
    %p84 = scmp.eq.s32.totalorder %s23, 0
    %p85 = por %p83, %p84
    %p86 = scmp.ne.s32.totalorder %s78, %s80
    %p87 = scmp.eq.s32.totalorder %s28, 1
    %p88 = por %p86, %p87
    %p89 = scmp.ne.s32.totalorder %s80, %s81
    %p90 = scmp.eq.s32.totalorder %s28, 0
    %p91 = por %p89, %p90
    %p92 = scmp.ne.s32.totalorder %s80, %s81
    %p93 = scmp.eq.s32.totalorder %s29, 1
    %p94 = por %p92, %p93
    %p96 = scmp.ne.s32.totalorder %s81, %s95
    %p97 = scmp.eq.s32.totalorder %s29, 0
    %p98 = por %p96, %p97
    %s100 = sadd.s32 %s99, 1
    %p103 = scmp.eq.s32.totalorder %s23, 1
    %p104 = scmp.ne.s32.totalorder %s99, %s101
    %p105 = scmp.eq.s32.totalorder %s23, 0
    %p106 = por %p104, %p105
    %p107 = scmp.ne.s32.totalorder %s99, %s101
    %p108 = scmp.eq.s32.totalorder %s28, 1
    %p109 = por %p107, %p108
    %p110 = scmp.ne.s32.totalorder %s101, %s102
    %p111 = scmp.eq.s32.totalorder %s28, 0
    %p112 = por %p110, %p111
    %p113 = scmp.ne.s32.totalorder %s101, %s102
    %p114 = scmp.eq.s32.totalorder %s29, 1
    %p115 = por %p113, %p114
    %p117 = scmp.ne.s32.totalorder %s102, %s116
    %p118 = scmp.eq.s32.totalorder %s29, 0
    %p119 = por %p117, %p118
    %s121 = sadd.s32 %s120, 1
    %p124 = scmp.eq.s32.totalorder %s23, 1
    %p125 = scmp.ne.s32.totalorder %s120, %s122
    %p126 = scmp.eq.s32.totalorder %s23, 0
    %p127 = por %p125, %p126
    %p128 = scmp.ne.s32.totalorder %s120, %s122
    %p129 = scmp.eq.s32.totalorder %s28, 1
    %p130 = por %p128, %p129
    %p131 = scmp.ne.s32.totalorder %s122, %s123
    %p132 = scmp.eq.s32.totalorder %s28, 0
    %p133 = por %p131, %p132
    %p134 = scmp.ne.s32.totalorder %s122, %s123
    %p135 = scmp.eq.s32.totalorder %s29, 1
    %p136 = por %p134, %p135
    %p138 = scmp.ne.s32.totalorder %s123, %s137
    %p139 = scmp.eq.s32.totalorder %s29, 0
    %p140 = por %p138, %p139
    %s142 = sadd.s32 %s141, 1
    %p145 = scmp.eq.s32.totalorder %s23, 1
    %p146 = scmp.ne.s32.totalorder %s141, %s143
    %p147 = scmp.eq.s32.totalorder %s23, 0
    %p148 = por %p146, %p147
    %p149 = scmp.ne.s32.totalorder %s141, %s143
    %p150 = scmp.eq.s32.totalorder %s28, 1
    %p151 = por %p149, %p150
    %p152 = scmp.ne.s32.totalorder %s143, %s144
    %p153 = scmp.eq.s32.totalorder %s28, 0
    %p154 = por %p152, %p153
    %p155 = scmp.ne.s32.totalorder %s143, %s144
    %p156 = scmp.eq.s32.totalorder %s29, 1
    %p157 = por %p155, %p156
    %p159 = scmp.ne.s32.totalorder %s144, %s158
    %p160 = scmp.eq.s32.totalorder %s29, 0
    %p161 = por %p159, %p160
    %s163 = sadd.s32 %s162, 1
    %p166 = scmp.eq.s32.totalorder %s23, 1
    %p167 = scmp.ne.s32.totalorder %s162, %s164
    %p168 = scmp.eq.s32.totalorder %s23, 0
    %p169 = por %p167, %p168
    %p170 = scmp.ne.s32.totalorder %s162, %s164
    %p171 = scmp.eq.s32.totalorder %s28, 1
    %p172 = por %p170, %p171
    %p173 = scmp.ne.s32.totalorder %s164, %s165
    %p174 = scmp.eq.s32.totalorder %s28, 0
    %p175 = por %p173, %p174
    %p176 = scmp.ne.s32.totalorder %s164, %s165
    %p177 = scmp.eq.s32.totalorder %s29, 1
    %p178 = por %p176, %p177
    %p180 = scmp.ne.s32.totalorder %s165, %s179
    %p181 = scmp.eq.s32.totalorder %s29, 0
    %p182 = por %p180, %p181
    %s184 = sadd.s32 %s183, 1
    %p187 = scmp.eq.s32.totalorder %s23, 1
    %p188 = scmp.ne.s32.totalorder %s183, %s185
    %p189 = scmp.eq.s32.totalorder %s23, 0
    %p190 = por %p188, %p189
    %p191 = scmp.ne.s32.totalorder %s183, %s185
    %p192 = scmp.eq.s32.totalorder %s28, 1
    %p193 = por %p191, %p192
    %p194 = scmp.ne.s32.totalorder %s185, %s186
    %p195 = scmp.eq.s32.totalorder %s28, 0
    %p196 = por %p194, %p195
    %p197 = scmp.ne.s32.totalorder %s185, %s186
    %p198 = scmp.eq.s32.totalorder %s29, 1
    %p199 = por %p197, %p198
    %p201 = scmp.ne.s32.totalorder %s186, %s200
    %p202 = scmp.eq.s32.totalorder %s29, 0
    %p203 = por %p201, %p202
    %s205 = sadd.s32 %s204, 1
    %p208 = scmp.eq.s32.totalorder %s23, 1
    %p209 = scmp.ne.s32.totalorder %s204, %s206
    %p210 = scmp.eq.s32.totalorder %s23, 0
    %p211 = por %p209, %p210
    %p212 = scmp.ne.s32.totalorder %s204, %s206
    %p213 = scmp.eq.s32.totalorder %s28, 1
    %p214 = por %p212, %p213
    %p215 = scmp.ne.s32.totalorder %s206, %s207
    %p216 = scmp.eq.s32.totalorder %s28, 0
    %p217 = por %p215, %p216
    %p218 = scmp.ne.s32.totalorder %s206, %s207
    %p219 = scmp.eq.s32.totalorder %s29, 1
    %p220 = por %p218, %p219
    %p222 = scmp.ne.s32.totalorder %s207, %s221
    %p223 = scmp.eq.s32.totalorder %s29, 0
    %p224 = por %p222, %p223
    %s226 = sadd.s32 %s225, 1
    %p229 = scmp.eq.s32.totalorder %s23, 1
    %p230 = scmp.ne.s32.totalorder %s225, %s227
    %p231 = scmp.eq.s32.totalorder %s23, 0
    %p232 = por %p230, %p231
    %p233 = scmp.ne.s32.totalorder %s225, %s227
    %p234 = scmp.eq.s32.totalorder %s28, 1
    %p235 = por %p233, %p234
    %p236 = scmp.ne.s32.totalorder %s227, %s228
    %p237 = scmp.eq.s32.totalorder %s28, 0
    %p238 = por %p236, %p237
    %p239 = scmp.ne.s32.totalorder %s227, %s228
    %p240 = scmp.eq.s32.totalorder %s29, 1
    %p241 = por %p239, %p240
    %p243 = scmp.ne.s32.totalorder %s228, %s242
    %p244 = scmp.eq.s32.totalorder %s29, 0
    %p245 = por %p243, %p244
    %s247 = sadd.s32 %s246, 1
    %p250 = scmp.eq.s32.totalorder %s23, 1
    %p251 = scmp.ne.s32.totalorder %s246, %s248
    %p252 = scmp.eq.s32.totalorder %s23, 0
    %p253 = por %p251, %p252
    %p254 = scmp.ne.s32.totalorder %s246, %s248
    %p255 = scmp.eq.s32.totalorder %s28, 1
    %p256 = por %p254, %p255
    %p257 = scmp.ne.s32.totalorder %s248, %s249
    %p258 = scmp.eq.s32.totalorder %s28, 0
    %p259 = por %p257, %p258
    %p260 = scmp.ne.s32.totalorder %s248, %s249
    %p261 = scmp.eq.s32.totalorder %s29, 1
    %p262 = por %p260, %p261
    %p264 = scmp.ne.s32.totalorder %s249, %s263
    %p265 = scmp.eq.s32.totalorder %s29, 0
    %p266 = por %p264, %p265
    %s268 = sadd.s32 %s267, 1
    %p271 = scmp.eq.s32.totalorder %s23, 1
    %p272 = scmp.ne.s32.totalorder %s267, %s269
    %p273 = scmp.eq.s32.totalorder %s23, 0
    %p274 = por %p272, %p273
    %p275 = scmp.ne.s32.totalorder %s267, %s269
    %p276 = scmp.eq.s32.totalorder %s28, 1
    %p277 = por %p275, %p276
    %p278 = scmp.ne.s32.totalorder %s269, %s270
    %p279 = scmp.eq.s32.totalorder %s28, 0
    %p280 = por %p278, %p279
    %p281 = scmp.ne.s32.totalorder %s269, %s270
    %p282 = scmp.eq.s32.totalorder %s29, 1
    %p283 = por %p281, %p282
    %p285 = scmp.ne.s32.totalorder %s270, %s284
    %p286 = scmp.eq.s32.totalorder %s29, 0
    %p287 = por %p285, %p286
    %s289 = sadd.s32 %s288, 1
    %p292 = scmp.eq.s32.totalorder %s23, 1
    %p293 = scmp.ne.s32.totalorder %s288, %s290
    %p294 = scmp.eq.s32.totalorder %s23, 0
    %p295 = por %p293, %p294
    %p296 = scmp.ne.s32.totalorder %s288, %s290
    %p297 = scmp.eq.s32.totalorder %s28, 1
    %p298 = por %p296, %p297
    %p299 = scmp.ne.s32.totalorder %s290, %s291
    %p300 = scmp.eq.s32.totalorder %s28, 0
    %p301 = por %p299, %p300
    %p302 = scmp.ne.s32.totalorder %s290, %s291
    %p303 = scmp.eq.s32.totalorder %s29, 1
    %p304 = por %p302, %p303
    %p306 = scmp.ne.s32.totalorder %s291, %s305
    %p307 = scmp.eq.s32.totalorder %s29, 0
    %p308 = por %p306, %p307
    %s310 = sadd.s32 %s309, 1
    %p313 = scmp.eq.s32.totalorder %s23, 1
    %p314 = scmp.ne.s32.totalorder %s309, %s311
    %p315 = scmp.eq.s32.totalorder %s23, 0
    %p316 = por %p314, %p315
    %p317 = scmp.ne.s32.totalorder %s309, %s311
    %p318 = scmp.eq.s32.totalorder %s28, 1
    %p319 = por %p317, %p318
    %p320 = scmp.ne.s32.totalorder %s311, %s312
    %p321 = scmp.eq.s32.totalorder %s28, 0
    %p322 = por %p320, %p321
    %p323 = scmp.ne.s32.totalorder %s311, %s312
    %p324 = scmp.eq.s32.totalorder %s29, 1
    %p325 = por %p323, %p324
    %p327 = scmp.ne.s32.totalorder %s312, %s326
    %p328 = scmp.eq.s32.totalorder %s29, 0
    %p329 = por %p327, %p328
    %s331 = sadd.s32 %s330, 1
    %p334 = scmp.eq.s32.totalorder %s23, 1
    %p335 = scmp.ne.s32.totalorder %s330, %s332
    %p336 = scmp.eq.s32.totalorder %s23, 0
    %p337 = por %p335, %p336
    %p338 = scmp.ne.s32.totalorder %s330, %s332
    %p339 = scmp.eq.s32.totalorder %s28, 1
    %p340 = por %p338, %p339
    %p341 = scmp.ne.s32.totalorder %s332, %s333
    %p342 = scmp.eq.s32.totalorder %s28, 0
    %p343 = por %p341, %p342
    %p344 = scmp.ne.s32.totalorder %s332, %s333
    %p345 = scmp.eq.s32.totalorder %s29, 1
    %p346 = por %p344, %p345
    %p348 = scmp.ne.s32.totalorder %s333, %s347
    %p349 = scmp.eq.s32.totalorder %s29, 0
    %p350 = por %p348, %p349
    %s351 = ssub.s32 %s23, %s30
    %p352 = scmp.eq.s32.totalorder %s351, 0
    %s354 = sadd.s32 %s353, 1
    %s355 = scalar_select %p352, %s353, %s354
    %p358 = pneg %p352
    %p359 = scmp.eq.s32.totalorder %s23, 1
    %p360 = por %p358, %p359
    %p361 = scmp.ne.s32.totalorder %s353, %s356
    %p362 = scmp.eq.s32.totalorder %s23, 0
    %p363 = por %p361, %p362
    %p364 = scmp.ne.s32.totalorder %s353, %s356
    %p365 = scmp.eq.s32.totalorder %s28, 1
    %p366 = por %p364, %p365
    %p367 = scmp.ne.s32.totalorder %s356, %s357
    %p368 = scmp.eq.s32.totalorder %s28, 0
    %p369 = por %p367, %p368
    %p370 = scmp.ne.s32.totalorder %s356, %s357
    %p371 = scmp.eq.s32.totalorder %s29, 1
    %p372 = por %p370, %p371
    %p374 = scmp.ne.s32.totalorder %s357, %s373
    %p375 = scmp.eq.s32.totalorder %s29, 0
    %p376 = por %p374, %p375
    %p377 = scmp.le.s32.totalorder 1, %s23
    %p378 = scmp.lt.s32.totalorder %s23, 3
    %p379 = pnand %p377, %p378
    %p380 = pneg %p379
    // Predicated region
    $region9: #{lenet_regression_forward.1} parent=5 // pred_check
      _
    $region10: #{lenet_regression_forward.1} parent=5 // pred_check_branch
      %382 = sbr.rel (%p379) target = $region12
    $region11: #{lenet_regression_forward.1} parent=5 // pred_region
      %s383 = ssub.s32 %s23, 1
      // Predicated region
      $region13: #{lenet_regression_forward.1} parent=11 // pred_check
        %p384 = pneg %p70
      $region14: #{lenet_regression_forward.1} parent=11 // pred_check_branch
        %386 = sbr.rel (%p384) target = $region16
      $region15: #{lenet_regression_forward.1} parent=11 // pred_region
        _
      $region16: #{lenet_regression_forward.1} parent=11 // pred_fallthru
        _
      // Predicated region
      $region17: #{lenet_regression_forward.1} parent=11 // pred_check
        %p387 = pneg %p91
      $region18: #{lenet_regression_forward.1} parent=11 // pred_check_branch
        %389 = sbr.rel (%p387) target = $region20
      $region19: #{lenet_regression_forward.1} parent=11 // pred_region
        _
      $region20: #{lenet_regression_forward.1} parent=11 // pred_fallthru
        _
      // Predicated region
      $region21: #{lenet_regression_forward.1} parent=11 // pred_check
        %p390 = pneg %p112
      $region22: #{lenet_regression_forward.1} parent=11 // pred_check_branch
        %392 = sbr.rel (%p390) target = $region24
      $region23: #{lenet_regression_forward.1} parent=11 // pred_region
        _
      $region24: #{lenet_regression_forward.1} parent=11 // pred_fallthru
        _
      // Predicated region
      $region25: #{lenet_regression_forward.1} parent=11 // pred_check
        %p393 = pneg %p133
      $region26: #{lenet_regression_forward.1} parent=11 // pred_check_branch
        %395 = sbr.rel (%p393) target = $region28
      $region27: #{lenet_regression_forward.1} parent=11 // pred_region
        _
      $region28: #{lenet_regression_forward.1} parent=11 // pred_fallthru
        _
      // Predicated region
      $region29: #{lenet_regression_forward.1} parent=11 // pred_check
        %p396 = pneg %p154
      $region30: #{lenet_regression_forward.1} parent=11 // pred_check_branch
        %398 = sbr.rel (%p396) target = $region32
      $region31: #{lenet_regression_forward.1} parent=11 // pred_region
        _
      $region32: #{lenet_regression_forward.1} parent=11 // pred_fallthru
        _
      // Predicated region
      $region33: #{lenet_regression_forward.1} parent=11 // pred_check
        %p399 = pneg %p175
      $region34: #{lenet_regression_forward.1} parent=11 // pred_check_branch
        %401 = sbr.rel (%p399) target = $region36
      $region35: #{lenet_regression_forward.1} parent=11 // pred_region
        _
      $region36: #{lenet_regression_forward.1} parent=11 // pred_fallthru
        _
      // Predicated region
      $region37: #{lenet_regression_forward.1} parent=11 // pred_check
        %p402 = pneg %p196
      $region38: #{lenet_regression_forward.1} parent=11 // pred_check_branch
        %404 = sbr.rel (%p402) target = $region40
      $region39: #{lenet_regression_forward.1} parent=11 // pred_region
        _
      $region40: #{lenet_regression_forward.1} parent=11 // pred_fallthru
        _
      // Predicated region
      $region41: #{lenet_regression_forward.1} parent=11 // pred_check
        %p405 = pneg %p217
      $region42: #{lenet_regression_forward.1} parent=11 // pred_check_branch
        %407 = sbr.rel (%p405) target = $region44
      $region43: #{lenet_regression_forward.1} parent=11 // pred_region
        _
      $region44: #{lenet_regression_forward.1} parent=11 // pred_fallthru
        _
      // Predicated region
      $region45: #{lenet_regression_forward.1} parent=11 // pred_check
        %p408 = pneg %p238
      $region46: #{lenet_regression_forward.1} parent=11 // pred_check_branch
        %410 = sbr.rel (%p408) target = $region48
      $region47: #{lenet_regression_forward.1} parent=11 // pred_region
        _
      $region48: #{lenet_regression_forward.1} parent=11 // pred_fallthru
        _
      // Predicated region
      $region49: #{lenet_regression_forward.1} parent=11 // pred_check
        %p411 = pneg %p259
      $region50: #{lenet_regression_forward.1} parent=11 // pred_check_branch
        %413 = sbr.rel (%p411) target = $region52
      $region51: #{lenet_regression_forward.1} parent=11 // pred_region
        _
      $region52: #{lenet_regression_forward.1} parent=11 // pred_fallthru
        _
      // Predicated region
      $region53: #{lenet_regression_forward.1} parent=11 // pred_check
        %p414 = pneg %p280
      $region54: #{lenet_regression_forward.1} parent=11 // pred_check_branch
        %416 = sbr.rel (%p414) target = $region56
      $region55: #{lenet_regression_forward.1} parent=11 // pred_region
        _
      $region56: #{lenet_regression_forward.1} parent=11 // pred_fallthru
        _
      // Predicated region
      $region57: #{lenet_regression_forward.1} parent=11 // pred_check
        %p417 = pneg %p301
      $region58: #{lenet_regression_forward.1} parent=11 // pred_check_branch
        %419 = sbr.rel (%p417) target = $region60
      $region59: #{lenet_regression_forward.1} parent=11 // pred_region
        _
      $region60: #{lenet_regression_forward.1} parent=11 // pred_fallthru
        _
      // Predicated region
      $region61: #{lenet_regression_forward.1} parent=11 // pred_check
        %p420 = pneg %p322
      $region62: #{lenet_regression_forward.1} parent=11 // pred_check_branch
        %422 = sbr.rel (%p420) target = $region64
      $region63: #{lenet_regression_forward.1} parent=11 // pred_region
        _
      $region64: #{lenet_regression_forward.1} parent=11 // pred_fallthru
        _
      // Predicated region
      $region65: #{lenet_regression_forward.1} parent=11 // pred_check
        %p423 = pneg %p343
      $region66: #{lenet_regression_forward.1} parent=11 // pred_check_branch
        %425 = sbr.rel (%p423) target = $region68
      $region67: #{lenet_regression_forward.1} parent=11 // pred_region
        _
      $region68: #{lenet_regression_forward.1} parent=11 // pred_fallthru
        _
    $region12: #{lenet_regression_forward.1} parent=5 // pred_fallthru
      _
    %p426 = scmp.lt.s32.totalorder %s23, 2
    // Predicated region
    $region69: #{lenet_regression_forward.1} parent=5 // pred_check
      %p427 = pneg %p426
    $region70: #{lenet_regression_forward.1} parent=5 // pred_check_branch
      %429 = sbr.rel (%p427) target = $region72
    $region71: #{lenet_regression_forward.1} parent=5 // pred_region
      // Predicated region
      $region73: #{lenet_regression_forward.1} parent=71 // pred_check
        %p430 = pneg %p43
      $region74: #{lenet_regression_forward.1} parent=71 // pred_check_branch
        %432 = sbr.rel (%p430) target = $region76
      $region75: #{lenet_regression_forward.1} parent=71 // pred_region
        %p433 = scmp.lt.s32.totalorder %s23, 1
        %s434 = scalar_select %p433, %s23, 1
        %s435 = smul.addr %s434, 4
        %s436 = smul.addr %s435, 8
        %s437 = scalar_lea.vmem %s0, %s436
      $region76: #{lenet_regression_forward.1} parent=71 // pred_fallthru
        _
    $region72: #{lenet_regression_forward.1} parent=5 // pred_fallthru
      _
    %p438 = scmp.le.s32.totalorder 1, %s23
    %p439 = scmp.lt.s32.totalorder %s23, 3
    %p440 = pnand %p438, %p439
    %p441 = pneg %p440
    // Predicated region
    $region77: #{lenet_regression_forward.1} parent=5 // pred_check
      _
    $region78: #{lenet_regression_forward.1} parent=5 // pred_check_branch
      %443 = sbr.rel (%p440) target = $region80
    $region79: #{lenet_regression_forward.1} parent=5 // pred_region
      %s444 = ssub.s32 %s23, 1
      %p445 = scmp.lt.s32.totalorder %s28, 1
      %s446 = scalar_select %p445, %s28, 1
      %s447 = smul.addr %s446, 4
      %s448 = smul.addr %s447, 8
      %s449 = scalar_lea.vmem %s0, %s448
      %p450 = pneg %p49
      %p451 = pneg %p46
      %p452 = pneg %p70
      %p453 = pneg %p67
      %p454 = pneg %p91
      %p455 = pneg %p88
      %p456 = pneg %p112
      %p457 = pneg %p109
      %p458 = pneg %p133
      %p459 = pneg %p130
      %p460 = pneg %p154
      %p461 = pneg %p151
      %p462 = pneg %p175
      %p463 = pneg %p172
      %p464 = pneg %p196
      %p465 = pneg %p193
      %p466 = pneg %p217
      %p467 = pneg %p214
      %p468 = pneg %p238
      %p469 = pneg %p235
      %p470 = pneg %p259
      %p471 = pneg %p256
      %p472 = pneg %p280
      %p473 = pneg %p277
      %p474 = pneg %p301
      %p475 = pneg %p298
      %p476 = pneg %p322
      %p477 = pneg %p319
      %p478 = pneg %p343
      %p479 = pneg %p340
      %p480 = pneg %p369
      %p481 = pneg %p366
      %p482 = scmp.lt.s32.totalorder %s28, 1
      %s483 = scalar_select %p482, %s28, 1
      %s484 = scalar_lea.vmem %s15, %s483
      %p485 = scmp.lt.s32.totalorder %s28, 1
      %s486 = scalar_select %p485, %s28, 1
      %s487 = smul.addr %s486, 4
      %s488 = smul.addr %s487, 8
      %s489 = scalar_lea.vmem %s0, %s488
      %p490 = scmp.lt.s32.totalorder %s28, 1
      %s491 = scalar_select %p490, %s28, 1
      %s492 = scalar_lea.vmem %s15, %s491
      %v494 = vld [vmem:[%s489] sm:$0xff]
      %v495 = vld [vmem:[%s489 + $0x8] sm:$0xff]
      %v496 = vld [vmem:[%s489 + $0x10] sm:$0xff]
      %v497 = vld [vmem:[%s489 + $0x18] sm:$0xff]
      %v498 = vpack.c.bf16 %v495, %v494
      %v499 = vpack.c.bf16 %v497, %v496
      %v500 = vld [vmem:[%s1] sm:$0xff]
      %v501 = vld [vmem:[%s1 + $0x8] sm:$0xff]
      %v502 = vld [vmem:[%s1 + $0x10] sm:$0xff]
      %v503 = vld [vmem:[%s1 + $0x18] sm:$0xff]
      %s504 = scalar_lea.vmem %s1, 32
      %v505 = vld [vmem:[%s504] sm:$0xff]
      %v506 = vld [vmem:[%s504 + $0x8] sm:$0xff]
      %v507 = vld [vmem:[%s504 + $0x10] sm:$0xff]
      %v508 = vld [vmem:[%s504 + $0x18] sm:$0xff]
      %vm509 = vsmask.f32 7424
      %v511 = vshrl.u32 %v498, 16
      %v513 = vshll.u32 %v498, 16
      %v515 = vrot.slane %v513, 1
      %v516 = vor.u32 %v511, %v515
      %v518 = vshll.u32 %v499, 16
      %v520 = vrot.slane %v518, 1
      %v521 = vsel %vm509, %v516, %v520
      %v522 = vshrl.u32 %v499, 16
      %v524 = vor.u32 %v522, %v520
      %v529 = vunpack.c.l.b16 %v505
      %v530 = vunpack.c.h.b16 %v505
      %v531 = vunpack.c.l.b16 %v506
      %v532 = vunpack.c.h.b16 %v506
      %v533 = vunpack.c.l.b16 %v507
      %v534 = vunpack.c.h.b16 %v507
      %v535 = vunpack.c.l.b16 %v508
      %v536 = vunpack.c.h.b16 %v508
      %v537 = vpack.c.b16 %v531, %v529
      %v538 = vpack.c.b16 %v532, %v530
      %v539 = vpack.c.b16 %v535, %v533
      %v540 = vpack.c.b16 %v536, %v534
      %vm545 = vcmask 261120
      %v547 = vsel %vm545, %v521, 0
      %v550 = vsel %vm545, %v524, 0
      %552 = vmatprep.subr.bf16.mxu0 0
      %553 = vmatpush1.bf16.msra.mxu0 0
      %554 = vmatprep.subr.bf16.mxu0 0
      %555 = vmatpush1.bf16.msra.mxu0 0
      %556 = vmatprep.subr.bf16.mxu0 0
      %557 = vmatpush1.bf16.msra.mxu0 0
      %558 = vmatprep.subr.bf16.mxu0 0
      %559 = vmatpush1.bf16.msra.mxu0 0
      %560 = vmatprep.subr.bf16.mxu0 0
      %561 = vmatpush1.bf16.msra.mxu0 0
      %562 = vmatprep.subr.bf16.mxu0 0
      %563 = vmatpush1.bf16.msra.mxu0 0
      %564 = vmatprep.subr.bf16.mxu0 %v540
      %565 = vmatpush1.bf16.msra.mxu0 %v539
      %566 = vmatprep.subr.bf16.mxu0 %v538
      %567 = vmatpush1.bf16.msra.mxu0 %v537
      %568 = vmatprep.subr.bf16.mxu0 0
      %569 = vmatpush2.bf16.msra.mxu0 0
      %570 = vmatprep.subr.bf16.mxu0 0
      %571 = vmatpush2.bf16.msra.mxu0 0
      %572 = vmatprep.subr.bf16.mxu0 0
      %573 = vmatpush2.bf16.msra.mxu0 0
      %574 = vmatprep.subr.bf16.mxu0 0
      %575 = vmatpush2.bf16.msra.mxu0 0
      %576 = vmatprep.subr.bf16.mxu0 0
      %577 = vmatpush2.bf16.msra.mxu0 0
      %578 = vmatprep.subr.bf16.mxu0 0
      %579 = vmatpush2.bf16.msra.mxu0 0
      %580 = vmatprep.subr.bf16.mxu0 0
      %581 = vmatpush2.bf16.msra.mxu0 0
      %582 = vmatprep.subr.bf16.mxu0 0
      %583 = vmatpush2.bf16.msra.mxu0 0
      %584 = vmatprep.mubr.bf16.mxu0 0
      %585 = vmatmul.mubr.bf16.gmra.mxu0 %v547
      %v586 = vpop.f32.mrf.mxu0
      %v587 = vadd.f32 0.0, %v586
      %v588 = vpop.f32.mrf.mxu0
      %v589 = vadd.f32 0.0, %v588
      %v590 = vpop.f32.mrf.mxu0
      %v591 = vadd.f32 0.0, %v590
      %v592 = vpop.f32.mrf.mxu0
      %v593 = vadd.f32 0.0, %v592
      %594 = vmatprep.mubr.bf16.mxu0 0
      %595 = vmatmul.mubr.bf16.gmra.mxu0 %v550
      %v596 = vpop.f32.mrf.mxu0
      %v597 = vadd.f32 0.0, %v596
      %v598 = vpop.f32.mrf.mxu0
      %v599 = vadd.f32 0.0, %v598
      %v600 = vpop.f32.mrf.mxu0
      %v601 = vadd.f32 0.0, %v600
      %v602 = vpop.f32.mrf.mxu0
      %v603 = vadd.f32 0.0, %v602
      %604 = vdwg.mxu0
      %v609 = vunpack.c.l.b16 %v500
      %v610 = vunpack.c.h.b16 %v500
      %v611 = vunpack.c.l.b16 %v501
      %v612 = vunpack.c.h.b16 %v501
      %v613 = vunpack.c.l.b16 %v502
      %v614 = vunpack.c.h.b16 %v502
      %v615 = vunpack.c.l.b16 %v503
      %v616 = vunpack.c.h.b16 %v503
      %v617 = vpack.c.b16 %v611, %v609
      %v618 = vpack.c.b16 %v612, %v610
      %v619 = vpack.c.b16 %v615, %v613
      %v620 = vpack.c.b16 %v616, %v614
      %v625 = vsel %vm545, %v498, 0
      %v627 = vsel %vm545, %v499, 0
      %629 = vmatprep.subr.bf16.mxu0 0
      %630 = vmatpush1.bf16.msra.mxu0 0
      %631 = vmatprep.subr.bf16.mxu0 0
      %632 = vmatpush1.bf16.msra.mxu0 0
      %633 = vmatprep.subr.bf16.mxu0 0
      %634 = vmatpush1.bf16.msra.mxu0 0
      %635 = vmatprep.subr.bf16.mxu0 0
      %636 = vmatpush1.bf16.msra.mxu0 0
      %637 = vmatprep.subr.bf16.mxu0 0
      %638 = vmatpush1.bf16.msra.mxu0 0
      %639 = vmatprep.subr.bf16.mxu0 0
      %640 = vmatpush1.bf16.msra.mxu0 0
      %641 = vmatprep.subr.bf16.mxu0 %v620
      %642 = vmatpush1.bf16.msra.mxu0 %v619
      %643 = vmatprep.subr.bf16.mxu0 %v618
      %644 = vmatpush1.bf16.msra.mxu0 %v617
      %645 = vmatprep.subr.bf16.mxu0 0
      %646 = vmatpush2.bf16.msra.mxu0 0
      %647 = vmatprep.subr.bf16.mxu0 0
      %648 = vmatpush2.bf16.msra.mxu0 0
      %649 = vmatprep.subr.bf16.mxu0 0
      %650 = vmatpush2.bf16.msra.mxu0 0
      %651 = vmatprep.subr.bf16.mxu0 0
      %652 = vmatpush2.bf16.msra.mxu0 0
      %653 = vmatprep.subr.bf16.mxu0 0
      %654 = vmatpush2.bf16.msra.mxu0 0
      %655 = vmatprep.subr.bf16.mxu0 0
      %656 = vmatpush2.bf16.msra.mxu0 0
      %657 = vmatprep.subr.bf16.mxu0 0
      %658 = vmatpush2.bf16.msra.mxu0 0
      %659 = vmatprep.subr.bf16.mxu0 0
      %660 = vmatpush2.bf16.msra.mxu0 0
      %661 = vmatprep.mubr.bf16.mxu0 0
      %662 = vmatmul.mubr.bf16.gmra.mxu0 %v625
      %v663 = vpop.f32.mrf.mxu0
      %v664 = vadd.f32 %v587, %v663
      %v665 = vpop.f32.mrf.mxu0
      %v666 = vadd.f32 %v589, %v665
      %v667 = vpop.f32.mrf.mxu0
      %v668 = vadd.f32 %v591, %v667
      %v669 = vpop.f32.mrf.mxu0
      %v670 = vadd.f32 %v593, %v669
      %671 = vmatprep.mubr.bf16.mxu0 0
      %672 = vmatmul.mubr.bf16.gmra.mxu0 %v627
      %v673 = vpop.f32.mrf.mxu0
      %v674 = vadd.f32 %v597, %v673
      %v675 = vpop.f32.mrf.mxu0
      %v676 = vadd.f32 %v599, %v675
      %v677 = vpop.f32.mrf.mxu0
      %v678 = vadd.f32 %v601, %v677
      %v679 = vpop.f32.mrf.mxu0
      %v680 = vadd.f32 %v603, %v679
      %681 = vdwg.mxu0
      %s682 = scalar_lea.vmem %s1, 64
      %v683 = vld [vmem:[%s682] sm:$0xff]
      %v684 = vld [vmem:[%s682 + $0x8] sm:$0xff]
      %v685 = vld [vmem:[%s682 + $0x10] sm:$0xff]
      %v686 = vld [vmem:[%s682 + $0x18] sm:$0xff]
      %vm689 = vcmask 1046528
      %v690 = vrot.slane %v498, 1
      %v691 = vrot.slane %v499, 1
      %v692 = vsel %vm689, %v690, %v691
      %v697 = vunpack.c.l.b16 %v683
      %v698 = vunpack.c.h.b16 %v683
      %v699 = vunpack.c.l.b16 %v684
      %v700 = vunpack.c.h.b16 %v684
      %v701 = vunpack.c.l.b16 %v685
      %v702 = vunpack.c.h.b16 %v685
      %v703 = vunpack.c.l.b16 %v686
      %v704 = vunpack.c.h.b16 %v686
      %v705 = vpack.c.b16 %v699, %v697
      %v706 = vpack.c.b16 %v700, %v698
      %v707 = vpack.c.b16 %v703, %v701
      %v708 = vpack.c.b16 %v704, %v702
      %v714 = vsel %vm545, %v692, 0
      %v717 = vsel %vm545, %v691, 0
      %719 = vmatprep.subr.bf16.mxu0 0
      %720 = vmatpush1.bf16.msra.mxu0 0
      %721 = vmatprep.subr.bf16.mxu0 0
      %722 = vmatpush1.bf16.msra.mxu0 0
      %723 = vmatprep.subr.bf16.mxu0 0
      %724 = vmatpush1.bf16.msra.mxu0 0
      %725 = vmatprep.subr.bf16.mxu0 0
      %726 = vmatpush1.bf16.msra.mxu0 0
      %727 = vmatprep.subr.bf16.mxu0 0
      %728 = vmatpush1.bf16.msra.mxu0 0
      %729 = vmatprep.subr.bf16.mxu0 0
      %730 = vmatpush1.bf16.msra.mxu0 0
      %731 = vmatprep.subr.bf16.mxu0 %v708
      %732 = vmatpush1.bf16.msra.mxu0 %v707
      %733 = vmatprep.subr.bf16.mxu0 %v706
      %734 = vmatpush1.bf16.msra.mxu0 %v705
      %735 = vmatprep.subr.bf16.mxu0 0
      %736 = vmatpush2.bf16.msra.mxu0 0
      %737 = vmatprep.subr.bf16.mxu0 0
      %738 = vmatpush2.bf16.msra.mxu0 0
      %739 = vmatprep.subr.bf16.mxu0 0
      %740 = vmatpush2.bf16.msra.mxu0 0
      %741 = vmatprep.subr.bf16.mxu0 0
      %742 = vmatpush2.bf16.msra.mxu0 0
      %743 = vmatprep.subr.bf16.mxu0 0
      %744 = vmatpush2.bf16.msra.mxu0 0
      %745 = vmatprep.subr.bf16.mxu0 0
      %746 = vmatpush2.bf16.msra.mxu0 0
      %747 = vmatprep.subr.bf16.mxu0 0
      %748 = vmatpush2.bf16.msra.mxu0 0
      %749 = vmatprep.subr.bf16.mxu0 0
      %750 = vmatpush2.bf16.msra.mxu0 0
      %751 = vmatprep.mubr.bf16.mxu0 0
      %752 = vmatmul.mubr.bf16.gmra.mxu0 %v714
      %v753 = vpop.f32.mrf.mxu0
      %v754 = vadd.f32 0.0, %v753
      %v755 = vpop.f32.mrf.mxu0
      %v756 = vadd.f32 0.0, %v755
      %v757 = vpop.f32.mrf.mxu0
      %v758 = vadd.f32 0.0, %v757
      %v759 = vpop.f32.mrf.mxu0
      %v760 = vadd.f32 0.0, %v759
      %761 = vmatprep.mubr.bf16.mxu0 0
      %762 = vmatmul.mubr.bf16.gmra.mxu0 %v717
      %v763 = vpop.f32.mrf.mxu0
      %v764 = vadd.f32 0.0, %v763
      %v765 = vpop.f32.mrf.mxu0
      %v766 = vadd.f32 0.0, %v765
      %v767 = vpop.f32.mrf.mxu0
      %v768 = vadd.f32 0.0, %v767
      %v769 = vpop.f32.mrf.mxu0
      %v770 = vadd.f32 0.0, %v769
      %771 = vdwg.mxu0
      %v772 = vadd.f32 %v664, %v754
      %v773 = vadd.f32 %v666, %v756
      %v774 = vadd.f32 %v668, %v758
      %v775 = vadd.f32 %v670, %v760
      %v776 = vadd.f32 %v674, %v764
      %v777 = vadd.f32 %v676, %v766
      %v778 = vadd.f32 %v678, %v768
      %v779 = vadd.f32 %v680, %v770
      %s780 = scalar_lea.vmem %s1, 96
      %v781 = vld [vmem:[%s780] sm:$0xff]
      %v782 = vld [vmem:[%s780 + $0x8] sm:$0xff]
      %v783 = vld [vmem:[%s780 + $0x10] sm:$0xff]
      %v784 = vld [vmem:[%s780 + $0x18] sm:$0xff]
      %vm785 = vsmask.f32 6400
      %v786 = vrot.slane %v511, 1
      %v787 = vrot.slane %v513, 2
      %v788 = vor.u32 %v786, %v787
      %v789 = vrot.slane %v522, 1
      %v790 = vrot.slane %v518, 2
      %v791 = vor.u32 %v789, %v790
      %v792 = vsel %vm785, %v788, %v791
      %v797 = vunpack.c.l.b16 %v781
      %v798 = vunpack.c.h.b16 %v781
      %v799 = vunpack.c.l.b16 %v782
      %v800 = vunpack.c.h.b16 %v782
      %v801 = vunpack.c.l.b16 %v783
      %v802 = vunpack.c.h.b16 %v783
      %v803 = vunpack.c.l.b16 %v784
      %v804 = vunpack.c.h.b16 %v784
      %v805 = vpack.c.b16 %v799, %v797
      %v806 = vpack.c.b16 %v800, %v798
      %v807 = vpack.c.b16 %v803, %v801
      %v808 = vpack.c.b16 %v804, %v802
      %v814 = vsel %vm545, %v792, 0
      %v817 = vsel %vm545, %v791, 0
      %819 = vmatprep.subr.bf16.mxu0 0
      %820 = vmatpush1.bf16.msra.mxu0 0
      %821 = vmatprep.subr.bf16.mxu0 0
      %822 = vmatpush1.bf16.msra.mxu0 0
      %823 = vmatprep.subr.bf16.mxu0 0
      %824 = vmatpush1.bf16.msra.mxu0 0
      %825 = vmatprep.subr.bf16.mxu0 0
      %826 = vmatpush1.bf16.msra.mxu0 0
      %827 = vmatprep.subr.bf16.mxu0 0
      %828 = vmatpush1.bf16.msra.mxu0 0
      %829 = vmatprep.subr.bf16.mxu0 0
      %830 = vmatpush1.bf16.msra.mxu0 0
      %831 = vmatprep.subr.bf16.mxu0 %v808
      %832 = vmatpush1.bf16.msra.mxu0 %v807
      %833 = vmatprep.subr.bf16.mxu0 %v806
      %834 = vmatpush1.bf16.msra.mxu0 %v805
      %835 = vmatprep.subr.bf16.mxu0 0
      %836 = vmatpush2.bf16.msra.mxu0 0
      %837 = vmatprep.subr.bf16.mxu0 0
      %838 = vmatpush2.bf16.msra.mxu0 0
      %839 = vmatprep.subr.bf16.mxu0 0
      %840 = vmatpush2.bf16.msra.mxu0 0
      %841 = vmatprep.subr.bf16.mxu0 0
      %842 = vmatpush2.bf16.msra.mxu0 0
      %843 = vmatprep.subr.bf16.mxu0 0
      %844 = vmatpush2.bf16.msra.mxu0 0
      %845 = vmatprep.subr.bf16.mxu0 0
      %846 = vmatpush2.bf16.msra.mxu0 0
      %847 = vmatprep.subr.bf16.mxu0 0
      %848 = vmatpush2.bf16.msra.mxu0 0
      %849 = vmatprep.subr.bf16.mxu0 0
      %850 = vmatpush2.bf16.msra.mxu0 0
      %851 = vmatprep.mubr.bf16.mxu0 0
      %852 = vmatmul.mubr.bf16.gmra.mxu0 %v814
      %v853 = vpop.f32.mrf.mxu0
      %v854 = vadd.f32 0.0, %v853
      %v855 = vpop.f32.mrf.mxu0
      %v856 = vadd.f32 0.0, %v855
      %v857 = vpop.f32.mrf.mxu0
      %v858 = vadd.f32 0.0, %v857
      %v859 = vpop.f32.mrf.mxu0
      %v860 = vadd.f32 0.0, %v859
      %861 = vmatprep.mubr.bf16.mxu0 0
      %862 = vmatmul.mubr.bf16.gmra.mxu0 %v817
      %v863 = vpop.f32.mrf.mxu0
      %v864 = vadd.f32 0.0, %v863
      %v865 = vpop.f32.mrf.mxu0
      %v866 = vadd.f32 0.0, %v865
      %v867 = vpop.f32.mrf.mxu0
      %v868 = vadd.f32 0.0, %v867
      %v869 = vpop.f32.mrf.mxu0
      %v870 = vadd.f32 0.0, %v869
      %871 = vdwg.mxu0
      %v872 = vadd.f32 %v772, %v854
      %v873 = vadd.f32 %v773, %v856
      %v874 = vadd.f32 %v774, %v858
      %v875 = vadd.f32 %v775, %v860
      %v876 = vadd.f32 %v776, %v864
      %v877 = vadd.f32 %v777, %v866
      %v878 = vadd.f32 %v778, %v868
      %v879 = vadd.f32 %v779, %v870
      %s880 = scalar_lea.vmem %s1, 128
      %v881 = vld [vmem:[%s880] sm:$0xff]
      %v882 = vld [vmem:[%s880 + $0x8] sm:$0xff]
      %v883 = vld [vmem:[%s880 + $0x10] sm:$0xff]
      %v884 = vld [vmem:[%s880 + $0x18] sm:$0xff]
      %vm885 = vcmask 1045504
      %v886 = vrot.slane %v498, 2
      %v887 = vrot.slane %v499, 2
      %v888 = vsel %vm885, %v886, %v887
      %v893 = vunpack.c.l.b16 %v881
      %v894 = vunpack.c.h.b16 %v881
      %v895 = vunpack.c.l.b16 %v882
      %v896 = vunpack.c.h.b16 %v882
      %v897 = vunpack.c.l.b16 %v883
      %v898 = vunpack.c.h.b16 %v883
      %v899 = vunpack.c.l.b16 %v884
      %v900 = vunpack.c.h.b16 %v884
      %v901 = vpack.c.b16 %v895, %v893
      %v902 = vpack.c.b16 %v896, %v894
      %v903 = vpack.c.b16 %v899, %v897
      %v904 = vpack.c.b16 %v900, %v898
      %v910 = vsel %vm545, %v888, 0
      %v913 = vsel %vm545, %v887, 0
      %915 = vmatprep.subr.bf16.mxu0 0
      %916 = vmatpush1.bf16.msra.mxu0 0
      %917 = vmatprep.subr.bf16.mxu0 0
      %918 = vmatpush1.bf16.msra.mxu0 0
      %919 = vmatprep.subr.bf16.mxu0 0
      %920 = vmatpush1.bf16.msra.mxu0 0
      %921 = vmatprep.subr.bf16.mxu0 0
      %922 = vmatpush1.bf16.msra.mxu0 0
      %923 = vmatprep.subr.bf16.mxu0 0
      %924 = vmatpush1.bf16.msra.mxu0 0
      %925 = vmatprep.subr.bf16.mxu0 0
      %926 = vmatpush1.bf16.msra.mxu0 0
      %927 = vmatprep.subr.bf16.mxu0 %v904
      %928 = vmatpush1.bf16.msra.mxu0 %v903
      %929 = vmatprep.subr.bf16.mxu0 %v902
      %930 = vmatpush1.bf16.msra.mxu0 %v901
      %931 = vmatprep.subr.bf16.mxu0 0
      %932 = vmatpush2.bf16.msra.mxu0 0
      %933 = vmatprep.subr.bf16.mxu0 0
      %934 = vmatpush2.bf16.msra.mxu0 0
      %935 = vmatprep.subr.bf16.mxu0 0
      %936 = vmatpush2.bf16.msra.mxu0 0
      %937 = vmatprep.subr.bf16.mxu0 0
      %938 = vmatpush2.bf16.msra.mxu0 0
      %939 = vmatprep.subr.bf16.mxu0 0
      %940 = vmatpush2.bf16.msra.mxu0 0
      %941 = vmatprep.subr.bf16.mxu0 0
      %942 = vmatpush2.bf16.msra.mxu0 0
      %943 = vmatprep.subr.bf16.mxu0 0
      %944 = vmatpush2.bf16.msra.mxu0 0
      %945 = vmatprep.subr.bf16.mxu0 0
      %946 = vmatpush2.bf16.msra.mxu0 0
      %947 = vmatprep.mubr.bf16.mxu0 0
      %948 = vmatmul.mubr.bf16.gmra.mxu0 %v910
      %v949 = vpop.f32.mrf.mxu0
      %v950 = vadd.f32 0.0, %v949
      %v951 = vpop.f32.mrf.mxu0
      %v952 = vadd.f32 0.0, %v951
      %v953 = vpop.f32.mrf.mxu0
      %v954 = vadd.f32 0.0, %v953
      %v955 = vpop.f32.mrf.mxu0
      %v956 = vadd.f32 0.0, %v955
      %957 = vmatprep.mubr.bf16.mxu0 0
      %958 = vmatmul.mubr.bf16.gmra.mxu0 %v913
      %v959 = vpop.f32.mrf.mxu0
      %v960 = vadd.f32 0.0, %v959
      %v961 = vpop.f32.mrf.mxu0
      %v962 = vadd.f32 0.0, %v961
      %v963 = vpop.f32.mrf.mxu0
      %v964 = vadd.f32 0.0, %v963
      %v965 = vpop.f32.mrf.mxu0
      %v966 = vadd.f32 0.0, %v965
      %967 = vdwg.mxu0
      %v968 = vadd.f32 %v872, %v950
      %v969 = vadd.f32 %v873, %v952
      %v970 = vadd.f32 %v874, %v954
      %v971 = vadd.f32 %v875, %v956
      %v972 = vadd.f32 %v876, %v960
      %v973 = vadd.f32 %v877, %v962
      %v974 = vadd.f32 %v878, %v964
      %v975 = vadd.f32 %v879, %v966
      %v976 = vld [vmem:[%s2] sm:$0x3]
      %v978 = vlaneseq
      %v979 = vshrl.u32 %v978, 7
      %v980 = vsub.s32 0, %v979
      %v981 = vrot.slane %v976, %v980
      %v982 = vlaneseq
      %v983 = vshrl.u32 %v982, 7
      %v984 = vsub.s32 1, %v983
      %v985 = vrot.slane %v976, %v984
      %v988 = vadd.f32 %v968, %v981
      %v989 = vadd.f32 %v969, %v985
      %v990 = vadd.f32 %v970, %v981
      %v991 = vadd.f32 %v971, %v985
      %v992 = vadd.f32 %v972, %v981
      %v993 = vadd.f32 %v973, %v985
      %v994 = vadd.f32 %v974, %v981
      %v995 = vadd.f32 %v975, %v985
      %v996 = vmax.f32 %v988, 0.0
      %v997 = vmax.f32 %v989, 0.0
      %v998 = vmax.f32 %v990, 0.0
      %v999 = vmax.f32 %v991, 0.0
      %v1000 = vmax.f32 %v992, 0.0
      %v1001 = vmax.f32 %v993, 0.0
      %v1002 = vmax.f32 %v994, 0.0
      %v1003 = vmax.f32 %v995, 0.0
      %1012 = vrot.lane.b32.xlu0 %v996, 122
      %v1013 = vpop.permute.xlu0 %1012
      %1014 = vrot.lane.b32.xlu0 %v997, 122
      %v1015 = vpop.permute.xlu0 %1014
      %1016 = vrot.lane.b32.xlu0 %v998, 122
      %v1017 = vpop.permute.xlu0 %1016
      %1018 = vrot.lane.b32.xlu0 %v999, 122
      %v1019 = vpop.permute.xlu0 %1018
      %1020 = vrot.lane.b32.xlu0 %v1000, 122
      %v1021 = vpop.permute.xlu0 %1020
      %1022 = vrot.lane.b32.xlu0 %v1001, 122
      %v1023 = vpop.permute.xlu0 %1022
      %1024 = vrot.lane.b32.xlu0 %v1002, 122
      %v1025 = vpop.permute.xlu0 %1024
      %1026 = vrot.lane.b32.xlu0 %v1003, 122
      %v1027 = vpop.permute.xlu0 %1026
      %vm1028 = vcmask 998400
      %v1029 = vsel %vm1028, %v1013, %v1015
      %v1030 = vsel %vm1028, %v1017, %v1019
      %v1031 = vsel %vm1028, %v1021, %v1023
      %v1032 = vsel %vm1028, %v1025, %v1027
      %v1041 = vmax.f32 %v996, %v1029
      %v1042 = vmax.f32 %v997, %v1015
      %v1043 = vmax.f32 %v998, %v1030
      %v1044 = vmax.f32 %v999, %v1019
      %v1045 = vmax.f32 %v1000, %v1031
      %v1046 = vmax.f32 %v1001, %v1023
      %v1047 = vmax.f32 %v1002, %v1032
      %v1048 = vmax.f32 %v1003, %v1027
      %v1049 = vpack.c.bf16 %v1043, %v1041
      %v1050 = vpack.c.bf16 %v1044, %v1042
      %v1051 = vpack.c.bf16 %v1047, %v1045
      %v1052 = vpack.c.bf16 %v1048, %v1046
      %v1053 = vld [vmem:[%s3] sm:$0xf]
      %v1054 = vld [vmem:[%s3 + $0x4] sm:$0x7]
      %v1057 = vunpack.c.l.b16 %v1053
      %v1058 = vunpack.c.l.b16 %v1054
      %v1059 = vpack.c.b16 %v1058, %v1057
      %vm1060 = vcmask 228352
      %v1062 = vsel %vm1060, %v1059, 0
      %vm1064 = vcmask 1045504
      %v1066 = vsel %vm1064, %v1051, 0
      %v1069 = vsel %vm1064, %v1052, 0
      %1071 = vmatprep.subr.bf16.mxu0 0
      %1072 = vmatpush1.bf16.msra.mxu0 0
      %1073 = vmatprep.subr.bf16.mxu0 0
      %1074 = vmatpush1.bf16.msra.mxu0 0
      %1075 = vmatprep.subr.bf16.mxu0 0
      %1076 = vmatpush1.bf16.msra.mxu0 0
      %1077 = vmatprep.subr.bf16.mxu0 0
      %1078 = vmatpush1.bf16.msra.mxu0 0
      %1079 = vmatprep.subr.bf16.mxu0 0
      %1080 = vmatpush1.bf16.msra.mxu0 0
      %1081 = vmatprep.subr.bf16.mxu0 0
      %1082 = vmatpush1.bf16.msra.mxu0 0
      %1083 = vmatprep.subr.bf16.mxu0 %v1069
      %1084 = vmatpush1.bf16.msra.mxu0 %v1066
      %1085 = vmatprep.subr.bf16.mxu0 %v1050
      %1086 = vmatpush1.bf16.msra.mxu0 %v1049
      %1087 = vmatprep.subr.bf16.mxu0 0
      %1088 = vmatpush2.bf16.msra.mxu0 0
      %1089 = vmatprep.subr.bf16.mxu0 0
      %1090 = vmatpush2.bf16.msra.mxu0 0
      %1091 = vmatprep.subr.bf16.mxu0 0
      %1092 = vmatpush2.bf16.msra.mxu0 0
      %1093 = vmatprep.subr.bf16.mxu0 0
      %1094 = vmatpush2.bf16.msra.mxu0 0
      %1095 = vmatprep.subr.bf16.mxu0 0
      %1096 = vmatpush2.bf16.msra.mxu0 0
      %1097 = vmatprep.subr.bf16.mxu0 0
      %1098 = vmatpush2.bf16.msra.mxu0 0
      %1099 = vmatprep.subr.bf16.mxu0 0
      %1100 = vmatpush2.bf16.msra.mxu0 0
      %1101 = vmatprep.subr.bf16.mxu0 0
      %1102 = vmatpush2.bf16.msra.mxu0 0
      %1103 = vmatprep.mubr.bf16.mxu0 0
      %1104 = vmatmul.mubr.bf16.gmra.mxu0 %v1062
      %v1105 = vpop.f32.mrf.mxu0
      %v1106 = vadd.f32 0.0, %v1105
      %v1107 = vpop.f32.mrf.mxu0
      %v1108 = vadd.f32 0.0, %v1107
      %v1109 = vpop.f32.mrf.mxu0
      %v1110 = vadd.f32 0.0, %v1109
      %v1111 = vpop.f32.mrf.mxu0
      %v1112 = vadd.f32 0.0, %v1111
      %1113 = vdwg.mxu0
      %v1114 = vld [vmem:[%s4] sm:$0xf]
      %v1115 = vld [vmem:[%s4 + $0x4] sm:$0x7]
      %v1118 = vunpack.c.l.b16 %v1114
      %v1119 = vunpack.c.l.b16 %v1115
      %v1120 = vpack.c.b16 %v1119, %v1118
      %v1122 = vsel %vm1060, %v1120, 0
      %1124 = vmatprep.subr.bf16.mxu0 0
      %1125 = vmatpush1.bf16.msra.mxu0 0
      %1126 = vmatprep.subr.bf16.mxu0 0
      %1127 = vmatpush1.bf16.msra.mxu0 0
      %1128 = vmatprep.subr.bf16.mxu0 0
      %1129 = vmatpush1.bf16.msra.mxu0 0
      %1130 = vmatprep.subr.bf16.mxu0 0
      %1131 = vmatpush1.bf16.msra.mxu0 0
      %1132 = vmatprep.subr.bf16.mxu0 0
      %1133 = vmatpush1.bf16.msra.mxu0 0
      %1134 = vmatprep.subr.bf16.mxu0 0
      %1135 = vmatpush1.bf16.msra.mxu0 0
      %1136 = vmatprep.subr.bf16.mxu0 %v1069
      %1137 = vmatpush1.bf16.msra.mxu0 %v1066
      %1138 = vmatprep.subr.bf16.mxu0 %v1050
      %1139 = vmatpush1.bf16.msra.mxu0 %v1049
      %1140 = vmatprep.subr.bf16.mxu0 0
      %1141 = vmatpush2.bf16.msra.mxu0 0
      %1142 = vmatprep.subr.bf16.mxu0 0
      %1143 = vmatpush2.bf16.msra.mxu0 0
      %1144 = vmatprep.subr.bf16.mxu0 0
      %1145 = vmatpush2.bf16.msra.mxu0 0
      %1146 = vmatprep.subr.bf16.mxu0 0
      %1147 = vmatpush2.bf16.msra.mxu0 0
      %1148 = vmatprep.subr.bf16.mxu0 0
      %1149 = vmatpush2.bf16.msra.mxu0 0
      %1150 = vmatprep.subr.bf16.mxu0 0
      %1151 = vmatpush2.bf16.msra.mxu0 0
      %1152 = vmatprep.subr.bf16.mxu0 0
      %1153 = vmatpush2.bf16.msra.mxu0 0
      %1154 = vmatprep.subr.bf16.mxu0 0
      %1155 = vmatpush2.bf16.msra.mxu0 0
      %1156 = vmatprep.mubr.bf16.mxu0 0
      %1157 = vmatmul.mubr.bf16.gmra.mxu0 %v1122
      %v1158 = vpop.f32.mrf.mxu0
      %v1159 = vadd.f32 0.0, %v1158
      %v1160 = vpop.f32.mrf.mxu0
      %v1161 = vadd.f32 0.0, %v1160
      %v1162 = vpop.f32.mrf.mxu0
      %v1163 = vadd.f32 0.0, %v1162
      %v1164 = vpop.f32.mrf.mxu0
      %v1165 = vadd.f32 0.0, %v1164
      %1166 = vdwg.mxu0
      %v1167 = vmax.f32 %v1106, %v1159
      %v1168 = vmax.f32 %v1108, %v1161
      %v1169 = vmax.f32 %v1110, %v1163
      %v1170 = vmax.f32 %v1112, %v1165
      %v1171 = vpack.c.bf16 %v1169, %v1167
      %v1172 = vpack.c.bf16 %v1170, %v1168
      %v1173 = vld [vmem:[%s5] sm:$0xff]
      %v1174 = vld [vmem:[%s5 + $0x8] sm:$0xff]
      %v1175 = vld [vmem:[%s5 + $0x10] sm:$0xff]
      %v1176 = vld [vmem:[%s5 + $0x18] sm:$0xff]
      %v1177 = vld [vmem:[%s5 + $0x20] sm:$0xff]
      %v1178 = vld [vmem:[%s5 + $0x28] sm:$0xff]
      %v1179 = vld [vmem:[%s5 + $0x30] sm:$0xff]
      %v1180 = vld [vmem:[%s5 + $0x38] sm:$0xff]
      %v1181 = vld [vmem:[%s5 + $0x40] sm:$0xff]
      %v1182 = vld [vmem:[%s5 + $0x48] sm:$0xff]
      %v1183 = vld [vmem:[%s5 + $0x50] sm:$0xff]
      %v1184 = vld [vmem:[%s5 + $0x58] sm:$0xff]
      %v1185 = vld [vmem:[%s5 + $0x60] sm:$0xff]
      %v1186 = vld [vmem:[%s5 + $0x68] sm:$0xff]
      %v1187 = vld [vmem:[%s5 + $0x70] sm:$0xff]
      %v1188 = vld [vmem:[%s5 + $0x78] sm:$0xff]
      %v1189 = vld [vmem:[%s5 + $0x80] sm:$0xff]
      %v1190 = vld [vmem:[%s5 + $0x88] sm:$0xff]
      %v1191 = vld [vmem:[%s5 + $0x90] sm:$0xff]
      %v1192 = vld [vmem:[%s5 + $0x98] sm:$0xff]
      %v1193 = vld [vmem:[%s5 + $0xa0] sm:$0x11]
      %s1194 = scalar_lea.vmem %s5, 168
      %v1195 = vld [vmem:[%s1194] sm:$0xff]
      %v1196 = vld [vmem:[%s1194 + $0x8] sm:$0xff]
      %v1197 = vld [vmem:[%s1194 + $0x10] sm:$0xff]
      %v1198 = vld [vmem:[%s1194 + $0x18] sm:$0xff]
      %v1199 = vld [vmem:[%s1194 + $0x20] sm:$0xff]
      %v1200 = vld [vmem:[%s1194 + $0x28] sm:$0xff]
      %v1201 = vld [vmem:[%s1194 + $0x30] sm:$0xff]
      %v1202 = vld [vmem:[%s1194 + $0x38] sm:$0xff]
      %v1203 = vld [vmem:[%s1194 + $0x40] sm:$0xff]
      %v1204 = vld [vmem:[%s1194 + $0x48] sm:$0xff]
      %v1205 = vld [vmem:[%s1194 + $0x50] sm:$0xff]
      %v1206 = vld [vmem:[%s1194 + $0x58] sm:$0xff]
      %v1207 = vld [vmem:[%s1194 + $0x60] sm:$0xff]
      %v1208 = vld [vmem:[%s1194 + $0x68] sm:$0xff]
      %v1209 = vld [vmem:[%s1194 + $0x70] sm:$0xff]
      %v1210 = vld [vmem:[%s1194 + $0x78] sm:$0xff]
      %v1211 = vld [vmem:[%s1194 + $0x80] sm:$0xff]
      %v1212 = vld [vmem:[%s1194 + $0x88] sm:$0xff]
      %v1213 = vld [vmem:[%s1194 + $0x90] sm:$0xff]
      %v1214 = vld [vmem:[%s1194 + $0x98] sm:$0xff]
      %v1215 = vld [vmem:[%s1194 + $0xa0] sm:$0x11]
      %v1217 = vshrl.u32 %v1171, 16
      %v1219 = vshll.u32 %v1171, 16
      %v1221 = vrot.slane %v1219, 1
      %v1222 = vor.u32 %v1217, %v1221
      %v1224 = vshrl.u32 %v1172, 16
      %v1226 = vshll.u32 %v1172, 16
      %v1228 = vrot.slane %v1226, 1
      %v1229 = vor.u32 %v1224, %v1228
      %v1252 = vunpack.c.l.b16 %v1195
      %v1253 = vunpack.c.h.b16 %v1195
      %v1254 = vunpack.c.l.b16 %v1196
      %v1255 = vunpack.c.h.b16 %v1196
      %v1256 = vunpack.c.l.b16 %v1197
      %v1257 = vunpack.c.h.b16 %v1197
      %v1258 = vunpack.c.l.b16 %v1198
      %v1259 = vunpack.c.h.b16 %v1198
      %v1260 = vunpack.c.l.b16 %v1199
      %v1261 = vunpack.c.h.b16 %v1199
      %v1262 = vunpack.c.l.b16 %v1200
      %v1263 = vunpack.c.h.b16 %v1200
      %v1264 = vunpack.c.l.b16 %v1201
      %v1265 = vunpack.c.h.b16 %v1201
      %v1266 = vunpack.c.l.b16 %v1202
      %v1267 = vunpack.c.h.b16 %v1202
      %v1268 = vunpack.c.l.b16 %v1203
      %v1269 = vunpack.c.h.b16 %v1203
      %v1270 = vunpack.c.l.b16 %v1204
      %v1271 = vunpack.c.h.b16 %v1204
      %v1272 = vunpack.c.l.b16 %v1205
      %v1273 = vunpack.c.h.b16 %v1205
      %v1274 = vunpack.c.l.b16 %v1206
      %v1275 = vunpack.c.h.b16 %v1206
      %v1276 = vunpack.c.l.b16 %v1207
      %v1277 = vunpack.c.h.b16 %v1207
      %v1278 = vunpack.c.l.b16 %v1208
      %v1279 = vunpack.c.h.b16 %v1208
      %v1280 = vunpack.c.l.b16 %v1209
      %v1281 = vunpack.c.h.b16 %v1209
      %v1282 = vunpack.c.l.b16 %v1210
      %v1283 = vunpack.c.h.b16 %v1210
      %v1284 = vunpack.c.l.b16 %v1211
      %v1285 = vunpack.c.h.b16 %v1211
      %v1286 = vunpack.c.l.b16 %v1212
      %v1287 = vunpack.c.h.b16 %v1212
      %v1288 = vunpack.c.l.b16 %v1213
      %v1289 = vunpack.c.h.b16 %v1213
      %v1290 = vunpack.c.l.b16 %v1214
      %v1291 = vunpack.c.h.b16 %v1214
      %v1292 = vunpack.c.l.b16 %v1215
      %v1293 = vunpack.c.h.b16 %v1215
      %v1294 = vpack.c.b16 %v1254, %v1252
      %v1295 = vpack.c.b16 %v1255, %v1253
      %v1296 = vpack.c.b16 %v1258, %v1256
      %v1297 = vpack.c.b16 %v1259, %v1257
      %v1298 = vpack.c.b16 %v1262, %v1260
      %v1299 = vpack.c.b16 %v1263, %v1261
      %v1300 = vpack.c.b16 %v1266, %v1264
      %v1301 = vpack.c.b16 %v1267, %v1265
      %v1302 = vpack.c.b16 %v1270, %v1268
      %v1303 = vpack.c.b16 %v1271, %v1269
      %v1304 = vpack.c.b16 %v1274, %v1272
      %v1305 = vpack.c.b16 %v1275, %v1273
      %v1306 = vpack.c.b16 %v1278, %v1276
      %v1307 = vpack.c.b16 %v1279, %v1277
      %v1308 = vpack.c.b16 %v1282, %v1280
      %v1309 = vpack.c.b16 %v1283, %v1281
      %v1310 = vpack.c.b16 %v1286, %v1284
      %v1311 = vpack.c.b16 %v1287, %v1285
      %v1312 = vpack.c.b16 %v1290, %v1288
      %v1313 = vpack.c.b16 %v1291, %v1289
      %v1314 = vpack.c.b16 %v1292, %v1292
      %v1315 = vpack.c.b16 %v1293, %v1293
      %vm1336 = vcmask 277504
      %v1338 = vsel %vm1336, %v1229, 0
      %vm1340 = vcmask 1040384
      %v1342 = vsel %vm1340, %v1314, 0
      %v1345 = vsel %vm1340, %v1315, 0
      %1347 = vmatprep.subr.bf16.mxu0 %v1309
      %1348 = vmatpush1.bf16.msra.mxu0 %v1308
      %1349 = vmatprep.subr.bf16.mxu0 %v1307
      %1350 = vmatpush1.bf16.msra.mxu0 %v1306
      %1351 = vmatprep.subr.bf16.mxu0 %v1305
      %1352 = vmatpush1.bf16.msra.mxu0 %v1304
      %1353 = vmatprep.subr.bf16.mxu0 %v1303
      %1354 = vmatpush1.bf16.msra.mxu0 %v1302
      %1355 = vmatprep.subr.bf16.mxu0 %v1301
      %1356 = vmatpush1.bf16.msra.mxu0 %v1300
      %1357 = vmatprep.subr.bf16.mxu0 %v1299
      %1358 = vmatpush1.bf16.msra.mxu0 %v1298
      %1359 = vmatprep.subr.bf16.mxu0 %v1297
      %1360 = vmatpush1.bf16.msra.mxu0 %v1296
      %1361 = vmatprep.subr.bf16.mxu0 %v1295
      %1362 = vmatpush1.bf16.msra.mxu0 %v1294
      %1363 = vmatprep.subr.bf16.mxu0 0
      %1364 = vmatpush2.bf16.msra.mxu0 0
      %1365 = vmatprep.subr.bf16.mxu0 0
      %1366 = vmatpush2.bf16.msra.mxu0 0
      %1367 = vmatprep.subr.bf16.mxu0 0
      %1368 = vmatpush2.bf16.msra.mxu0 0
      %1369 = vmatprep.subr.bf16.mxu0 0
      %1370 = vmatpush2.bf16.msra.mxu0 0
      %1371 = vmatprep.subr.bf16.mxu0 0
      %1372 = vmatpush2.bf16.msra.mxu0 0
      %1373 = vmatprep.subr.bf16.mxu0 %v1345
      %1374 = vmatpush2.bf16.msra.mxu0 %v1342
      %1375 = vmatprep.subr.bf16.mxu0 %v1313
      %1376 = vmatpush2.bf16.msra.mxu0 %v1312
      %1377 = vmatprep.subr.bf16.mxu0 %v1311
      %1378 = vmatpush2.bf16.msra.mxu0 %v1310
      %1379 = vmatprep.mubr.bf16.mxu0 %v1338
      %1380 = vmatmul.mubr.bf16.gmra.mxu0 %v1222
      %v1381 = vpop.f32.mrf.mxu0
      %v1382 = vadd.f32 0.0, %v1381
      %v1383 = vpop.f32.mrf.mxu0
      %v1384 = vadd.f32 0.0, %v1383
      %v1385 = vpop.f32.mrf.mxu0
      %v1386 = vadd.f32 0.0, %v1385
      %v1387 = vpop.f32.mrf.mxu0
      %v1388 = vadd.f32 0.0, %v1387
      %1389 = vdwg.mxu0
      %v1411 = vunpack.c.l.b16 %v1173
      %v1412 = vunpack.c.h.b16 %v1173
      %v1413 = vunpack.c.l.b16 %v1174
      %v1414 = vunpack.c.h.b16 %v1174
      %v1415 = vunpack.c.l.b16 %v1175
      %v1416 = vunpack.c.h.b16 %v1175
      %v1417 = vunpack.c.l.b16 %v1176
      %v1418 = vunpack.c.h.b16 %v1176
      %v1419 = vunpack.c.l.b16 %v1177
      %v1420 = vunpack.c.h.b16 %v1177
      %v1421 = vunpack.c.l.b16 %v1178
      %v1422 = vunpack.c.h.b16 %v1178
      %v1423 = vunpack.c.l.b16 %v1179
      %v1424 = vunpack.c.h.b16 %v1179
      %v1425 = vunpack.c.l.b16 %v1180
      %v1426 = vunpack.c.h.b16 %v1180
      %v1427 = vunpack.c.l.b16 %v1181
      %v1428 = vunpack.c.h.b16 %v1181
      %v1429 = vunpack.c.l.b16 %v1182
      %v1430 = vunpack.c.h.b16 %v1182
      %v1431 = vunpack.c.l.b16 %v1183
      %v1432 = vunpack.c.h.b16 %v1183
      %v1433 = vunpack.c.l.b16 %v1184
      %v1434 = vunpack.c.h.b16 %v1184
      %v1435 = vunpack.c.l.b16 %v1185
      %v1436 = vunpack.c.h.b16 %v1185
      %v1437 = vunpack.c.l.b16 %v1186
      %v1438 = vunpack.c.h.b16 %v1186
      %v1439 = vunpack.c.l.b16 %v1187
      %v1440 = vunpack.c.h.b16 %v1187
      %v1441 = vunpack.c.l.b16 %v1188
      %v1442 = vunpack.c.h.b16 %v1188
      %v1443 = vunpack.c.l.b16 %v1189
      %v1444 = vunpack.c.h.b16 %v1189
      %v1445 = vunpack.c.l.b16 %v1190
      %v1446 = vunpack.c.h.b16 %v1190
      %v1447 = vunpack.c.l.b16 %v1191
      %v1448 = vunpack.c.h.b16 %v1191
      %v1449 = vunpack.c.l.b16 %v1192
      %v1450 = vunpack.c.h.b16 %v1192
      %v1451 = vunpack.c.l.b16 %v1193
      %v1452 = vunpack.c.h.b16 %v1193
      %v1453 = vpack.c.b16 %v1413, %v1411
      %v1454 = vpack.c.b16 %v1414, %v1412
      %v1455 = vpack.c.b16 %v1417, %v1415
      %v1456 = vpack.c.b16 %v1418, %v1416
      %v1457 = vpack.c.b16 %v1421, %v1419
      %v1458 = vpack.c.b16 %v1422, %v1420
      %v1459 = vpack.c.b16 %v1425, %v1423
      %v1460 = vpack.c.b16 %v1426, %v1424
      %v1461 = vpack.c.b16 %v1429, %v1427
      %v1462 = vpack.c.b16 %v1430, %v1428
      %v1463 = vpack.c.b16 %v1433, %v1431
      %v1464 = vpack.c.b16 %v1434, %v1432
      %v1465 = vpack.c.b16 %v1437, %v1435
      %v1466 = vpack.c.b16 %v1438, %v1436
      %v1467 = vpack.c.b16 %v1441, %v1439
      %v1468 = vpack.c.b16 %v1442, %v1440
      %v1469 = vpack.c.b16 %v1445, %v1443
      %v1470 = vpack.c.b16 %v1446, %v1444
      %v1471 = vpack.c.b16 %v1449, %v1447
      %v1472 = vpack.c.b16 %v1450, %v1448
      %v1473 = vpack.c.b16 %v1451, %v1451
      %v1474 = vpack.c.b16 %v1452, %v1452
      %v1495 = vsel %vm1336, %v1172, 0
      %v1498 = vsel %vm1340, %v1473, 0
      %v1501 = vsel %vm1340, %v1474, 0
      %1503 = vmatprep.subr.bf16.mxu0 %v1468
      %1504 = vmatpush1.bf16.msra.mxu0 %v1467
      %1505 = vmatprep.subr.bf16.mxu0 %v1466
      %1506 = vmatpush1.bf16.msra.mxu0 %v1465
      %1507 = vmatprep.subr.bf16.mxu0 %v1464
      %1508 = vmatpush1.bf16.msra.mxu0 %v1463
      %1509 = vmatprep.subr.bf16.mxu0 %v1462
      %1510 = vmatpush1.bf16.msra.mxu0 %v1461
      %1511 = vmatprep.subr.bf16.mxu0 %v1460
      %1512 = vmatpush1.bf16.msra.mxu0 %v1459
      %1513 = vmatprep.subr.bf16.mxu0 %v1458
      %1514 = vmatpush1.bf16.msra.mxu0 %v1457
      %1515 = vmatprep.subr.bf16.mxu0 %v1456
      %1516 = vmatpush1.bf16.msra.mxu0 %v1455
      %1517 = vmatprep.subr.bf16.mxu0 %v1454
      %1518 = vmatpush1.bf16.msra.mxu0 %v1453
      %1519 = vmatprep.subr.bf16.mxu0 0
      %1520 = vmatpush2.bf16.msra.mxu0 0
      %1521 = vmatprep.subr.bf16.mxu0 0
      %1522 = vmatpush2.bf16.msra.mxu0 0
      %1523 = vmatprep.subr.bf16.mxu0 0
      %1524 = vmatpush2.bf16.msra.mxu0 0
      %1525 = vmatprep.subr.bf16.mxu0 0
      %1526 = vmatpush2.bf16.msra.mxu0 0
      %1527 = vmatprep.subr.bf16.mxu0 0
      %1528 = vmatpush2.bf16.msra.mxu0 0
      %1529 = vmatprep.subr.bf16.mxu0 %v1501
      %1530 = vmatpush2.bf16.msra.mxu0 %v1498
      %1531 = vmatprep.subr.bf16.mxu0 %v1472
      %1532 = vmatpush2.bf16.msra.mxu0 %v1471
      %1533 = vmatprep.subr.bf16.mxu0 %v1470
      %1534 = vmatpush2.bf16.msra.mxu0 %v1469
      %1535 = vmatprep.mubr.bf16.mxu0 %v1495
      %1536 = vmatmul.mubr.bf16.gmra.mxu0 %v1171
      %v1537 = vpop.f32.mrf.mxu0
      %v1538 = vadd.f32 %v1382, %v1537
      %v1539 = vpop.f32.mrf.mxu0
      %v1540 = vadd.f32 %v1384, %v1539
      %v1541 = vpop.f32.mrf.mxu0
      %v1542 = vadd.f32 %v1386, %v1541
      %v1543 = vpop.f32.mrf.mxu0
      %v1544 = vadd.f32 %v1388, %v1543
      %1545 = vdwg.mxu0
      %s1546 = scalar_lea.vmem %s5, 336
      %v1547 = vld [vmem:[%s1546] sm:$0xff]
      %v1548 = vld [vmem:[%s1546 + $0x8] sm:$0xff]
      %v1549 = vld [vmem:[%s1546 + $0x10] sm:$0xff]
      %v1550 = vld [vmem:[%s1546 + $0x18] sm:$0xff]
      %v1551 = vld [vmem:[%s1546 + $0x20] sm:$0xff]
      %v1552 = vld [vmem:[%s1546 + $0x28] sm:$0xff]
      %v1553 = vld [vmem:[%s1546 + $0x30] sm:$0xff]
      %v1554 = vld [vmem:[%s1546 + $0x38] sm:$0xff]
      %v1555 = vld [vmem:[%s1546 + $0x40] sm:$0xff]
      %v1556 = vld [vmem:[%s1546 + $0x48] sm:$0xff]
      %v1557 = vld [vmem:[%s1546 + $0x50] sm:$0xff]
      %v1558 = vld [vmem:[%s1546 + $0x58] sm:$0xff]
      %v1559 = vld [vmem:[%s1546 + $0x60] sm:$0xff]
      %v1560 = vld [vmem:[%s1546 + $0x68] sm:$0xff]
      %v1561 = vld [vmem:[%s1546 + $0x70] sm:$0xff]
      %v1562 = vld [vmem:[%s1546 + $0x78] sm:$0xff]
      %v1563 = vld [vmem:[%s1546 + $0x80] sm:$0xff]
      %v1564 = vld [vmem:[%s1546 + $0x88] sm:$0xff]
      %v1565 = vld [vmem:[%s1546 + $0x90] sm:$0xff]
      %v1566 = vld [vmem:[%s1546 + $0x98] sm:$0xff]
      %v1567 = vld [vmem:[%s1546 + $0xa0] sm:$0x11]
      %v1570 = vrot.slane %v1171, 1
      %v1571 = vrot.slane %v1172, 1
      %v1594 = vunpack.c.l.b16 %v1547
      %v1595 = vunpack.c.h.b16 %v1547
      %v1596 = vunpack.c.l.b16 %v1548
      %v1597 = vunpack.c.h.b16 %v1548
      %v1598 = vunpack.c.l.b16 %v1549
      %v1599 = vunpack.c.h.b16 %v1549
      %v1600 = vunpack.c.l.b16 %v1550
      %v1601 = vunpack.c.h.b16 %v1550
      %v1602 = vunpack.c.l.b16 %v1551
      %v1603 = vunpack.c.h.b16 %v1551
      %v1604 = vunpack.c.l.b16 %v1552
      %v1605 = vunpack.c.h.b16 %v1552
      %v1606 = vunpack.c.l.b16 %v1553
      %v1607 = vunpack.c.h.b16 %v1553
      %v1608 = vunpack.c.l.b16 %v1554
      %v1609 = vunpack.c.h.b16 %v1554
      %v1610 = vunpack.c.l.b16 %v1555
      %v1611 = vunpack.c.h.b16 %v1555
      %v1612 = vunpack.c.l.b16 %v1556
      %v1613 = vunpack.c.h.b16 %v1556
      %v1614 = vunpack.c.l.b16 %v1557
      %v1615 = vunpack.c.h.b16 %v1557
      %v1616 = vunpack.c.l.b16 %v1558
      %v1617 = vunpack.c.h.b16 %v1558
      %v1618 = vunpack.c.l.b16 %v1559
      %v1619 = vunpack.c.h.b16 %v1559
      %v1620 = vunpack.c.l.b16 %v1560
      %v1621 = vunpack.c.h.b16 %v1560
      %v1622 = vunpack.c.l.b16 %v1561
      %v1623 = vunpack.c.h.b16 %v1561
      %v1624 = vunpack.c.l.b16 %v1562
      %v1625 = vunpack.c.h.b16 %v1562
      %v1626 = vunpack.c.l.b16 %v1563
      %v1627 = vunpack.c.h.b16 %v1563
      %v1628 = vunpack.c.l.b16 %v1564
      %v1629 = vunpack.c.h.b16 %v1564
      %v1630 = vunpack.c.l.b16 %v1565
      %v1631 = vunpack.c.h.b16 %v1565
      %v1632 = vunpack.c.l.b16 %v1566
      %v1633 = vunpack.c.h.b16 %v1566
      %v1634 = vunpack.c.l.b16 %v1567
      %v1635 = vunpack.c.h.b16 %v1567
      %v1636 = vpack.c.b16 %v1596, %v1594
      %v1637 = vpack.c.b16 %v1597, %v1595
      %v1638 = vpack.c.b16 %v1600, %v1598
      %v1639 = vpack.c.b16 %v1601, %v1599
      %v1640 = vpack.c.b16 %v1604, %v1602
      %v1641 = vpack.c.b16 %v1605, %v1603
      %v1642 = vpack.c.b16 %v1608, %v1606
      %v1643 = vpack.c.b16 %v1609, %v1607
      %v1644 = vpack.c.b16 %v1612, %v1610
      %v1645 = vpack.c.b16 %v1613, %v1611
      %v1646 = vpack.c.b16 %v1616, %v1614
      %v1647 = vpack.c.b16 %v1617, %v1615
      %v1648 = vpack.c.b16 %v1620, %v1618
      %v1649 = vpack.c.b16 %v1621, %v1619
      %v1650 = vpack.c.b16 %v1624, %v1622
      %v1651 = vpack.c.b16 %v1625, %v1623
      %v1652 = vpack.c.b16 %v1628, %v1626
      %v1653 = vpack.c.b16 %v1629, %v1627
      %v1654 = vpack.c.b16 %v1632, %v1630
      %v1655 = vpack.c.b16 %v1633, %v1631
      %v1656 = vpack.c.b16 %v1634, %v1634
      %v1657 = vpack.c.b16 %v1635, %v1635
      %v1679 = vsel %vm1336, %v1571, 0
      %v1682 = vsel %vm1340, %v1656, 0
      %v1685 = vsel %vm1340, %v1657, 0
      %1687 = vmatprep.subr.bf16.mxu0 %v1651
      %1688 = vmatpush1.bf16.msra.mxu0 %v1650
      %1689 = vmatprep.subr.bf16.mxu0 %v1649
      %1690 = vmatpush1.bf16.msra.mxu0 %v1648
      %1691 = vmatprep.subr.bf16.mxu0 %v1647
      %1692 = vmatpush1.bf16.msra.mxu0 %v1646
      %1693 = vmatprep.subr.bf16.mxu0 %v1645
      %1694 = vmatpush1.bf16.msra.mxu0 %v1644
      %1695 = vmatprep.subr.bf16.mxu0 %v1643
      %1696 = vmatpush1.bf16.msra.mxu0 %v1642
      %1697 = vmatprep.subr.bf16.mxu0 %v1641
      %1698 = vmatpush1.bf16.msra.mxu0 %v1640
      %1699 = vmatprep.subr.bf16.mxu0 %v1639
      %1700 = vmatpush1.bf16.msra.mxu0 %v1638
      %1701 = vmatprep.subr.bf16.mxu0 %v1637
      %1702 = vmatpush1.bf16.msra.mxu0 %v1636
      %1703 = vmatprep.subr.bf16.mxu0 0
      %1704 = vmatpush2.bf16.msra.mxu0 0
      %1705 = vmatprep.subr.bf16.mxu0 0
      %1706 = vmatpush2.bf16.msra.mxu0 0
      %1707 = vmatprep.subr.bf16.mxu0 0
      %1708 = vmatpush2.bf16.msra.mxu0 0
      %1709 = vmatprep.subr.bf16.mxu0 0
      %1710 = vmatpush2.bf16.msra.mxu0 0
      %1711 = vmatprep.subr.bf16.mxu0 0
      %1712 = vmatpush2.bf16.msra.mxu0 0
      %1713 = vmatprep.subr.bf16.mxu0 %v1685
      %1714 = vmatpush2.bf16.msra.mxu0 %v1682
      %1715 = vmatprep.subr.bf16.mxu0 %v1655
      %1716 = vmatpush2.bf16.msra.mxu0 %v1654
      %1717 = vmatprep.subr.bf16.mxu0 %v1653
      %1718 = vmatpush2.bf16.msra.mxu0 %v1652
      %1719 = vmatprep.mubr.bf16.mxu0 %v1679
      %1720 = vmatmul.mubr.bf16.gmra.mxu0 %v1570
      %v1721 = vpop.f32.mrf.mxu0
      %v1722 = vadd.f32 0.0, %v1721
      %v1723 = vpop.f32.mrf.mxu0
      %v1724 = vadd.f32 0.0, %v1723
      %v1725 = vpop.f32.mrf.mxu0
      %v1726 = vadd.f32 0.0, %v1725
      %v1727 = vpop.f32.mrf.mxu0
      %v1728 = vadd.f32 0.0, %v1727
      %1729 = vdwg.mxu0
      %v1730 = vadd.f32 %v1538, %v1722
      %v1731 = vadd.f32 %v1540, %v1724
      %v1732 = vadd.f32 %v1542, %v1726
      %v1733 = vadd.f32 %v1544, %v1728
      %s1734 = scalar_lea.vmem %s5, 504
      %v1735 = vld [vmem:[%s1734] sm:$0xff]
      %v1736 = vld [vmem:[%s1734 + $0x8] sm:$0xff]
      %v1737 = vld [vmem:[%s1734 + $0x10] sm:$0xff]
      %v1738 = vld [vmem:[%s1734 + $0x18] sm:$0xff]
      %v1739 = vld [vmem:[%s1734 + $0x20] sm:$0xff]
      %v1740 = vld [vmem:[%s1734 + $0x28] sm:$0xff]
      %v1741 = vld [vmem:[%s1734 + $0x30] sm:$0xff]
      %v1742 = vld [vmem:[%s1734 + $0x38] sm:$0xff]
      %v1743 = vld [vmem:[%s1734 + $0x40] sm:$0xff]
      %v1744 = vld [vmem:[%s1734 + $0x48] sm:$0xff]
      %v1745 = vld [vmem:[%s1734 + $0x50] sm:$0xff]
      %v1746 = vld [vmem:[%s1734 + $0x58] sm:$0xff]
      %v1747 = vld [vmem:[%s1734 + $0x60] sm:$0xff]
      %v1748 = vld [vmem:[%s1734 + $0x68] sm:$0xff]
      %v1749 = vld [vmem:[%s1734 + $0x70] sm:$0xff]
      %v1750 = vld [vmem:[%s1734 + $0x78] sm:$0xff]
      %v1751 = vld [vmem:[%s1734 + $0x80] sm:$0xff]
      %v1752 = vld [vmem:[%s1734 + $0x88] sm:$0xff]
      %v1753 = vld [vmem:[%s1734 + $0x90] sm:$0xff]
      %v1754 = vld [vmem:[%s1734 + $0x98] sm:$0xff]
      %v1755 = vld [vmem:[%s1734 + $0xa0] sm:$0x11]
      %v1756 = vrot.slane %v1217, 1
      %v1757 = vrot.slane %v1219, 2
      %v1758 = vor.u32 %v1756, %v1757
      %v1759 = vrot.slane %v1224, 1
      %v1760 = vrot.slane %v1226, 2
      %v1761 = vor.u32 %v1759, %v1760
      %v1784 = vunpack.c.l.b16 %v1735
      %v1785 = vunpack.c.h.b16 %v1735
      %v1786 = vunpack.c.l.b16 %v1736
      %v1787 = vunpack.c.h.b16 %v1736
      %v1788 = vunpack.c.l.b16 %v1737
      %v1789 = vunpack.c.h.b16 %v1737
      %v1790 = vunpack.c.l.b16 %v1738
      %v1791 = vunpack.c.h.b16 %v1738
      %v1792 = vunpack.c.l.b16 %v1739
      %v1793 = vunpack.c.h.b16 %v1739
      %v1794 = vunpack.c.l.b16 %v1740
      %v1795 = vunpack.c.h.b16 %v1740
      %v1796 = vunpack.c.l.b16 %v1741
      %v1797 = vunpack.c.h.b16 %v1741
      %v1798 = vunpack.c.l.b16 %v1742
      %v1799 = vunpack.c.h.b16 %v1742
      %v1800 = vunpack.c.l.b16 %v1743
      %v1801 = vunpack.c.h.b16 %v1743
      %v1802 = vunpack.c.l.b16 %v1744
      %v1803 = vunpack.c.h.b16 %v1744
      %v1804 = vunpack.c.l.b16 %v1745
      %v1805 = vunpack.c.h.b16 %v1745
      %v1806 = vunpack.c.l.b16 %v1746
      %v1807 = vunpack.c.h.b16 %v1746
      %v1808 = vunpack.c.l.b16 %v1747
      %v1809 = vunpack.c.h.b16 %v1747
      %v1810 = vunpack.c.l.b16 %v1748
      %v1811 = vunpack.c.h.b16 %v1748
      %v1812 = vunpack.c.l.b16 %v1749
      %v1813 = vunpack.c.h.b16 %v1749
      %v1814 = vunpack.c.l.b16 %v1750
      %v1815 = vunpack.c.h.b16 %v1750
      %v1816 = vunpack.c.l.b16 %v1751
      %v1817 = vunpack.c.h.b16 %v1751
      %v1818 = vunpack.c.l.b16 %v1752
      %v1819 = vunpack.c.h.b16 %v1752
      %v1820 = vunpack.c.l.b16 %v1753
      %v1821 = vunpack.c.h.b16 %v1753
      %v1822 = vunpack.c.l.b16 %v1754
      %v1823 = vunpack.c.h.b16 %v1754
      %v1824 = vunpack.c.l.b16 %v1755
      %v1825 = vunpack.c.h.b16 %v1755
      %v1826 = vpack.c.b16 %v1786, %v1784
      %v1827 = vpack.c.b16 %v1787, %v1785
      %v1828 = vpack.c.b16 %v1790, %v1788
      %v1829 = vpack.c.b16 %v1791, %v1789
      %v1830 = vpack.c.b16 %v1794, %v1792
      %v1831 = vpack.c.b16 %v1795, %v1793
      %v1832 = vpack.c.b16 %v1798, %v1796
      %v1833 = vpack.c.b16 %v1799, %v1797
      %v1834 = vpack.c.b16 %v1802, %v1800
      %v1835 = vpack.c.b16 %v1803, %v1801
      %v1836 = vpack.c.b16 %v1806, %v1804
      %v1837 = vpack.c.b16 %v1807, %v1805
      %v1838 = vpack.c.b16 %v1810, %v1808
      %v1839 = vpack.c.b16 %v1811, %v1809
      %v1840 = vpack.c.b16 %v1814, %v1812
      %v1841 = vpack.c.b16 %v1815, %v1813
      %v1842 = vpack.c.b16 %v1818, %v1816
      %v1843 = vpack.c.b16 %v1819, %v1817
      %v1844 = vpack.c.b16 %v1822, %v1820
      %v1845 = vpack.c.b16 %v1823, %v1821
      %v1846 = vpack.c.b16 %v1824, %v1824
      %v1847 = vpack.c.b16 %v1825, %v1825
      %v1869 = vsel %vm1336, %v1761, 0
      %v1872 = vsel %vm1340, %v1846, 0
      %v1875 = vsel %vm1340, %v1847, 0
      %1877 = vmatprep.subr.bf16.mxu0 %v1841
      %1878 = vmatpush1.bf16.msra.mxu0 %v1840
      %1879 = vmatprep.subr.bf16.mxu0 %v1839
      %1880 = vmatpush1.bf16.msra.mxu0 %v1838
      %1881 = vmatprep.subr.bf16.mxu0 %v1837
      %1882 = vmatpush1.bf16.msra.mxu0 %v1836
      %1883 = vmatprep.subr.bf16.mxu0 %v1835
      %1884 = vmatpush1.bf16.msra.mxu0 %v1834
      %1885 = vmatprep.subr.bf16.mxu0 %v1833
      %1886 = vmatpush1.bf16.msra.mxu0 %v1832
      %1887 = vmatprep.subr.bf16.mxu0 %v1831
      %1888 = vmatpush1.bf16.msra.mxu0 %v1830
      %1889 = vmatprep.subr.bf16.mxu0 %v1829
      %1890 = vmatpush1.bf16.msra.mxu0 %v1828
      %1891 = vmatprep.subr.bf16.mxu0 %v1827
      %1892 = vmatpush1.bf16.msra.mxu0 %v1826
      %1893 = vmatprep.subr.bf16.mxu0 0
      %1894 = vmatpush2.bf16.msra.mxu0 0
      %1895 = vmatprep.subr.bf16.mxu0 0
      %1896 = vmatpush2.bf16.msra.mxu0 0
      %1897 = vmatprep.subr.bf16.mxu0 0
      %1898 = vmatpush2.bf16.msra.mxu0 0
      %1899 = vmatprep.subr.bf16.mxu0 0
      %1900 = vmatpush2.bf16.msra.mxu0 0
      %1901 = vmatprep.subr.bf16.mxu0 0
      %1902 = vmatpush2.bf16.msra.mxu0 0
      %1903 = vmatprep.subr.bf16.mxu0 %v1875
      %1904 = vmatpush2.bf16.msra.mxu0 %v1872
      %1905 = vmatprep.subr.bf16.mxu0 %v1845
      %1906 = vmatpush2.bf16.msra.mxu0 %v1844
      %1907 = vmatprep.subr.bf16.mxu0 %v1843
      %1908 = vmatpush2.bf16.msra.mxu0 %v1842
      %1909 = vmatprep.mubr.bf16.mxu0 %v1869
      %1910 = vmatmul.mubr.bf16.gmra.mxu0 %v1758
      %v1911 = vpop.f32.mrf.mxu0
      %v1912 = vadd.f32 0.0, %v1911
      %v1913 = vpop.f32.mrf.mxu0
      %v1914 = vadd.f32 0.0, %v1913
      %v1915 = vpop.f32.mrf.mxu0
      %v1916 = vadd.f32 0.0, %v1915
      %v1917 = vpop.f32.mrf.mxu0
      %v1918 = vadd.f32 0.0, %v1917
      %1919 = vdwg.mxu0
      %v1920 = vadd.f32 %v1730, %v1912
      %v1921 = vadd.f32 %v1731, %v1914
      %v1922 = vadd.f32 %v1732, %v1916
      %v1923 = vadd.f32 %v1733, %v1918
      %s1924 = scalar_lea.vmem %s5, 672
      %v1925 = vld [vmem:[%s1924] sm:$0xff]
      %v1926 = vld [vmem:[%s1924 + $0x8] sm:$0xff]
      %v1927 = vld [vmem:[%s1924 + $0x10] sm:$0xff]
      %v1928 = vld [vmem:[%s1924 + $0x18] sm:$0xff]
      %v1929 = vld [vmem:[%s1924 + $0x20] sm:$0xff]
      %v1930 = vld [vmem:[%s1924 + $0x28] sm:$0xff]
      %v1931 = vld [vmem:[%s1924 + $0x30] sm:$0xff]
      %v1932 = vld [vmem:[%s1924 + $0x38] sm:$0xff]
      %v1933 = vld [vmem:[%s1924 + $0x40] sm:$0xff]
      %v1934 = vld [vmem:[%s1924 + $0x48] sm:$0xff]
      %v1935 = vld [vmem:[%s1924 + $0x50] sm:$0xff]
      %v1936 = vld [vmem:[%s1924 + $0x58] sm:$0xff]
      %v1937 = vld [vmem:[%s1924 + $0x60] sm:$0xff]
      %v1938 = vld [vmem:[%s1924 + $0x68] sm:$0xff]
      %v1939 = vld [vmem:[%s1924 + $0x70] sm:$0xff]
      %v1940 = vld [vmem:[%s1924 + $0x78] sm:$0xff]
      %v1941 = vld [vmem:[%s1924 + $0x80] sm:$0xff]
      %v1942 = vld [vmem:[%s1924 + $0x88] sm:$0xff]
      %v1943 = vld [vmem:[%s1924 + $0x90] sm:$0xff]
      %v1944 = vld [vmem:[%s1924 + $0x98] sm:$0xff]
      %v1945 = vld [vmem:[%s1924 + $0xa0] sm:$0x11]
      %v1946 = vrot.slane %v1171, 2
      %v1947 = vrot.slane %v1172, 2
      %v1970 = vunpack.c.l.b16 %v1925
      %v1971 = vunpack.c.h.b16 %v1925
      %v1972 = vunpack.c.l.b16 %v1926
      %v1973 = vunpack.c.h.b16 %v1926
      %v1974 = vunpack.c.l.b16 %v1927
      %v1975 = vunpack.c.h.b16 %v1927
      %v1976 = vunpack.c.l.b16 %v1928
      %v1977 = vunpack.c.h.b16 %v1928
      %v1978 = vunpack.c.l.b16 %v1929
      %v1979 = vunpack.c.h.b16 %v1929
      %v1980 = vunpack.c.l.b16 %v1930
      %v1981 = vunpack.c.h.b16 %v1930
      %v1982 = vunpack.c.l.b16 %v1931
      %v1983 = vunpack.c.h.b16 %v1931
      %v1984 = vunpack.c.l.b16 %v1932
      %v1985 = vunpack.c.h.b16 %v1932
      %v1986 = vunpack.c.l.b16 %v1933
      %v1987 = vunpack.c.h.b16 %v1933
      %v1988 = vunpack.c.l.b16 %v1934
      %v1989 = vunpack.c.h.b16 %v1934
      %v1990 = vunpack.c.l.b16 %v1935
      %v1991 = vunpack.c.h.b16 %v1935
      %v1992 = vunpack.c.l.b16 %v1936
      %v1993 = vunpack.c.h.b16 %v1936
      %v1994 = vunpack.c.l.b16 %v1937
      %v1995 = vunpack.c.h.b16 %v1937
      %v1996 = vunpack.c.l.b16 %v1938
      %v1997 = vunpack.c.h.b16 %v1938
      %v1998 = vunpack.c.l.b16 %v1939
      %v1999 = vunpack.c.h.b16 %v1939
      %v2000 = vunpack.c.l.b16 %v1940
      %v2001 = vunpack.c.h.b16 %v1940
      %v2002 = vunpack.c.l.b16 %v1941
      %v2003 = vunpack.c.h.b16 %v1941
      %v2004 = vunpack.c.l.b16 %v1942
      %v2005 = vunpack.c.h.b16 %v1942
      %v2006 = vunpack.c.l.b16 %v1943
      %v2007 = vunpack.c.h.b16 %v1943
      %v2008 = vunpack.c.l.b16 %v1944
      %v2009 = vunpack.c.h.b16 %v1944
      %v2010 = vunpack.c.l.b16 %v1945
      %v2011 = vunpack.c.h.b16 %v1945
      %v2012 = vpack.c.b16 %v1972, %v1970
      %v2013 = vpack.c.b16 %v1973, %v1971
      %v2014 = vpack.c.b16 %v1976, %v1974
      %v2015 = vpack.c.b16 %v1977, %v1975
      %v2016 = vpack.c.b16 %v1980, %v1978
      %v2017 = vpack.c.b16 %v1981, %v1979
      %v2018 = vpack.c.b16 %v1984, %v1982
      %v2019 = vpack.c.b16 %v1985, %v1983
      %v2020 = vpack.c.b16 %v1988, %v1986
      %v2021 = vpack.c.b16 %v1989, %v1987
      %v2022 = vpack.c.b16 %v1992, %v1990
      %v2023 = vpack.c.b16 %v1993, %v1991
      %v2024 = vpack.c.b16 %v1996, %v1994
      %v2025 = vpack.c.b16 %v1997, %v1995
      %v2026 = vpack.c.b16 %v2000, %v1998
      %v2027 = vpack.c.b16 %v2001, %v1999
      %v2028 = vpack.c.b16 %v2004, %v2002
      %v2029 = vpack.c.b16 %v2005, %v2003
      %v2030 = vpack.c.b16 %v2008, %v2006
      %v2031 = vpack.c.b16 %v2009, %v2007
      %v2032 = vpack.c.b16 %v2010, %v2010
      %v2033 = vpack.c.b16 %v2011, %v2011
      %v2055 = vsel %vm1336, %v1947, 0
      %v2058 = vsel %vm1340, %v2032, 0
      %v2061 = vsel %vm1340, %v2033, 0
      %2063 = vmatprep.subr.bf16.mxu0 %v2027
      %2064 = vmatpush1.bf16.msra.mxu0 %v2026
      %2065 = vmatprep.subr.bf16.mxu0 %v2025
      %2066 = vmatpush1.bf16.msra.mxu0 %v2024
      %2067 = vmatprep.subr.bf16.mxu0 %v2023
      %2068 = vmatpush1.bf16.msra.mxu0 %v2022
      %2069 = vmatprep.subr.bf16.mxu0 %v2021
      %2070 = vmatpush1.bf16.msra.mxu0 %v2020
      %2071 = vmatprep.subr.bf16.mxu0 %v2019
      %2072 = vmatpush1.bf16.msra.mxu0 %v2018
      %2073 = vmatprep.subr.bf16.mxu0 %v2017
      %2074 = vmatpush1.bf16.msra.mxu0 %v2016
      %2075 = vmatprep.subr.bf16.mxu0 %v2015
      %2076 = vmatpush1.bf16.msra.mxu0 %v2014
      %2077 = vmatprep.subr.bf16.mxu0 %v2013
      %2078 = vmatpush1.bf16.msra.mxu0 %v2012
      %2079 = vmatprep.subr.bf16.mxu0 0
      %2080 = vmatpush2.bf16.msra.mxu0 0
      %2081 = vmatprep.subr.bf16.mxu0 0
      %2082 = vmatpush2.bf16.msra.mxu0 0
      %2083 = vmatprep.subr.bf16.mxu0 0
      %2084 = vmatpush2.bf16.msra.mxu0 0
      %2085 = vmatprep.subr.bf16.mxu0 0
      %2086 = vmatpush2.bf16.msra.mxu0 0
      %2087 = vmatprep.subr.bf16.mxu0 0
      %2088 = vmatpush2.bf16.msra.mxu0 0
      %2089 = vmatprep.subr.bf16.mxu0 %v2061
      %2090 = vmatpush2.bf16.msra.mxu0 %v2058
      %2091 = vmatprep.subr.bf16.mxu0 %v2031
      %2092 = vmatpush2.bf16.msra.mxu0 %v2030
      %2093 = vmatprep.subr.bf16.mxu0 %v2029
      %2094 = vmatpush2.bf16.msra.mxu0 %v2028
      %2095 = vmatprep.mubr.bf16.mxu0 %v2055
      %2096 = vmatmul.mubr.bf16.gmra.mxu0 %v1946
      %v2097 = vpop.f32.mrf.mxu0
      %v2098 = vadd.f32 0.0, %v2097
      %v2099 = vpop.f32.mrf.mxu0
      %v2100 = vadd.f32 0.0, %v2099
      %v2101 = vpop.f32.mrf.mxu0
      %v2102 = vadd.f32 0.0, %v2101
      %v2103 = vpop.f32.mrf.mxu0
      %v2104 = vadd.f32 0.0, %v2103
      %2105 = vdwg.mxu0
      %v2106 = vadd.f32 %v1920, %v2098
      %v2107 = vadd.f32 %v1921, %v2100
      %v2108 = vadd.f32 %v1922, %v2102
      %v2109 = vadd.f32 %v1923, %v2104
      %v2110 = vld [vmem:[%s6] sm:$0x3]
      %v2112 = vlaneseq
      %v2113 = vshrl.u32 %v2112, 7
      %v2114 = vsub.s32 0, %v2113
      %v2115 = vrot.slane %v2110, %v2114
      %v2116 = vlaneseq
      %v2117 = vshrl.u32 %v2116, 7
      %v2118 = vsub.s32 1, %v2117
      %v2119 = vrot.slane %v2110, %v2118
      %v2122 = vadd.f32 %v2106, %v2115
      %v2123 = vadd.f32 %v2107, %v2119
      %v2124 = vadd.f32 %v2108, %v2115
      %v2125 = vadd.f32 %v2109, %v2119
      %v2126 = vmax.f32 %v2122, 0.0
      %v2127 = vmax.f32 %v2123, 0.0
      %v2128 = vmax.f32 %v2124, 0.0
      %v2129 = vmax.f32 %v2125, 0.0
      %2134 = vrot.lane.b32.xlu0 %v2126, 112
      %v2135 = vpop.permute.xlu0 %2134
      %2136 = vrot.lane.b32.xlu0 %v2127, 112
      %v2137 = vpop.permute.xlu0 %2136
      %2138 = vrot.lane.b32.xlu0 %v2128, 112
      %v2139 = vpop.permute.xlu0 %2138
      %2140 = vrot.lane.b32.xlu0 %v2129, 112
      %v2141 = vpop.permute.xlu0 %2140
      %vm2142 = vcmask 916480
      %v2143 = vsel %vm2142, %v2135, %v2137
      %v2144 = vsel %vm2142, %v2139, %v2141
      %v2149 = vmax.f32 %v2126, %v2143
      %v2150 = vmax.f32 %v2127, %v2137
      %v2151 = vmax.f32 %v2128, %v2144
      %v2152 = vmax.f32 %v2129, %v2141
      %v2153 = vpack.c.bf16 %v2151, %v2149
      %v2154 = vpack.c.bf16 %v2152, %v2150
      %v2155 = vld [vmem:[%s7] sm:$0x7]
      %vm2156 = vcmask 80896
      %v2158 = vsel %vm2156, %v2155, 0
      %vm2160 = vcmask 1044480
      %v2162 = vsel %vm2160, %v2153, 0
      %v2165 = vsel %vm2160, %v2154, 0
      %2167 = vmatprep.subr.bf16.mxu0 0
      %2168 = vmatpush1.bf16.msra.mxu0 0
      %2169 = vmatprep.subr.bf16.mxu0 0
      %2170 = vmatpush1.bf16.msra.mxu0 0
      %2171 = vmatprep.subr.bf16.mxu0 0
      %2172 = vmatpush1.bf16.msra.mxu0 0
      %2173 = vmatprep.subr.bf16.mxu0 0
      %2174 = vmatpush1.bf16.msra.mxu0 0
      %2175 = vmatprep.subr.bf16.mxu0 0
      %2176 = vmatpush1.bf16.msra.mxu0 0
      %2177 = vmatprep.subr.bf16.mxu0 0
      %2178 = vmatpush1.bf16.msra.mxu0 0
      %2179 = vmatprep.subr.bf16.mxu0 0
      %2180 = vmatpush1.bf16.msra.mxu0 0
      %2181 = vmatprep.subr.bf16.mxu0 %v2165
      %2182 = vmatpush1.bf16.msra.mxu0 %v2162
      %2183 = vmatprep.subr.bf16.mxu0 0
      %2184 = vmatpush2.bf16.msra.mxu0 0
      %2185 = vmatprep.subr.bf16.mxu0 0
      %2186 = vmatpush2.bf16.msra.mxu0 0
      %2187 = vmatprep.subr.bf16.mxu0 0
      %2188 = vmatpush2.bf16.msra.mxu0 0
      %2189 = vmatprep.subr.bf16.mxu0 0
      %2190 = vmatpush2.bf16.msra.mxu0 0
      %2191 = vmatprep.subr.bf16.mxu0 0
      %2192 = vmatpush2.bf16.msra.mxu0 0
      %2193 = vmatprep.subr.bf16.mxu0 0
      %2194 = vmatpush2.bf16.msra.mxu0 0
      %2195 = vmatprep.subr.bf16.mxu0 0
      %2196 = vmatpush2.bf16.msra.mxu0 0
      %2197 = vmatprep.subr.bf16.mxu0 0
      %2198 = vmatpush2.bf16.msra.mxu0 0
      %2199 = vmatprep.mubr.bf16.mxu0 0
      %2200 = vmatmul.mubr.bf16.gmra.mxu0 %v2158
      %v2201 = vpop.f32.mrf.mxu0
      %v2202 = vadd.f32 0.0, %v2201
      %v2203 = vpop.f32.mrf.mxu0
      %v2204 = vadd.f32 0.0, %v2203
      %v2205 = vpop.f32.mrf.mxu0
      %v2206 = vpop.f32.mrf.mxu0
      %2207 = vdwg.mxu0
      %v2208 = vld [vmem:[%s8] sm:$0x7]
      %v2210 = vsel %vm2156, %v2208, 0
      %2212 = vmatprep.subr.bf16.mxu0 0
      %2213 = vmatpush1.bf16.msra.mxu0 0
      %2214 = vmatprep.subr.bf16.mxu0 0
      %2215 = vmatpush1.bf16.msra.mxu0 0
      %2216 = vmatprep.subr.bf16.mxu0 0
      %2217 = vmatpush1.bf16.msra.mxu0 0
      %2218 = vmatprep.subr.bf16.mxu0 0
      %2219 = vmatpush1.bf16.msra.mxu0 0
      %2220 = vmatprep.subr.bf16.mxu0 0
      %2221 = vmatpush1.bf16.msra.mxu0 0
      %2222 = vmatprep.subr.bf16.mxu0 0
      %2223 = vmatpush1.bf16.msra.mxu0 0
      %2224 = vmatprep.subr.bf16.mxu0 0
      %2225 = vmatpush1.bf16.msra.mxu0 0
      %2226 = vmatprep.subr.bf16.mxu0 %v2165
      %2227 = vmatpush1.bf16.msra.mxu0 %v2162
      %2228 = vmatprep.subr.bf16.mxu0 0
      %2229 = vmatpush2.bf16.msra.mxu0 0
      %2230 = vmatprep.subr.bf16.mxu0 0
      %2231 = vmatpush2.bf16.msra.mxu0 0
      %2232 = vmatprep.subr.bf16.mxu0 0
      %2233 = vmatpush2.bf16.msra.mxu0 0
      %2234 = vmatprep.subr.bf16.mxu0 0
      %2235 = vmatpush2.bf16.msra.mxu0 0
      %2236 = vmatprep.subr.bf16.mxu0 0
      %2237 = vmatpush2.bf16.msra.mxu0 0
      %2238 = vmatprep.subr.bf16.mxu0 0
      %2239 = vmatpush2.bf16.msra.mxu0 0
      %2240 = vmatprep.subr.bf16.mxu0 0
      %2241 = vmatpush2.bf16.msra.mxu0 0
      %2242 = vmatprep.subr.bf16.mxu0 0
      %2243 = vmatpush2.bf16.msra.mxu0 0
      %2244 = vmatprep.mubr.bf16.mxu0 0
      %2245 = vmatmul.mubr.bf16.gmra.mxu0 %v2210
      %v2246 = vpop.f32.mrf.mxu0
      %v2247 = vadd.f32 0.0, %v2246
      %v2248 = vpop.f32.mrf.mxu0
      %v2249 = vadd.f32 0.0, %v2248
      %v2250 = vpop.f32.mrf.mxu0
      %v2251 = vpop.f32.mrf.mxu0
      %2252 = vdwg.mxu0
      %v2253 = vmax.f32 %v2202, %v2247
      %v2254 = vmax.f32 %v2204, %v2249
      %v2255 = vpack.c.bf16 %v2253, %v2253
      %v2256 = vpack.c.bf16 %v2254, %v2254
      %v2257 = vld [vmem:[%s9] sm:$0xf]
      %v2258 = vld [vmem:[%s9 + $0x4] sm:$0xf]
      %v2259 = vld [vmem:[%s9 + $0x8] sm:$0xf]
      %v2260 = vld [vmem:[%s9 + $0xc] sm:$0xf]
      %v2261 = vld [vmem:[%s9 + $0x10] sm:$0xf]
      %v2262 = vld [vmem:[%s9 + $0x14] sm:$0xf]
      %v2263 = vld [vmem:[%s9 + $0x18] sm:$0xf]
      %v2264 = vld [vmem:[%s9 + $0x1c] sm:$0xf]
      %v2265 = vld [vmem:[%s9 + $0x20] sm:$0xf]
      %v2266 = vld [vmem:[%s9 + $0x24] sm:$0xf]
      %v2267 = vld [vmem:[%s9 + $0x28] sm:$0xf]
      %v2268 = vld [vmem:[%s9 + $0x2c] sm:$0xf]
      %v2269 = vld [vmem:[%s9 + $0x30] sm:$0xf]
      %v2270 = vld [vmem:[%s9 + $0x34] sm:$0xf]
      %v2271 = vld [vmem:[%s9 + $0x38] sm:$0xf]
      %v2272 = vld [vmem:[%s9 + $0x3c] sm:$0xf]
      %v2273 = vld [vmem:[%s9 + $0x40] sm:$0xf]
      %v2274 = vld [vmem:[%s9 + $0x44] sm:$0xf]
      %s2275 = scalar_lea.vmem %s9, 72
      %v2276 = vld [vmem:[%s2275] sm:$0xf]
      %v2277 = vld [vmem:[%s2275 + $0x4] sm:$0xf]
      %v2278 = vld [vmem:[%s2275 + $0x8] sm:$0xf]
      %v2279 = vld [vmem:[%s2275 + $0xc] sm:$0xf]
      %v2280 = vld [vmem:[%s2275 + $0x10] sm:$0xf]
      %v2281 = vld [vmem:[%s2275 + $0x14] sm:$0xf]
      %v2282 = vld [vmem:[%s2275 + $0x18] sm:$0xf]
      %v2283 = vld [vmem:[%s2275 + $0x1c] sm:$0xf]
      %v2284 = vld [vmem:[%s2275 + $0x20] sm:$0xf]
      %v2285 = vld [vmem:[%s2275 + $0x24] sm:$0xf]
      %v2286 = vld [vmem:[%s2275 + $0x28] sm:$0xf]
      %v2287 = vld [vmem:[%s2275 + $0x2c] sm:$0xf]
      %v2288 = vld [vmem:[%s2275 + $0x30] sm:$0xf]
      %v2289 = vld [vmem:[%s2275 + $0x34] sm:$0xf]
      %v2290 = vld [vmem:[%s2275 + $0x38] sm:$0xf]
      %v2291 = vld [vmem:[%s2275 + $0x3c] sm:$0xf]
      %v2292 = vld [vmem:[%s2275 + $0x40] sm:$0xf]
      %v2293 = vld [vmem:[%s2275 + $0x44] sm:$0xf]
      %v2295 = vshrl.u32 %v2255, 16
      %v2298 = vshrl.u32 %v2256, 16
      %v2319 = vunpack.c.l.b16 %v2276
      %v2320 = vunpack.c.l.b16 %v2277
      %v2321 = vunpack.c.l.b16 %v2278
      %v2322 = vunpack.c.l.b16 %v2279
      %v2323 = vunpack.c.l.b16 %v2280
      %v2324 = vunpack.c.l.b16 %v2281
      %v2325 = vunpack.c.l.b16 %v2282
      %v2326 = vunpack.c.l.b16 %v2283
      %v2327 = vunpack.c.l.b16 %v2284
      %v2328 = vunpack.c.l.b16 %v2285
      %v2329 = vunpack.c.l.b16 %v2286
      %v2330 = vunpack.c.l.b16 %v2287
      %v2331 = vunpack.c.l.b16 %v2288
      %v2332 = vunpack.c.l.b16 %v2289
      %v2333 = vunpack.c.l.b16 %v2290
      %v2334 = vunpack.c.l.b16 %v2291
      %v2335 = vunpack.c.l.b16 %v2292
      %v2336 = vunpack.c.l.b16 %v2293
      %v2337 = vpack.c.b16 %v2320, %v2319
      %v2338 = vpack.c.b16 %v2322, %v2321
      %v2339 = vpack.c.b16 %v2324, %v2323
      %v2340 = vpack.c.b16 %v2326, %v2325
      %v2341 = vpack.c.b16 %v2328, %v2327
      %v2342 = vpack.c.b16 %v2330, %v2329
      %v2343 = vpack.c.b16 %v2332, %v2331
      %v2344 = vpack.c.b16 %v2334, %v2333
      %v2345 = vpack.c.b16 %v2336, %v2335
      %vm2355 = vcmask 130048
      %v2357 = vsel %vm2355, %v2298, 0
      %2359 = vmatprep.subr.bf16.mxu0 0
      %2360 = vmatpush1.bf16.msra.mxu0 %v2344
      %2361 = vmatprep.subr.bf16.mxu0 0
      %2362 = vmatpush1.bf16.msra.mxu0 %v2343
      %2363 = vmatprep.subr.bf16.mxu0 0
      %2364 = vmatpush1.bf16.msra.mxu0 %v2342
      %2365 = vmatprep.subr.bf16.mxu0 0
      %2366 = vmatpush1.bf16.msra.mxu0 %v2341
      %2367 = vmatprep.subr.bf16.mxu0 0
      %2368 = vmatpush1.bf16.msra.mxu0 %v2340
      %2369 = vmatprep.subr.bf16.mxu0 0
      %2370 = vmatpush1.bf16.msra.mxu0 %v2339
      %2371 = vmatprep.subr.bf16.mxu0 0
      %2372 = vmatpush1.bf16.msra.mxu0 %v2338
      %2373 = vmatprep.subr.bf16.mxu0 0
      %2374 = vmatpush1.bf16.msra.mxu0 %v2337
      %2375 = vmatprep.subr.bf16.mxu0 0
      %2376 = vmatpush2.bf16.msra.mxu0 0
      %2377 = vmatprep.subr.bf16.mxu0 0
      %2378 = vmatpush2.bf16.msra.mxu0 0
      %2379 = vmatprep.subr.bf16.mxu0 0
      %2380 = vmatpush2.bf16.msra.mxu0 0
      %2381 = vmatprep.subr.bf16.mxu0 0
      %2382 = vmatpush2.bf16.msra.mxu0 0
      %2383 = vmatprep.subr.bf16.mxu0 0
      %2384 = vmatpush2.bf16.msra.mxu0 0
      %2385 = vmatprep.subr.bf16.mxu0 0
      %2386 = vmatpush2.bf16.msra.mxu0 0
      %2387 = vmatprep.subr.bf16.mxu0 0
      %2388 = vmatpush2.bf16.msra.mxu0 0
      %2389 = vmatprep.subr.bf16.mxu0 0
      %2390 = vmatpush2.bf16.msra.mxu0 %v2345
      %2391 = vmatprep.mubr.bf16.mxu0 %v2357
      %2392 = vmatmul.mubr.bf16.gmra.mxu0 %v2295
      %v2393 = vpop.f32.mrf.mxu0
      %v2394 = vadd.f32 0.0, %v2393
      %v2395 = vpop.f32.mrf.mxu0
      %v2396 = vpop.f32.mrf.mxu0
      %v2397 = vpop.f32.mrf.mxu0
      %2398 = vdwg.mxu0
      %v2417 = vunpack.c.l.b16 %v2257
      %v2418 = vunpack.c.l.b16 %v2258
      %v2419 = vunpack.c.l.b16 %v2259
      %v2420 = vunpack.c.l.b16 %v2260
      %v2421 = vunpack.c.l.b16 %v2261
      %v2422 = vunpack.c.l.b16 %v2262
      %v2423 = vunpack.c.l.b16 %v2263
      %v2424 = vunpack.c.l.b16 %v2264
      %v2425 = vunpack.c.l.b16 %v2265
      %v2426 = vunpack.c.l.b16 %v2266
      %v2427 = vunpack.c.l.b16 %v2267
      %v2428 = vunpack.c.l.b16 %v2268
      %v2429 = vunpack.c.l.b16 %v2269
      %v2430 = vunpack.c.l.b16 %v2270
      %v2431 = vunpack.c.l.b16 %v2271
      %v2432 = vunpack.c.l.b16 %v2272
      %v2433 = vunpack.c.l.b16 %v2273
      %v2434 = vunpack.c.l.b16 %v2274
      %v2435 = vpack.c.b16 %v2418, %v2417
      %v2436 = vpack.c.b16 %v2420, %v2419
      %v2437 = vpack.c.b16 %v2422, %v2421
      %v2438 = vpack.c.b16 %v2424, %v2423
      %v2439 = vpack.c.b16 %v2426, %v2425
      %v2440 = vpack.c.b16 %v2428, %v2427
      %v2441 = vpack.c.b16 %v2430, %v2429
      %v2442 = vpack.c.b16 %v2432, %v2431
      %v2443 = vpack.c.b16 %v2434, %v2433
      %v2453 = vsel %vm2355, %v2256, 0
      %2455 = vmatprep.subr.bf16.mxu0 0
      %2456 = vmatpush1.bf16.msra.mxu0 %v2442
      %2457 = vmatprep.subr.bf16.mxu0 0
      %2458 = vmatpush1.bf16.msra.mxu0 %v2441
      %2459 = vmatprep.subr.bf16.mxu0 0
      %2460 = vmatpush1.bf16.msra.mxu0 %v2440
      %2461 = vmatprep.subr.bf16.mxu0 0
      %2462 = vmatpush1.bf16.msra.mxu0 %v2439
      %2463 = vmatprep.subr.bf16.mxu0 0
      %2464 = vmatpush1.bf16.msra.mxu0 %v2438
      %2465 = vmatprep.subr.bf16.mxu0 0
      %2466 = vmatpush1.bf16.msra.mxu0 %v2437
      %2467 = vmatprep.subr.bf16.mxu0 0
      %2468 = vmatpush1.bf16.msra.mxu0 %v2436
      %2469 = vmatprep.subr.bf16.mxu0 0
      %2470 = vmatpush1.bf16.msra.mxu0 %v2435
      %2471 = vmatprep.subr.bf16.mxu0 0
      %2472 = vmatpush2.bf16.msra.mxu0 0
      %2473 = vmatprep.subr.bf16.mxu0 0
      %2474 = vmatpush2.bf16.msra.mxu0 0
      %2475 = vmatprep.subr.bf16.mxu0 0
      %2476 = vmatpush2.bf16.msra.mxu0 0
      %2477 = vmatprep.subr.bf16.mxu0 0
      %2478 = vmatpush2.bf16.msra.mxu0 0
      %2479 = vmatprep.subr.bf16.mxu0 0
      %2480 = vmatpush2.bf16.msra.mxu0 0
      %2481 = vmatprep.subr.bf16.mxu0 0
      %2482 = vmatpush2.bf16.msra.mxu0 0
      %2483 = vmatprep.subr.bf16.mxu0 0
      %2484 = vmatpush2.bf16.msra.mxu0 0
      %2485 = vmatprep.subr.bf16.mxu0 0
      %2486 = vmatpush2.bf16.msra.mxu0 %v2443
      %2487 = vmatprep.mubr.bf16.mxu0 %v2453
      %2488 = vmatmul.mubr.bf16.gmra.mxu0 %v2255
      %v2489 = vpop.f32.mrf.mxu0
      %v2490 = vadd.f32 %v2394, %v2489
      %v2491 = vpop.f32.mrf.mxu0
      %v2492 = vpop.f32.mrf.mxu0
      %v2493 = vpop.f32.mrf.mxu0
      %2494 = vdwg.mxu0
      %s2495 = scalar_lea.vmem %s9, 144
      %v2496 = vld [vmem:[%s2495] sm:$0xf]
      %v2497 = vld [vmem:[%s2495 + $0x4] sm:$0xf]
      %v2498 = vld [vmem:[%s2495 + $0x8] sm:$0xf]
      %v2499 = vld [vmem:[%s2495 + $0xc] sm:$0xf]
      %v2500 = vld [vmem:[%s2495 + $0x10] sm:$0xf]
      %v2501 = vld [vmem:[%s2495 + $0x14] sm:$0xf]
      %v2502 = vld [vmem:[%s2495 + $0x18] sm:$0xf]
      %v2503 = vld [vmem:[%s2495 + $0x1c] sm:$0xf]
      %v2504 = vld [vmem:[%s2495 + $0x20] sm:$0xf]
      %v2505 = vld [vmem:[%s2495 + $0x24] sm:$0xf]
      %v2506 = vld [vmem:[%s2495 + $0x28] sm:$0xf]
      %v2507 = vld [vmem:[%s2495 + $0x2c] sm:$0xf]
      %v2508 = vld [vmem:[%s2495 + $0x30] sm:$0xf]
      %v2509 = vld [vmem:[%s2495 + $0x34] sm:$0xf]
      %v2510 = vld [vmem:[%s2495 + $0x38] sm:$0xf]
      %v2511 = vld [vmem:[%s2495 + $0x3c] sm:$0xf]
      %v2512 = vld [vmem:[%s2495 + $0x40] sm:$0xf]
      %v2513 = vld [vmem:[%s2495 + $0x44] sm:$0xf]
      %v2516 = vrot.slane %v2255, 1
      %v2517 = vrot.slane %v2256, 1
      %v2537 = vunpack.c.l.b16 %v2496
      %v2538 = vunpack.c.l.b16 %v2497
      %v2539 = vunpack.c.l.b16 %v2498
      %v2540 = vunpack.c.l.b16 %v2499
      %v2541 = vunpack.c.l.b16 %v2500
      %v2542 = vunpack.c.l.b16 %v2501
      %v2543 = vunpack.c.l.b16 %v2502
      %v2544 = vunpack.c.l.b16 %v2503
      %v2545 = vunpack.c.l.b16 %v2504
      %v2546 = vunpack.c.l.b16 %v2505
      %v2547 = vunpack.c.l.b16 %v2506
      %v2548 = vunpack.c.l.b16 %v2507
      %v2549 = vunpack.c.l.b16 %v2508
      %v2550 = vunpack.c.l.b16 %v2509
      %v2551 = vunpack.c.l.b16 %v2510
      %v2552 = vunpack.c.l.b16 %v2511
      %v2553 = vunpack.c.l.b16 %v2512
      %v2554 = vunpack.c.l.b16 %v2513
      %v2555 = vpack.c.b16 %v2538, %v2537
      %v2556 = vpack.c.b16 %v2540, %v2539
      %v2557 = vpack.c.b16 %v2542, %v2541
      %v2558 = vpack.c.b16 %v2544, %v2543
      %v2559 = vpack.c.b16 %v2546, %v2545
      %v2560 = vpack.c.b16 %v2548, %v2547
      %v2561 = vpack.c.b16 %v2550, %v2549
      %v2562 = vpack.c.b16 %v2552, %v2551
      %v2563 = vpack.c.b16 %v2554, %v2553
      %v2574 = vsel %vm2355, %v2517, 0
      %2576 = vmatprep.subr.bf16.mxu0 0
      %2577 = vmatpush1.bf16.msra.mxu0 %v2562
      %2578 = vmatprep.subr.bf16.mxu0 0
      %2579 = vmatpush1.bf16.msra.mxu0 %v2561
      %2580 = vmatprep.subr.bf16.mxu0 0
      %2581 = vmatpush1.bf16.msra.mxu0 %v2560
      %2582 = vmatprep.subr.bf16.mxu0 0
      %2583 = vmatpush1.bf16.msra.mxu0 %v2559
      %2584 = vmatprep.subr.bf16.mxu0 0
      %2585 = vmatpush1.bf16.msra.mxu0 %v2558
      %2586 = vmatprep.subr.bf16.mxu0 0
      %2587 = vmatpush1.bf16.msra.mxu0 %v2557
      %2588 = vmatprep.subr.bf16.mxu0 0
      %2589 = vmatpush1.bf16.msra.mxu0 %v2556
      %2590 = vmatprep.subr.bf16.mxu0 0
      %2591 = vmatpush1.bf16.msra.mxu0 %v2555
      %2592 = vmatprep.subr.bf16.mxu0 0
      %2593 = vmatpush2.bf16.msra.mxu0 0
      %2594 = vmatprep.subr.bf16.mxu0 0
      %2595 = vmatpush2.bf16.msra.mxu0 0
      %2596 = vmatprep.subr.bf16.mxu0 0
      %2597 = vmatpush2.bf16.msra.mxu0 0
      %2598 = vmatprep.subr.bf16.mxu0 0
      %2599 = vmatpush2.bf16.msra.mxu0 0
      %2600 = vmatprep.subr.bf16.mxu0 0
      %2601 = vmatpush2.bf16.msra.mxu0 0
      %2602 = vmatprep.subr.bf16.mxu0 0
      %2603 = vmatpush2.bf16.msra.mxu0 0
      %2604 = vmatprep.subr.bf16.mxu0 0
      %2605 = vmatpush2.bf16.msra.mxu0 0
      %2606 = vmatprep.subr.bf16.mxu0 0
      %2607 = vmatpush2.bf16.msra.mxu0 %v2563
      %2608 = vmatprep.mubr.bf16.mxu0 %v2574
      %2609 = vmatmul.mubr.bf16.gmra.mxu0 %v2516
      %v2610 = vpop.f32.mrf.mxu0
      %v2611 = vadd.f32 0.0, %v2610
      %v2612 = vpop.f32.mrf.mxu0
      %v2613 = vpop.f32.mrf.mxu0
      %v2614 = vpop.f32.mrf.mxu0
      %2615 = vdwg.mxu0
      %v2616 = vadd.f32 %v2490, %v2611
      %s2617 = scalar_lea.vmem %s9, 216
      %v2618 = vld [vmem:[%s2617] sm:$0xf]
      %v2619 = vld [vmem:[%s2617 + $0x4] sm:$0xf]
      %v2620 = vld [vmem:[%s2617 + $0x8] sm:$0xf]
      %v2621 = vld [vmem:[%s2617 + $0xc] sm:$0xf]
      %v2622 = vld [vmem:[%s2617 + $0x10] sm:$0xf]
      %v2623 = vld [vmem:[%s2617 + $0x14] sm:$0xf]
      %v2624 = vld [vmem:[%s2617 + $0x18] sm:$0xf]
      %v2625 = vld [vmem:[%s2617 + $0x1c] sm:$0xf]
      %v2626 = vld [vmem:[%s2617 + $0x20] sm:$0xf]
      %v2627 = vld [vmem:[%s2617 + $0x24] sm:$0xf]
      %v2628 = vld [vmem:[%s2617 + $0x28] sm:$0xf]
      %v2629 = vld [vmem:[%s2617 + $0x2c] sm:$0xf]
      %v2630 = vld [vmem:[%s2617 + $0x30] sm:$0xf]
      %v2631 = vld [vmem:[%s2617 + $0x34] sm:$0xf]
      %v2632 = vld [vmem:[%s2617 + $0x38] sm:$0xf]
      %v2633 = vld [vmem:[%s2617 + $0x3c] sm:$0xf]
      %v2634 = vld [vmem:[%s2617 + $0x40] sm:$0xf]
      %v2635 = vld [vmem:[%s2617 + $0x44] sm:$0xf]
      %v2636 = vrot.slane %v2295, 1
      %v2637 = vrot.slane %v2298, 1
      %v2657 = vunpack.c.l.b16 %v2618
      %v2658 = vunpack.c.l.b16 %v2619
      %v2659 = vunpack.c.l.b16 %v2620
      %v2660 = vunpack.c.l.b16 %v2621
      %v2661 = vunpack.c.l.b16 %v2622
      %v2662 = vunpack.c.l.b16 %v2623
      %v2663 = vunpack.c.l.b16 %v2624
      %v2664 = vunpack.c.l.b16 %v2625
      %v2665 = vunpack.c.l.b16 %v2626
      %v2666 = vunpack.c.l.b16 %v2627
      %v2667 = vunpack.c.l.b16 %v2628
      %v2668 = vunpack.c.l.b16 %v2629
      %v2669 = vunpack.c.l.b16 %v2630
      %v2670 = vunpack.c.l.b16 %v2631
      %v2671 = vunpack.c.l.b16 %v2632
      %v2672 = vunpack.c.l.b16 %v2633
      %v2673 = vunpack.c.l.b16 %v2634
      %v2674 = vunpack.c.l.b16 %v2635
      %v2675 = vpack.c.b16 %v2658, %v2657
      %v2676 = vpack.c.b16 %v2660, %v2659
      %v2677 = vpack.c.b16 %v2662, %v2661
      %v2678 = vpack.c.b16 %v2664, %v2663
      %v2679 = vpack.c.b16 %v2666, %v2665
      %v2680 = vpack.c.b16 %v2668, %v2667
      %v2681 = vpack.c.b16 %v2670, %v2669
      %v2682 = vpack.c.b16 %v2672, %v2671
      %v2683 = vpack.c.b16 %v2674, %v2673
      %v2694 = vsel %vm2355, %v2637, 0
      %2696 = vmatprep.subr.bf16.mxu0 0
      %2697 = vmatpush1.bf16.msra.mxu0 %v2682
      %2698 = vmatprep.subr.bf16.mxu0 0
      %2699 = vmatpush1.bf16.msra.mxu0 %v2681
      %2700 = vmatprep.subr.bf16.mxu0 0
      %2701 = vmatpush1.bf16.msra.mxu0 %v2680
      %2702 = vmatprep.subr.bf16.mxu0 0
      %2703 = vmatpush1.bf16.msra.mxu0 %v2679
      %2704 = vmatprep.subr.bf16.mxu0 0
      %2705 = vmatpush1.bf16.msra.mxu0 %v2678
      %2706 = vmatprep.subr.bf16.mxu0 0
      %2707 = vmatpush1.bf16.msra.mxu0 %v2677
      %2708 = vmatprep.subr.bf16.mxu0 0
      %2709 = vmatpush1.bf16.msra.mxu0 %v2676
      %2710 = vmatprep.subr.bf16.mxu0 0
      %2711 = vmatpush1.bf16.msra.mxu0 %v2675
      %2712 = vmatprep.subr.bf16.mxu0 0
      %2713 = vmatpush2.bf16.msra.mxu0 0
      %2714 = vmatprep.subr.bf16.mxu0 0
      %2715 = vmatpush2.bf16.msra.mxu0 0
      %2716 = vmatprep.subr.bf16.mxu0 0
      %2717 = vmatpush2.bf16.msra.mxu0 0
      %2718 = vmatprep.subr.bf16.mxu0 0
      %2719 = vmatpush2.bf16.msra.mxu0 0
      %2720 = vmatprep.subr.bf16.mxu0 0
      %2721 = vmatpush2.bf16.msra.mxu0 0
      %2722 = vmatprep.subr.bf16.mxu0 0
      %2723 = vmatpush2.bf16.msra.mxu0 0
      %2724 = vmatprep.subr.bf16.mxu0 0
      %2725 = vmatpush2.bf16.msra.mxu0 0
      %2726 = vmatprep.subr.bf16.mxu0 0
      %2727 = vmatpush2.bf16.msra.mxu0 %v2683
      %2728 = vmatprep.mubr.bf16.mxu0 %v2694
      %2729 = vmatmul.mubr.bf16.gmra.mxu0 %v2636
      %v2730 = vpop.f32.mrf.mxu0
      %v2731 = vadd.f32 0.0, %v2730
      %v2732 = vpop.f32.mrf.mxu0
      %v2733 = vpop.f32.mrf.mxu0
      %v2734 = vpop.f32.mrf.mxu0
      %2735 = vdwg.mxu0
      %v2736 = vadd.f32 %v2616, %v2731
      %s2737 = scalar_lea.vmem %s9, 288
      %v2738 = vld [vmem:[%s2737] sm:$0xf]
      %v2739 = vld [vmem:[%s2737 + $0x4] sm:$0xf]
      %v2740 = vld [vmem:[%s2737 + $0x8] sm:$0xf]
      %v2741 = vld [vmem:[%s2737 + $0xc] sm:$0xf]
      %v2742 = vld [vmem:[%s2737 + $0x10] sm:$0xf]
      %v2743 = vld [vmem:[%s2737 + $0x14] sm:$0xf]
      %v2744 = vld [vmem:[%s2737 + $0x18] sm:$0xf]
      %v2745 = vld [vmem:[%s2737 + $0x1c] sm:$0xf]
      %v2746 = vld [vmem:[%s2737 + $0x20] sm:$0xf]
      %v2747 = vld [vmem:[%s2737 + $0x24] sm:$0xf]
      %v2748 = vld [vmem:[%s2737 + $0x28] sm:$0xf]
      %v2749 = vld [vmem:[%s2737 + $0x2c] sm:$0xf]
      %v2750 = vld [vmem:[%s2737 + $0x30] sm:$0xf]
      %v2751 = vld [vmem:[%s2737 + $0x34] sm:$0xf]
      %v2752 = vld [vmem:[%s2737 + $0x38] sm:$0xf]
      %v2753 = vld [vmem:[%s2737 + $0x3c] sm:$0xf]
      %v2754 = vld [vmem:[%s2737 + $0x40] sm:$0xf]
      %v2755 = vld [vmem:[%s2737 + $0x44] sm:$0xf]
      %v2756 = vrot.slane %v2255, 2
      %v2757 = vrot.slane %v2256, 2
      %v2777 = vunpack.c.l.b16 %v2738
      %v2778 = vunpack.c.l.b16 %v2739
      %v2779 = vunpack.c.l.b16 %v2740
      %v2780 = vunpack.c.l.b16 %v2741
      %v2781 = vunpack.c.l.b16 %v2742
      %v2782 = vunpack.c.l.b16 %v2743
      %v2783 = vunpack.c.l.b16 %v2744
      %v2784 = vunpack.c.l.b16 %v2745
      %v2785 = vunpack.c.l.b16 %v2746
      %v2786 = vunpack.c.l.b16 %v2747
      %v2787 = vunpack.c.l.b16 %v2748
      %v2788 = vunpack.c.l.b16 %v2749
      %v2789 = vunpack.c.l.b16 %v2750
      %v2790 = vunpack.c.l.b16 %v2751
      %v2791 = vunpack.c.l.b16 %v2752
      %v2792 = vunpack.c.l.b16 %v2753
      %v2793 = vunpack.c.l.b16 %v2754
      %v2794 = vunpack.c.l.b16 %v2755
      %v2795 = vpack.c.b16 %v2778, %v2777
      %v2796 = vpack.c.b16 %v2780, %v2779
      %v2797 = vpack.c.b16 %v2782, %v2781
      %v2798 = vpack.c.b16 %v2784, %v2783
      %v2799 = vpack.c.b16 %v2786, %v2785
      %v2800 = vpack.c.b16 %v2788, %v2787
      %v2801 = vpack.c.b16 %v2790, %v2789
      %v2802 = vpack.c.b16 %v2792, %v2791
      %v2803 = vpack.c.b16 %v2794, %v2793
      %v2814 = vsel %vm2355, %v2757, 0
      %2816 = vmatprep.subr.bf16.mxu0 0
      %2817 = vmatpush1.bf16.msra.mxu0 %v2802
      %2818 = vmatprep.subr.bf16.mxu0 0
      %2819 = vmatpush1.bf16.msra.mxu0 %v2801
      %2820 = vmatprep.subr.bf16.mxu0 0
      %2821 = vmatpush1.bf16.msra.mxu0 %v2800
      %2822 = vmatprep.subr.bf16.mxu0 0
      %2823 = vmatpush1.bf16.msra.mxu0 %v2799
      %2824 = vmatprep.subr.bf16.mxu0 0
      %2825 = vmatpush1.bf16.msra.mxu0 %v2798
      %2826 = vmatprep.subr.bf16.mxu0 0
      %2827 = vmatpush1.bf16.msra.mxu0 %v2797
      %2828 = vmatprep.subr.bf16.mxu0 0
      %2829 = vmatpush1.bf16.msra.mxu0 %v2796
      %2830 = vmatprep.subr.bf16.mxu0 0
      %2831 = vmatpush1.bf16.msra.mxu0 %v2795
      %2832 = vmatprep.subr.bf16.mxu0 0
      %2833 = vmatpush2.bf16.msra.mxu0 0
      %2834 = vmatprep.subr.bf16.mxu0 0
      %2835 = vmatpush2.bf16.msra.mxu0 0
      %2836 = vmatprep.subr.bf16.mxu0 0
      %2837 = vmatpush2.bf16.msra.mxu0 0
      %2838 = vmatprep.subr.bf16.mxu0 0
      %2839 = vmatpush2.bf16.msra.mxu0 0
      %2840 = vmatprep.subr.bf16.mxu0 0
      %2841 = vmatpush2.bf16.msra.mxu0 0
      %2842 = vmatprep.subr.bf16.mxu0 0
      %2843 = vmatpush2.bf16.msra.mxu0 0
      %2844 = vmatprep.subr.bf16.mxu0 0
      %2845 = vmatpush2.bf16.msra.mxu0 0
      %2846 = vmatprep.subr.bf16.mxu0 0
      %2847 = vmatpush2.bf16.msra.mxu0 %v2803
      %2848 = vmatprep.mubr.bf16.mxu0 %v2814
      %2849 = vmatmul.mubr.bf16.gmra.mxu0 %v2756
      %v2850 = vpop.f32.mrf.mxu0
      %v2851 = vadd.f32 0.0, %v2850
      %v2852 = vpop.f32.mrf.mxu0
      %v2853 = vpop.f32.mrf.mxu0
      %v2854 = vpop.f32.mrf.mxu0
      %2855 = vdwg.mxu0
      %v2856 = vadd.f32 %v2736, %v2851
      %v2857 = vld [vmem:[%s10] sm:$0x1]
      %v2858 = vadd.f32 %v2856, %v2857
      %v2859 = vmax.f32 %v2858, 0.0
      %v2860 = vpack.c.bf16 %v2859, %v2859
      %v2861 = vld [vmem:[%s11] sm:$0xf]
      %v2862 = vld [vmem:[%s11 + $0x4] sm:$0xf]
      %v2863 = vld [vmem:[%s11 + $0x8] sm:$0xf]
      %v2864 = vld [vmem:[%s11 + $0xc] sm:$0xf]
      %v2865 = vld [vmem:[%s11 + $0x10] sm:$0xf]
      %v2866 = vld [vmem:[%s11 + $0x14] sm:$0xf]
      %v2867 = vld [vmem:[%s11 + $0x18] sm:$0xf]
      %v2868 = vld [vmem:[%s11 + $0x1c] sm:$0xf]
      %v2869 = vld [vmem:[%s11 + $0x20] sm:$0xf]
      %v2870 = vld [vmem:[%s11 + $0x24] sm:$0xf]
      %v2871 = vld [vmem:[%s11 + $0x28] sm:$0xf]
      %v2872 = vld [vmem:[%s11 + $0x2c] sm:$0xf]
      %v2873 = vld [vmem:[%s11 + $0x30] sm:$0xf]
      %v2874 = vld [vmem:[%s11 + $0x34] sm:$0xf]
      %v2875 = vld [vmem:[%s11 + $0x38] sm:$0xf]
      %v2876 = vld [vmem:[%s12] sm:$0x1]
      %v2892 = vunpack.c.l.b16 %v2861
      %v2893 = vunpack.c.l.b16 %v2862
      %v2894 = vunpack.c.l.b16 %v2863
      %v2895 = vunpack.c.l.b16 %v2864
      %v2896 = vunpack.c.l.b16 %v2865
      %v2897 = vunpack.c.l.b16 %v2866
      %v2898 = vunpack.c.l.b16 %v2867
      %v2899 = vunpack.c.l.b16 %v2868
      %v2900 = vunpack.c.l.b16 %v2869
      %v2901 = vunpack.c.l.b16 %v2870
      %v2902 = vunpack.c.l.b16 %v2871
      %v2903 = vunpack.c.l.b16 %v2872
      %v2904 = vunpack.c.l.b16 %v2873
      %v2905 = vunpack.c.l.b16 %v2874
      %v2906 = vunpack.c.l.b16 %v2875
      %v2907 = vpack.c.b16 %v2893, %v2892
      %v2908 = vpack.c.b16 %v2895, %v2894
      %v2909 = vpack.c.b16 %v2897, %v2896
      %v2910 = vpack.c.b16 %v2899, %v2898
      %v2911 = vpack.c.b16 %v2901, %v2900
      %v2912 = vpack.c.b16 %v2903, %v2902
      %v2913 = vpack.c.b16 %v2905, %v2904
      %v2914 = vpack.c.b16 %v2906, %v2906
      %vm2922 = vcmask 982016
      %v2924 = vsel %vm2922, %v2860, 0
      %vm2926 = vcmask 1043456
      %v2928 = vsel %vm2926, %v2914, 0
      %2930 = vmatprep.subr.bf16.mxu0 0
      %2931 = vmatpush1.bf16.msra.mxu0 %v2928
      %2932 = vmatprep.subr.bf16.mxu0 0
      %2933 = vmatpush1.bf16.msra.mxu0 %v2913
      %2934 = vmatprep.subr.bf16.mxu0 0
      %2935 = vmatpush1.bf16.msra.mxu0 %v2912
      %2936 = vmatprep.subr.bf16.mxu0 0
      %2937 = vmatpush1.bf16.msra.mxu0 %v2911
      %2938 = vmatprep.subr.bf16.mxu0 0
      %2939 = vmatpush1.bf16.msra.mxu0 %v2910
      %2940 = vmatprep.subr.bf16.mxu0 0
      %2941 = vmatpush1.bf16.msra.mxu0 %v2909
      %2942 = vmatprep.subr.bf16.mxu0 0
      %2943 = vmatpush1.bf16.msra.mxu0 %v2908
      %2944 = vmatprep.subr.bf16.mxu0 0
      %2945 = vmatpush1.bf16.msra.mxu0 %v2907
      %2946 = vmatprep.subr.bf16.mxu0 0
      %2947 = vmatpush2.bf16.msra.mxu0 0
      %2948 = vmatprep.subr.bf16.mxu0 0
      %2949 = vmatpush2.bf16.msra.mxu0 0
      %2950 = vmatprep.subr.bf16.mxu0 0
      %2951 = vmatpush2.bf16.msra.mxu0 0
      %2952 = vmatprep.subr.bf16.mxu0 0
      %2953 = vmatpush2.bf16.msra.mxu0 0
      %2954 = vmatprep.subr.bf16.mxu0 0
      %2955 = vmatpush2.bf16.msra.mxu0 0
      %2956 = vmatprep.subr.bf16.mxu0 0
      %2957 = vmatpush2.bf16.msra.mxu0 0
      %2958 = vmatprep.subr.bf16.mxu0 0
      %2959 = vmatpush2.bf16.msra.mxu0 0
      %2960 = vmatprep.subr.bf16.mxu0 0
      %2961 = vmatpush2.bf16.msra.mxu0 0
      %2962 = vmatprep.mubr.bf16.mxu0 0
      %2963 = vmatmul.mubr.bf16.gmra.mxu0 %v2924
      %v2964 = vpop.f32.mrf.mxu0
      %v2965 = vadd.f32 %v2876, %v2964
      %v2966 = vpop.f32.mrf.mxu0
      %v2967 = vpop.f32.mrf.mxu0
      %v2968 = vpop.f32.mrf.mxu0
      %2969 = vdwg.mxu0
      %v2970 = vmax.f32 %v2965, 0.0
      %v2971 = vpack.c.bf16 %v2970, %v2970
      %v2972 = vld [vmem:[%s13] sm:$0xf]
      %v2973 = vld [vmem:[%s13 + $0x4] sm:$0xf]
      %v2974 = vld [vmem:[%s13 + $0x8] sm:$0xf]
      %v2975 = vld [vmem:[%s13 + $0xc] sm:$0xf]
      %v2976 = vld [vmem:[%s13 + $0x10] sm:$0xf]
      %v2977 = vld [vmem:[%s13 + $0x14] sm:$0xf]
      %v2978 = vld [vmem:[%s13 + $0x18] sm:$0xf]
      %v2979 = vld [vmem:[%s13 + $0x1c] sm:$0xf]
      %v2980 = vld [vmem:[#allocation2] sm:$0x1]
      %v2989 = vunpack.c.l.b16 %v2972
      %v2990 = vunpack.c.l.b16 %v2973
      %v2991 = vunpack.c.l.b16 %v2974
      %v2992 = vunpack.c.l.b16 %v2975
      %v2993 = vunpack.c.l.b16 %v2976
      %v2994 = vunpack.c.l.b16 %v2977
      %v2995 = vunpack.c.l.b16 %v2978
      %v2996 = vunpack.c.l.b16 %v2979
      %v2997 = vpack.c.b16 %v2990, %v2989
      %v2998 = vpack.c.b16 %v2992, %v2991
      %v2999 = vpack.c.b16 %v2994, %v2993
      %v3000 = vpack.c.b16 %v2996, %v2995
      %vm3005 = vcmask 523264
      %v3007 = vsel %vm3005, %v2971, 0
      %3009 = vmatprep.subr.bf16.mxu0 0
      %3010 = vmatpush1.bf16.msra.mxu0 0
      %3011 = vmatprep.subr.bf16.mxu0 0
      %3012 = vmatpush1.bf16.msra.mxu0 0
      %3013 = vmatprep.subr.bf16.mxu0 0
      %3014 = vmatpush1.bf16.msra.mxu0 0
      %3015 = vmatprep.subr.bf16.mxu0 0
      %3016 = vmatpush1.bf16.msra.mxu0 0
      %3017 = vmatprep.subr.bf16.mxu0 0
      %3018 = vmatpush1.bf16.msra.mxu0 %v3000
      %3019 = vmatprep.subr.bf16.mxu0 0
      %3020 = vmatpush1.bf16.msra.mxu0 %v2999
      %3021 = vmatprep.subr.bf16.mxu0 0
      %3022 = vmatpush1.bf16.msra.mxu0 %v2998
      %3023 = vmatprep.subr.bf16.mxu0 0
      %3024 = vmatpush1.bf16.msra.mxu0 %v2997
      %3025 = vmatprep.subr.bf16.mxu0 0
      %3026 = vmatpush2.bf16.msra.mxu0 0
      %3027 = vmatprep.subr.bf16.mxu0 0
      %3028 = vmatpush2.bf16.msra.mxu0 0
      %3029 = vmatprep.subr.bf16.mxu0 0
      %3030 = vmatpush2.bf16.msra.mxu0 0
      %3031 = vmatprep.subr.bf16.mxu0 0
      %3032 = vmatpush2.bf16.msra.mxu0 0
      %3033 = vmatprep.subr.bf16.mxu0 0
      %3034 = vmatpush2.bf16.msra.mxu0 0
      %3035 = vmatprep.subr.bf16.mxu0 0
      %3036 = vmatpush2.bf16.msra.mxu0 0
      %3037 = vmatprep.subr.bf16.mxu0 0
      %3038 = vmatpush2.bf16.msra.mxu0 0
      %3039 = vmatprep.subr.bf16.mxu0 0
      %3040 = vmatpush2.bf16.msra.mxu0 0
      %3041 = vmatprep.mubr.bf16.mxu0 0
      %3042 = vmatmul.mubr.bf16.gmra.mxu0 %v3007
      %v3043 = vpop.f32.mrf.mxu0
      %v3044 = vadd.f32 %v2980, %v3043
      %v3045 = vpop.f32.mrf.mxu0
      %v3046 = vpop.f32.mrf.mxu0
      %v3047 = vpop.f32.mrf.mxu0
      %3048 = vdwg.mxu0
      %v3049 = vsub.f32 0.0, %v3044
      %v3050 = vmul.f32 %v3049, 1.442695
      %v3051 = vpow.pop %v3050
      %v3052 = vadd.f32 %v3051, 1.0
      %v3053 = vrcp.pop %v3052
      %v3054 = vmul.f32 1.0, %v3053
      %vm3055 = vcmask 0
      %3056 = vst.msk [vmem:[%s492] sm:$0x1] %vm3055, %v3054
      %p3057 = scmp.lt.s32.totalorder %s28, 1
      %s3058 = scalar_select %p3057, %s28, 1
      %s3059 = scalar_lea.vmem %s15, %s3058
      // Predicated region
      $region81: #{lenet_regression_forward.1} parent=79 // pred_check
        %p3060 = pneg %p366
      $region82: #{lenet_regression_forward.1} parent=79 // pred_check_branch
        %3062 = sbr.rel (%p3060) target = $region84
      $region83: #{lenet_regression_forward.1} parent=79 // pred_region
        _
      $region84: #{lenet_regression_forward.1} parent=79 // pred_fallthru
        _
    $region80: #{lenet_regression_forward.1} parent=5 // pred_fallthru
      _
    %p3063 = scmp.le.s32.totalorder 2, %s23
    // Predicated region
    $region85: #{lenet_regression_forward.1} parent=5 // pred_check
      %p3064 = pneg %p3063
    $region86: #{lenet_regression_forward.1} parent=5 // pred_check_branch
      %3066 = sbr.rel (%p3064) target = $region88
    $region87: #{lenet_regression_forward.1} parent=5 // pred_region
      %s3067 = ssub.s32 %s23, 2
      // Predicated region
      $region89: #{lenet_regression_forward.1} parent=87 // pred_check
        %p3068 = pneg %p372
      $region90: #{lenet_regression_forward.1} parent=87 // pred_check_branch
        %3070 = sbr.rel (%p3068) target = $region92
      $region91: #{lenet_regression_forward.1} parent=87 // pred_region
        %p3071 = scmp.lt.s32.totalorder %s29, 1
        %s3072 = scalar_select %p3071, %s29, 1
        %s3073 = scalar_lea.vmem %s15, %s3072
      $region92: #{lenet_regression_forward.1} parent=87 // pred_fallthru
        _
    $region88: #{lenet_regression_forward.1} parent=5 // pred_fallthru
      _
  $region6: #{lenet_regression_forward.1} parent=0 // loop_footer
    %s27 = sadd.s32 1, %s23
  $region7: #{lenet_regression_forward.1} parent=0 // loop_footer_branch
    %22 = sbr.rel target = $region3
  $region8: #{lenet_regression_forward.1} parent=0 // loop_exit
    _

</llo_original>
